<compile_context>
chip_gen: v7x
topology: tpu7x:2x2x1
jax: 0.10.0
libtpu: 0.0.40
codegen_flags: <defaults>
</compile_context>

<pallas_src>
import jax
import jax.numpy as jnp
from jax.experimental import pallas as pl
from jax.experimental.pallas import tpu as pltpu

_VMEM_LIMIT = 32 * 1024 * 1024  # safe on v5e / v6e / v7x


# ---------------------------------------------------------------------------
# One conv stage: 9 shifted in-kernel matmuls + per-image BN partial stats.
# Optionally fuses the *previous* stage's BN + ReLU into the input path.
# ---------------------------------------------------------------------------
def _conv3x3_stats(xpf, w_taps, band_mask, *, H, W,
                   interior_mask=None, scale=None, shift=None,
                   compute_dtype=jnp.float32):
    """xpf       : (N, Cin, (H+4)*(W+2)) zero-padded activation, channel-major
       w_taps    : (9, Cout, Cin)        w[:, :, dh, dw].T per tap, k = 3*dh+dw
       band_mask : (1, H*(W+2)) f32      1 at real output columns, 0 at pad cols
       interior  : (1, (H+4)*(W+2)) f32  1 at real input pixels (fused stage)
       scale/shift: (Cin,)               previous stage's BN affine (fused stage)
       Returns (y_band (N,Cout,H*(W+2)), stats (N,Cout,2) = [sum, sumsq])."""
    N, Cin, L = xpf.shape
    Cout = w_taps.shape[1]
    Wp = W + 2
    HWp = H * Wp
    # Flat offset of input pixel (h+dh-1, w+dw-1) relative to output band
    # position r = h*Wp + wp (input padded by 2 rows top/bottom, 1 col l/r).
    offsets = tuple((dh + 1) * Wp + (dw - 1) for dh in range(3) for dw in range(3))
    fused = scale is not None

    def kernel(*refs):
        if fused:
            x_ref, w_ref, bm_ref, im_ref, sc_ref, sh_ref, y_ref, st_ref = refs
        else:
            x_ref, w_ref, bm_ref, y_ref, st_ref = refs

        x = x_ref[...]
        if fused:
            # Fused previous-stage BatchNorm + ReLU, then re-zero the conv
            # zero-padding ring (BN/ReLU of 0 is not 0).
            xf = x.astype(jnp.float32)
            xf = jnp.maximum(xf * sc_ref[...] + sh_ref[...], 0.0) * im_ref[...]
            x = xf.astype(compute_dtype)

        acc = jnp.zeros((Cout, HWp), jnp.float32)
        for k, off in enumerate(offsets):          # unrolled: 9 shifted matmuls
            acc = acc + jnp.dot(w_ref[k], x[:, off:off + HWp],
                                preferred_element_type=jnp.float32)

        acc = acc * bm_ref[...]     # zero padding-column outputs -> exact stats
        y_ref[...] = acc.astype(y_ref.dtype)
        # Per-image partial BatchNorm statistics (reduced across images in JAX).
        st_ref[:, 0:1] = jnp.sum(acc, axis=1, keepdims=True)
        st_ref[:, 1:2] = jnp.sum(acc * acc, axis=1, keepdims=True)

    in_specs = [
        pl.BlockSpec((None, Cin, L), lambda n: (n, 0, 0)),
        pl.BlockSpec((9, Cout, Cin), lambda n: (0, 0, 0)),
        pl.BlockSpec((1, HWp), lambda n: (0, 0)),
    ]
    operands = [xpf, w_taps, band_mask]
    if fused:
        in_specs += [
            pl.BlockSpec((1, L), lambda n: (0, 0)),
            pl.BlockSpec((Cin, 1), lambda n: (0, 0)),
            pl.BlockSpec((Cin, 1), lambda n: (0, 0)),
        ]
        operands += [interior_mask,
                     scale.reshape(Cin, 1).astype(jnp.float32),
                     shift.reshape(Cin, 1).astype(jnp.float32)]

    return pl.pallas_call(
        kernel,
        out_shape=(jax.ShapeDtypeStruct((N, Cout, HWp), compute_dtype),
                   jax.ShapeDtypeStruct((N, Cout, 2), jnp.float32)),
        grid_spec=pltpu.PrefetchScalarGridSpec(
            num_scalar_prefetch=0,
            grid=(N,),                      # one image per step, fully parallel
            in_specs=in_specs,
            out_specs=(pl.BlockSpec((None, Cout, HWp), lambda n: (n, 0, 0)),
                       pl.BlockSpec((None, Cout, 2), lambda n: (n, 0, 0))),
        ),
        compiler_params=pltpu.CompilerParams(
            dimension_semantics=("parallel",),
            vmem_limit_bytes=_VMEM_LIMIT),
    )(*operands)


# ---------------------------------------------------------------------------
# Final BatchNorm(affine) + ReLU — lane-dense elementwise kernel on the band.
# ---------------------------------------------------------------------------
def _bn_relu_band(y_band, scale, shift):
    N, C, L = y_band.shape

    def kernel(y_ref, sc_ref, sh_ref, o_ref):
        y = y_ref[...].astype(jnp.float32)
        o_ref[...] = jnp.maximum(y * sc_ref[...] + sh_ref[...], 0.0)

    return pl.pallas_call(
        kernel,
        out_shape=jax.ShapeDtypeStruct((N, C, L), jnp.float32),
        grid_spec=pltpu.PrefetchScalarGridSpec(
            num_scalar_prefetch=0,
            grid=(N,),
            in_specs=[pl.BlockSpec((None, C, L), lambda n: (n, 0, 0)),
                      pl.BlockSpec((C, 1), lambda n: (0, 0)),
                      pl.BlockSpec((C, 1), lambda n: (0, 0))],
            out_specs=pl.BlockSpec((None, C, L), lambda n: (n, 0, 0)),
        ),
        compiler_params=pltpu.CompilerParams(
            dimension_semantics=("parallel",),
            vmem_limit_bytes=_VMEM_LIMIT),
    )(y_band, scale.reshape(C, 1).astype(jnp.float32),
      shift.reshape(C, 1).astype(jnp.float32))


# ---------------------------------------------------------------------------
# Full Conv_block forward.  Input/output are NCHW, like the PyTorch module.
# ---------------------------------------------------------------------------
def conv_block_forward(x_nchw, params, *, eps=1e-5, compute_dtype=jnp.float32):
    N, Cin, H, W = x_nchw.shape
    Wp, Hp4 = W + 2, H + 4
    L, HWp = Hp4 * Wp, H * Wp
    count = N * H * W

    # 0/1 masks marking real pixels inside the zero-padded buffers
    # (built once in the wrapper; avoids in-kernel iota / div / mod).
    wp_idx = jnp.arange(Wp)
    hp_idx = jnp.arange(Hp4)
    col_ok = ((wp_idx >= 1) & (wp_idx <= W)).astype(jnp.float32)        # (Wp,)
    row_ok = ((hp_idx >= 2) & (hp_idx < H + 2)).astype(jnp.float32)     # (Hp4,)
    band_mask = jnp.tile(col_ok, (H,)).reshape(1, HWp)
    interior_mask = (row_ok[:, None] * col_ok[None, :]).reshape(1, L)

    def taps(w):  # (Cout, Cin, 3, 3) -> (9, Cout, Cin), tap k = 3*dh + dw
        return jnp.transpose(w, (2, 3, 0, 1)) \
                  .reshape(9, w.shape[0], w.shape[1]).astype(compute_dtype)

    def bn_affine(stats, gamma, beta):
        s, sq = jnp.sum(stats[:, :, 0], axis=0), jnp.sum(stats[:, :, 1], axis=0)
        mean = s / count
        var = jnp.maximum(sq / count - mean * mean, 0.0)  # biased, torch train mode
        scale = gamma / jnp.sqrt(var + eps)
        return scale, beta - mean * scale

    # ---- stage 1: conv (bias dropped; cancels under train-mode BN) + stats ----
    xpf1 = jnp.pad(x_nchw, ((0, 0), (0, 0), (2, 2), (1, 1))) \
              .reshape(N, Cin, L).astype(compute_dtype)
    y1, st1 = _conv3x3_stats(xpf1, taps(params["w1"]), band_mask, H=H, W=W,
                             compute_dtype=compute_dtype)
    scale1, shift1 = bn_affine(st1, params["g1"], params["bt1"])

    # ---- stage 2: conv with stage-1 BN+ReLU fused into its input path ----
    C1 = y1.shape[1]
    xpf2 = jnp.pad(y1.reshape(N, C1, H, Wp), ((0, 0), (0, 0), (2, 2), (0, 0))) \
              .reshape(N, C1, L)
    y2, st2 = _conv3x3_stats(xpf2, taps(params["w2"]), band_mask, H=H, W=W,
                             interior_mask=interior_mask, scale=scale1,
                             shift=shift1, compute_dtype=compute_dtype)
    scale2, shift2 = bn_affine(st2, params["g2"], params["bt2"])

    # ---- final BN + ReLU (lane-dense), then drop the padding columns ----
    out_band = _bn_relu_band(y2, scale2, shift2)
    return out_band.reshape(N, -1, H, Wp)[:, :, :, 1:W + 1]


# ---------------------------------------------------------------------------
# Pure-JAX reference (includes the conv bias; proves it cancels under BN).
# ---------------------------------------------------------------------------
def _reference(x_nchw, params, eps=1e-5):
    def stage(x, w, b, g, bt):
        y = jax.lax.conv_general_dilated(
            x, w, window_strides=(1, 1), padding=((1, 1), (1, 1)),
            dimension_numbers=("NCHW", "OIHW", "NCHW"))
        y = y + b[None, :, None, None]
        mean = jnp.mean(y, axis=(0, 2, 3))
        var = jnp.var(y, axis=(0, 2, 3))
        y = (y - mean[None, :, None, None]) / jnp.sqrt(var + eps)[None, :, None, None]
        y = y * g[None, :, None, None] + bt[None, :, None, None]
        return jnp.maximum(y, 0.0)

    x = stage(x_nchw, params["w1"], params["b1"], params["g1"], params["bt1"])
    x = stage(x, params["w2"], params["b2"], params["g2"], params["bt2"])
    return x


if __name__ == "__main__":
    im_ch, ot_ch = 4, 8
    N, H, W = 2, 16, 16

    key = jax.random.PRNGKey(0)
    k_x, k_w1, k_b1, k_w2, k_b2 = jax.random.split(key, 5)

    x = jax.random.normal(k_x, (N, im_ch, H, W), dtype=jnp.float32)

    params = {
        "w1": 0.1 * jax.random.normal(k_w1, (ot_ch, im_ch, 3, 3), jnp.float32),
        "b1": 0.1 * jax.random.normal(k_b1, (ot_ch,), jnp.float32),
        "g1": jnp.ones((ot_ch,), jnp.float32),      # BatchNorm weight init = 1
        "bt1": jnp.zeros((ot_ch,), jnp.float32),    # BatchNorm bias   init = 0
        "w2": 0.1 * jax.random.normal(k_w2, (ot_ch, ot_ch, 3, 3), jnp.float32),
        "b2": 0.1 * jax.random.normal(k_b2, (ot_ch,), jnp.float32),
        "g2": jnp.ones((ot_ch,), jnp.float32),
        "bt2": jnp.zeros((ot_ch,), jnp.float32),
    }

    out = jax.jit(conv_block_forward)(x, params)
    out = jax.block_until_ready(out)

    ref = _reference(x, params)
    assert out.shape == (N, ot_ch, H, W), out.shape
    assert jnp.allclose(out, ref, atol=1e-3, rtol=1e-3), "mismatch vs reference"

    print("KERNEL_OK")
</pallas_src>

<mosaic_0001>
module attributes {stable_mosaic.version = 11 : i64} {
  func.func @kernel(%arg0: i32, %arg1: memref<1x4x360xf32, #tpu.memory_space<vmem>>, %arg2: memref<9x8x4xf32, #tpu.memory_space<vmem>>, %arg3: memref<1x288xf32, #tpu.memory_space<vmem>>, %arg4: memref<1x8x288xf32, #tpu.memory_space<vmem>>, %arg5: memref<1x8x2xf32, #tpu.memory_space<vmem>>) attributes {dimension_semantics = [#tpu.dimension_semantics<parallel>], iteration_bounds = array<i64: 2>, scalar_prefetch = 0 : i64, scratch_operands = 0 : i64, tpu.core_type = #tpu.core_type<tc>, window_params = [{transform_indices = @transform_0, window_bounds = array<i64: 1, 4, 360>}, {pipeline_mode = #tpu.pipeline_mode<synchronous>, transform_indices = @transform_1, window_bounds = array<i64: 9, 8, 4>}, {pipeline_mode = #tpu.pipeline_mode<synchronous>, transform_indices = @transform_2, window_bounds = array<i64: 1, 288>}, {transform_indices = @transform_3, window_bounds = array<i64: 1, 8, 288>}, {transform_indices = @transform_4, window_bounds = array<i64: 1, 8, 2>}]} {
    %c0 = arith.constant 0 : index
    %c0_0 = arith.constant 0 : index
    %c0_1 = arith.constant 0 : index
    %0 = vector.load %arg1[%c0, %c0_0, %c0_1] : memref<1x4x360xf32, #tpu.memory_space<vmem>>, vector<1x4x360xf32>
    %1 = vector.shape_cast %0 : vector<1x4x360xf32> to vector<4x360xf32>
    %cst = arith.constant 0.000000e+00 : f32
    %2 = vector.broadcast %cst : f32 to vector<8x288xf32>
    %c0_2 = arith.constant 0 : index
    %c0_3 = arith.constant 0 : index
    %c0_4 = arith.constant 0 : index
    %3 = vector.load %arg2[%c0_2, %c0_3, %c0_4] : memref<9x8x4xf32, #tpu.memory_space<vmem>>, vector<1x8x4xf32>
    %4 = vector.shape_cast %3 : vector<1x8x4xf32> to vector<8x4xf32>
    %5 = vector.extract_strided_slice %1 {offsets = [0, 17], sizes = [4, 288], strides = [1, 1]} : vector<4x360xf32> to vector<4x288xf32>
    %cst_5 = arith.constant dense<0.000000e+00> : vector<8x288xf32>
    %6 = tpu.matmul %4, %5, %cst_5 {dimension_numbers = #tpu.dot_dimension_numbers<[1], [0], [0], [1], [0, 0, 1, 1], [], []>} : vector<8x4xf32>, vector<4x288xf32>, vector<8x288xf32> -> vector<8x288xf32>
    %7 = arith.addf %2, %6 : vector<8x288xf32>
    %c1 = arith.constant 1 : index
    %c0_6 = arith.constant 0 : index
    %c0_7 = arith.constant 0 : index
    %8 = vector.load %arg2[%c1, %c0_6, %c0_7] : memref<9x8x4xf32, #tpu.memory_space<vmem>>, vector<1x8x4xf32>
    %9 = vector.shape_cast %8 : vector<1x8x4xf32> to vector<8x4xf32>
    %10 = vector.extract_strided_slice %1 {offsets = [0, 18], sizes = [4, 288], strides = [1, 1]} : vector<4x360xf32> to vector<4x288xf32>
    %cst_8 = arith.constant dense<0.000000e+00> : vector<8x288xf32>
    %11 = tpu.matmul %9, %10, %cst_8 {dimension_numbers = #tpu.dot_dimension_numbers<[1], [0], [0], [1], [0, 0, 1, 1], [], []>} : vector<8x4xf32>, vector<4x288xf32>, vector<8x288xf32> -> vector<8x288xf32>
    %12 = arith.addf %7, %11 : vector<8x288xf32>
    %c2 = arith.constant 2 : index
    %c0_9 = arith.constant 0 : index
    %c0_10 = arith.constant 0 : index
    %13 = vector.load %arg2[%c2, %c0_9, %c0_10] : memref<9x8x4xf32, #tpu.memory_space<vmem>>, vector<1x8x4xf32>
    %14 = vector.shape_cast %13 : vector<1x8x4xf32> to vector<8x4xf32>
    %15 = vector.extract_strided_slice %1 {offsets = [0, 19], sizes = [4, 288], strides = [1, 1]} : vector<4x360xf32> to vector<4x288xf32>
    %cst_11 = arith.constant dense<0.000000e+00> : vector<8x288xf32>
    %16 = tpu.matmul %14, %15, %cst_11 {dimension_numbers = #tpu.dot_dimension_numbers<[1], [0], [0], [1], [0, 0, 1, 1], [], []>} : vector<8x4xf32>, vector<4x288xf32>, vector<8x288xf32> -> vector<8x288xf32>
    %17 = arith.addf %12, %16 : vector<8x288xf32>
    %c3 = arith.constant 3 : index
    %c0_12 = arith.constant 0 : index
    %c0_13 = arith.constant 0 : index
    %18 = vector.load %arg2[%c3, %c0_12, %c0_13] : memref<9x8x4xf32, #tpu.memory_space<vmem>>, vector<1x8x4xf32>
    %19 = vector.shape_cast %18 : vector<1x8x4xf32> to vector<8x4xf32>
    %20 = vector.extract_strided_slice %1 {offsets = [0, 35], sizes = [4, 288], strides = [1, 1]} : vector<4x360xf32> to vector<4x288xf32>
    %cst_14 = arith.constant dense<0.000000e+00> : vector<8x288xf32>
    %21 = tpu.matmul %19, %20, %cst_14 {dimension_numbers = #tpu.dot_dimension_numbers<[1], [0], [0], [1], [0, 0, 1, 1], [], []>} : vector<8x4xf32>, vector<4x288xf32>, vector<8x288xf32> -> vector<8x288xf32>
    %22 = arith.addf %17, %21 : vector<8x288xf32>
    %c4 = arith.constant 4 : index
    %c0_15 = arith.constant 0 : index
    %c0_16 = arith.constant 0 : index
    %23 = vector.load %arg2[%c4, %c0_15, %c0_16] : memref<9x8x4xf32, #tpu.memory_space<vmem>>, vector<1x8x4xf32>
    %24 = vector.shape_cast %23 : vector<1x8x4xf32> to vector<8x4xf32>
    %25 = vector.extract_strided_slice %1 {offsets = [0, 36], sizes = [4, 288], strides = [1, 1]} : vector<4x360xf32> to vector<4x288xf32>
    %cst_17 = arith.constant dense<0.000000e+00> : vector<8x288xf32>
    %26 = tpu.matmul %24, %25, %cst_17 {dimension_numbers = #tpu.dot_dimension_numbers<[1], [0], [0], [1], [0, 0, 1, 1], [], []>} : vector<8x4xf32>, vector<4x288xf32>, vector<8x288xf32> -> vector<8x288xf32>
    %27 = arith.addf %22, %26 : vector<8x288xf32>
    %c5 = arith.constant 5 : index
    %c0_18 = arith.constant 0 : index
    %c0_19 = arith.constant 0 : index
    %28 = vector.load %arg2[%c5, %c0_18, %c0_19] : memref<9x8x4xf32, #tpu.memory_space<vmem>>, vector<1x8x4xf32>
    %29 = vector.shape_cast %28 : vector<1x8x4xf32> to vector<8x4xf32>
    %30 = vector.extract_strided_slice %1 {offsets = [0, 37], sizes = [4, 288], strides = [1, 1]} : vector<4x360xf32> to vector<4x288xf32>
    %cst_20 = arith.constant dense<0.000000e+00> : vector<8x288xf32>
    %31 = tpu.matmul %29, %30, %cst_20 {dimension_numbers = #tpu.dot_dimension_numbers<[1], [0], [0], [1], [0, 0, 1, 1], [], []>} : vector<8x4xf32>, vector<4x288xf32>, vector<8x288xf32> -> vector<8x288xf32>
    %32 = arith.addf %27, %31 : vector<8x288xf32>
    %c6 = arith.constant 6 : index
    %c0_21 = arith.constant 0 : index
    %c0_22 = arith.constant 0 : index
    %33 = vector.load %arg2[%c6, %c0_21, %c0_22] : memref<9x8x4xf32, #tpu.memory_space<vmem>>, vector<1x8x4xf32>
    %34 = vector.shape_cast %33 : vector<1x8x4xf32> to vector<8x4xf32>
    %35 = vector.extract_strided_slice %1 {offsets = [0, 53], sizes = [4, 288], strides = [1, 1]} : vector<4x360xf32> to vector<4x288xf32>
    %cst_23 = arith.constant dense<0.000000e+00> : vector<8x288xf32>
    %36 = tpu.matmul %34, %35, %cst_23 {dimension_numbers = #tpu.dot_dimension_numbers<[1], [0], [0], [1], [0, 0, 1, 1], [], []>} : vector<8x4xf32>, vector<4x288xf32>, vector<8x288xf32> -> vector<8x288xf32>
    %37 = arith.addf %32, %36 : vector<8x288xf32>
    %c7 = arith.constant 7 : index
    %c0_24 = arith.constant 0 : index
    %c0_25 = arith.constant 0 : index
    %38 = vector.load %arg2[%c7, %c0_24, %c0_25] : memref<9x8x4xf32, #tpu.memory_space<vmem>>, vector<1x8x4xf32>
    %39 = vector.shape_cast %38 : vector<1x8x4xf32> to vector<8x4xf32>
    %40 = vector.extract_strided_slice %1 {offsets = [0, 54], sizes = [4, 288], strides = [1, 1]} : vector<4x360xf32> to vector<4x288xf32>
    %cst_26 = arith.constant dense<0.000000e+00> : vector<8x288xf32>
    %41 = tpu.matmul %39, %40, %cst_26 {dimension_numbers = #tpu.dot_dimension_numbers<[1], [0], [0], [1], [0, 0, 1, 1], [], []>} : vector<8x4xf32>, vector<4x288xf32>, vector<8x288xf32> -> vector<8x288xf32>
    %42 = arith.addf %37, %41 : vector<8x288xf32>
    %c8 = arith.constant 8 : index
    %c0_27 = arith.constant 0 : index
    %c0_28 = arith.constant 0 : index
    %43 = vector.load %arg2[%c8, %c0_27, %c0_28] : memref<9x8x4xf32, #tpu.memory_space<vmem>>, vector<1x8x4xf32>
    %44 = vector.shape_cast %43 : vector<1x8x4xf32> to vector<8x4xf32>
    %45 = vector.extract_strided_slice %1 {offsets = [0, 55], sizes = [4, 288], strides = [1, 1]} : vector<4x360xf32> to vector<4x288xf32>
    %cst_29 = arith.constant dense<0.000000e+00> : vector<8x288xf32>
    %46 = tpu.matmul %44, %45, %cst_29 {dimension_numbers = #tpu.dot_dimension_numbers<[1], [0], [0], [1], [0, 0, 1, 1], [], []>} : vector<8x4xf32>, vector<4x288xf32>, vector<8x288xf32> -> vector<8x288xf32>
    %47 = arith.addf %42, %46 : vector<8x288xf32>
    %c0_30 = arith.constant 0 : index
    %c0_31 = arith.constant 0 : index
    %48 = vector.load %arg3[%c0_30, %c0_31] : memref<1x288xf32, #tpu.memory_space<vmem>>, vector<1x288xf32>
    %49 = vector.broadcast %48 : vector<1x288xf32> to vector<8x288xf32>
    %50 = arith.mulf %47, %49 : vector<8x288xf32>
    %c0_32 = arith.constant 0 : index
    %c0_33 = arith.constant 0 : index
    %c0_34 = arith.constant 0 : index
    %51 = vector.load %arg4[%c0_32, %c0_33, %c0_34] : memref<1x8x288xf32, #tpu.memory_space<vmem>>, vector<1x8x288xf32>
    %52 = vector.shape_cast %51 : vector<1x8x288xf32> to vector<8x288xf32>
    %53 = vector.shape_cast %50 : vector<8x288xf32> to vector<1x8x288xf32>
    tpu.vector_store %arg4[%c0_32, %c0_33, %c0_34], %53 {strides = array<i32>} : memref<1x8x288xf32, #tpu.memory_space<vmem>>, vector<1x8x288xf32>,
    %cst_35 = arith.constant dense<0.000000e+00> : vector<8xf32>
    %54 = vector.multi_reduction <add>, %50, %cst_35 [1] : vector<8x288xf32> to vector<8xf32>
    %55 = vector.shape_cast %54 : vector<8xf32> to vector<8x1xf32>
    %c0_36 = arith.constant 0 : index
    %c0_37 = arith.constant 0 : index
    %c0_38 = arith.constant 0 : index
    %56 = vector.load %arg5[%c0_36, %c0_37, %c0_38] : memref<1x8x2xf32, #tpu.memory_space<vmem>>, vector<1x8x1xf32>
    %57 = vector.shape_cast %56 : vector<1x8x1xf32> to vector<8x1xf32>
    %58 = vector.shape_cast %55 : vector<8x1xf32> to vector<1x8x1xf32>
    tpu.vector_store %arg5[%c0_36, %c0_37, %c0_38], %58 {strides = array<i32>} : memref<1x8x2xf32, #tpu.memory_space<vmem>>, vector<1x8x1xf32>,
    %59 = arith.mulf %50, %50 : vector<8x288xf32>
    %cst_39 = arith.constant dense<0.000000e+00> : vector<8xf32>
    %60 = vector.multi_reduction <add>, %59, %cst_39 [1] : vector<8x288xf32> to vector<8xf32>
    %61 = vector.shape_cast %60 : vector<8xf32> to vector<8x1xf32>
    %c0_40 = arith.constant 0 : index
    %c0_41 = arith.constant 0 : index
    %c1_42 = arith.constant 1 : index
    %62 = vector.load %arg5[%c0_40, %c0_41, %c1_42] : memref<1x8x2xf32, #tpu.memory_space<vmem>>, vector<1x8x1xf32>
    %63 = vector.shape_cast %62 : vector<1x8x1xf32> to vector<8x1xf32>
    %64 = vector.shape_cast %61 : vector<8x1xf32> to vector<1x8x1xf32>
    tpu.vector_store %arg5[%c0_40, %c0_41, %c1_42], %64 {strides = array<i32>} : memref<1x8x2xf32, #tpu.memory_space<vmem>>, vector<1x8x1xf32>,
    return
  }
  func.func @transform_0(%arg0: i32) -> (i32, i32, i32) {
    %c0_i32 = arith.constant 0 : i32
    %c0_i32_0 = arith.constant 0 : i32
    %c0_i32_1 = arith.constant 0 : i32
    return %arg0, %c0_i32, %c0_i32_0 : i32, i32, i32
  }
  func.func @transform_1(%arg0: i32) -> (i32, i32, i32) {
    %c0_i32 = arith.constant 0 : i32
    %c0_i32_0 = arith.constant 0 : i32
    %c0_i32_1 = arith.constant 0 : i32
    %c0_i32_2 = arith.constant 0 : i32
    return %c0_i32, %c0_i32_0, %c0_i32_1 : i32, i32, i32
  }
  func.func @transform_2(%arg0: i32) -> (i32, i32) {
    %c0_i32 = arith.constant 0 : i32
    %c0_i32_0 = arith.constant 0 : i32
    %c0_i32_1 = arith.constant 0 : i32
    return %c0_i32, %c0_i32_0 : i32, i32
  }
  func.func @transform_3(%arg0: i32) -> (i32, i32, i32) {
    %c0_i32 = arith.constant 0 : i32
    %c0_i32_0 = arith.constant 0 : i32
    %c0_i32_1 = arith.constant 0 : i32
    return %arg0, %c0_i32, %c0_i32_0 : i32, i32, i32
  }
  func.func @transform_4(%arg0: i32) -> (i32, i32, i32) {
    %c0_i32 = arith.constant 0 : i32
    %c0_i32_0 = arith.constant 0 : i32
    %c0_i32_1 = arith.constant 0 : i32
    return %arg0, %c0_i32, %c0_i32_0 : i32, i32, i32
  }
}

module attributes {stable_mosaic.version = 11 : i64} {
  func.func @kernel(%arg0: i32, %arg1: memref<1x8x360xf32, #tpu.memory_space<vmem>>, %arg2: memref<9x8x8xf32, #tpu.memory_space<vmem>>, %arg3: memref<1x288xf32, #tpu.memory_space<vmem>>, %arg4: memref<1x360xf32, #tpu.memory_space<vmem>>, %arg5: memref<8x1xf32, #tpu.memory_space<vmem>>, %arg6: memref<8x1xf32, #tpu.memory_space<vmem>>, %arg7: memref<1x8x288xf32, #tpu.memory_space<vmem>>, %arg8: memref<1x8x2xf32, #tpu.memory_space<vmem>>) attributes {dimension_semantics = [#tpu.dimension_semantics<parallel>], iteration_bounds = array<i64: 2>, scalar_prefetch = 0 : i64, scratch_operands = 0 : i64, tpu.core_type = #tpu.core_type<tc>, window_params = [{transform_indices = @transform_0, window_bounds = array<i64: 1, 8, 360>}, {pipeline_mode = #tpu.pipeline_mode<synchronous>, transform_indices = @transform_1, window_bounds = array<i64: 9, 8, 8>}, {pipeline_mode = #tpu.pipeline_mode<synchronous>, transform_indices = @transform_2, window_bounds = array<i64: 1, 288>}, {pipeline_mode = #tpu.pipeline_mode<synchronous>, transform_indices = @transform_3, window_bounds = array<i64: 1, 360>}, {pipeline_mode = #tpu.pipeline_mode<synchronous>, transform_indices = @transform_4, window_bounds = array<i64: 8, 1>}, {pipeline_mode = #tpu.pipeline_mode<synchronous>, transform_indices = @transform_5, window_bounds = array<i64: 8, 1>}, {transform_indices = @transform_6, window_bounds = array<i64: 1, 8, 288>}, {transform_indices = @transform_7, window_bounds = array<i64: 1, 8, 2>}]} {
    %c0 = arith.constant 0 : index
    %c0_0 = arith.constant 0 : index
    %c0_1 = arith.constant 0 : index
    %0 = vector.load %arg1[%c0, %c0_0, %c0_1] : memref<1x8x360xf32, #tpu.memory_space<vmem>>, vector<1x8x360xf32>
    %1 = vector.shape_cast %0 : vector<1x8x360xf32> to vector<8x360xf32>
    %c0_2 = arith.constant 0 : index
    %c0_3 = arith.constant 0 : index
    %2 = vector.load %arg5[%c0_2, %c0_3] : memref<8x1xf32, #tpu.memory_space<vmem>>, vector<8x1xf32>
    %3 = vector.broadcast %2 : vector<8x1xf32> to vector<8x360xf32>
    %4 = arith.mulf %1, %3 : vector<8x360xf32>
    %c0_4 = arith.constant 0 : index
    %c0_5 = arith.constant 0 : index
    %5 = vector.load %arg6[%c0_4, %c0_5] : memref<8x1xf32, #tpu.memory_space<vmem>>, vector<8x1xf32>
    %6 = vector.broadcast %5 : vector<8x1xf32> to vector<8x360xf32>
    %7 = arith.addf %4, %6 : vector<8x360xf32>
    %cst = arith.constant 0.000000e+00 : f32
    %8 = vector.broadcast %cst : f32 to vector<8x360xf32>
    %9 = arith.maximumf %7, %8 : vector<8x360xf32>
    %c0_6 = arith.constant 0 : index
    %c0_7 = arith.constant 0 : index
    %10 = vector.load %arg4[%c0_6, %c0_7] : memref<1x360xf32, #tpu.memory_space<vmem>>, vector<1x360xf32>
    %11 = vector.broadcast %10 : vector<1x360xf32> to vector<8x360xf32>
    %12 = arith.mulf %9, %11 : vector<8x360xf32>
    %cst_8 = arith.constant 0.000000e+00 : f32
    %13 = vector.broadcast %cst_8 : f32 to vector<8x288xf32>
    %c0_9 = arith.constant 0 : index
    %c0_10 = arith.constant 0 : index
    %c0_11 = arith.constant 0 : index
    %14 = vector.load %arg2[%c0_9, %c0_10, %c0_11] : memref<9x8x8xf32, #tpu.memory_space<vmem>>, vector<1x8x8xf32>
    %15 = vector.shape_cast %14 : vector<1x8x8xf32> to vector<8x8xf32>
    %16 = vector.extract_strided_slice %12 {offsets = [0, 17], sizes = [8, 288], strides = [1, 1]} : vector<8x360xf32> to vector<8x288xf32>
    %cst_12 = arith.constant dense<0.000000e+00> : vector<8x288xf32>
    %17 = tpu.matmul %15, %16, %cst_12 {dimension_numbers = #tpu.dot_dimension_numbers<[1], [0], [0], [1], [0, 0, 1, 1], [], []>} : vector<8x8xf32>, vector<8x288xf32>, vector<8x288xf32> -> vector<8x288xf32>
    %18 = arith.addf %13, %17 : vector<8x288xf32>
    %c1 = arith.constant 1 : index
    %c0_13 = arith.constant 0 : index
    %c0_14 = arith.constant 0 : index
    %19 = vector.load %arg2[%c1, %c0_13, %c0_14] : memref<9x8x8xf32, #tpu.memory_space<vmem>>, vector<1x8x8xf32>
    %20 = vector.shape_cast %19 : vector<1x8x8xf32> to vector<8x8xf32>
    %21 = vector.extract_strided_slice %12 {offsets = [0, 18], sizes = [8, 288], strides = [1, 1]} : vector<8x360xf32> to vector<8x288xf32>
    %cst_15 = arith.constant dense<0.000000e+00> : vector<8x288xf32>
    %22 = tpu.matmul %20, %21, %cst_15 {dimension_numbers = #tpu.dot_dimension_numbers<[1], [0], [0], [1], [0, 0, 1, 1], [], []>} : vector<8x8xf32>, vector<8x288xf32>, vector<8x288xf32> -> vector<8x288xf32>
    %23 = arith.addf %18, %22 : vector<8x288xf32>
    %c2 = arith.constant 2 : index
    %c0_16 = arith.constant 0 : index
    %c0_17 = arith.constant 0 : index
    %24 = vector.load %arg2[%c2, %c0_16, %c0_17] : memref<9x8x8xf32, #tpu.memory_space<vmem>>, vector<1x8x8xf32>
    %25 = vector.shape_cast %24 : vector<1x8x8xf32> to vector<8x8xf32>
    %26 = vector.extract_strided_slice %12 {offsets = [0, 19], sizes = [8, 288], strides = [1, 1]} : vector<8x360xf32> to vector<8x288xf32>
    %cst_18 = arith.constant dense<0.000000e+00> : vector<8x288xf32>
    %27 = tpu.matmul %25, %26, %cst_18 {dimension_numbers = #tpu.dot_dimension_numbers<[1], [0], [0], [1], [0, 0, 1, 1], [], []>} : vector<8x8xf32>, vector<8x288xf32>, vector<8x288xf32> -> vector<8x288xf32>
    %28 = arith.addf %23, %27 : vector<8x288xf32>
    %c3 = arith.constant 3 : index
    %c0_19 = arith.constant 0 : index
    %c0_20 = arith.constant 0 : index
    %29 = vector.load %arg2[%c3, %c0_19, %c0_20] : memref<9x8x8xf32, #tpu.memory_space<vmem>>, vector<1x8x8xf32>
    %30 = vector.shape_cast %29 : vector<1x8x8xf32> to vector<8x8xf32>
    %31 = vector.extract_strided_slice %12 {offsets = [0, 35], sizes = [8, 288], strides = [1, 1]} : vector<8x360xf32> to vector<8x288xf32>
    %cst_21 = arith.constant dense<0.000000e+00> : vector<8x288xf32>
    %32 = tpu.matmul %30, %31, %cst_21 {dimension_numbers = #tpu.dot_dimension_numbers<[1], [0], [0], [1], [0, 0, 1, 1], [], []>} : vector<8x8xf32>, vector<8x288xf32>, vector<8x288xf32> -> vector<8x288xf32>
    %33 = arith.addf %28, %32 : vector<8x288xf32>
    %c4 = arith.constant 4 : index
    %c0_22 = arith.constant 0 : index
    %c0_23 = arith.constant 0 : index
    %34 = vector.load %arg2[%c4, %c0_22, %c0_23] : memref<9x8x8xf32, #tpu.memory_space<vmem>>, vector<1x8x8xf32>
    %35 = vector.shape_cast %34 : vector<1x8x8xf32> to vector<8x8xf32>
    %36 = vector.extract_strided_slice %12 {offsets = [0, 36], sizes = [8, 288], strides = [1, 1]} : vector<8x360xf32> to vector<8x288xf32>
    %cst_24 = arith.constant dense<0.000000e+00> : vector<8x288xf32>
    %37 = tpu.matmul %35, %36, %cst_24 {dimension_numbers = #tpu.dot_dimension_numbers<[1], [0], [0], [1], [0, 0, 1, 1], [], []>} : vector<8x8xf32>, vector<8x288xf32>, vector<8x288xf32> -> vector<8x288xf32>
    %38 = arith.addf %33, %37 : vector<8x288xf32>
    %c5 = arith.constant 5 : index
    %c0_25 = arith.constant 0 : index
    %c0_26 = arith.constant 0 : index
    %39 = vector.load %arg2[%c5, %c0_25, %c0_26] : memref<9x8x8xf32, #tpu.memory_space<vmem>>, vector<1x8x8xf32>
    %40 = vector.shape_cast %39 : vector<1x8x8xf32> to vector<8x8xf32>
    %41 = vector.extract_strided_slice %12 {offsets = [0, 37], sizes = [8, 288], strides = [1, 1]} : vector<8x360xf32> to vector<8x288xf32>
    %cst_27 = arith.constant dense<0.000000e+00> : vector<8x288xf32>
    %42 = tpu.matmul %40, %41, %cst_27 {dimension_numbers = #tpu.dot_dimension_numbers<[1], [0], [0], [1], [0, 0, 1, 1], [], []>} : vector<8x8xf32>, vector<8x288xf32>, vector<8x288xf32> -> vector<8x288xf32>
    %43 = arith.addf %38, %42 : vector<8x288xf32>
    %c6 = arith.constant 6 : index
    %c0_28 = arith.constant 0 : index
    %c0_29 = arith.constant 0 : index
    %44 = vector.load %arg2[%c6, %c0_28, %c0_29] : memref<9x8x8xf32, #tpu.memory_space<vmem>>, vector<1x8x8xf32>
    %45 = vector.shape_cast %44 : vector<1x8x8xf32> to vector<8x8xf32>
    %46 = vector.extract_strided_slice %12 {offsets = [0, 53], sizes = [8, 288], strides = [1, 1]} : vector<8x360xf32> to vector<8x288xf32>
    %cst_30 = arith.constant dense<0.000000e+00> : vector<8x288xf32>
    %47 = tpu.matmul %45, %46, %cst_30 {dimension_numbers = #tpu.dot_dimension_numbers<[1], [0], [0], [1], [0, 0, 1, 1], [], []>} : vector<8x8xf32>, vector<8x288xf32>, vector<8x288xf32> -> vector<8x288xf32>
    %48 = arith.addf %43, %47 : vector<8x288xf32>
    %c7 = arith.constant 7 : index
    %c0_31 = arith.constant 0 : index
    %c0_32 = arith.constant 0 : index
    %49 = vector.load %arg2[%c7, %c0_31, %c0_32] : memref<9x8x8xf32, #tpu.memory_space<vmem>>, vector<1x8x8xf32>
    %50 = vector.shape_cast %49 : vector<1x8x8xf32> to vector<8x8xf32>
    %51 = vector.extract_strided_slice %12 {offsets = [0, 54], sizes = [8, 288], strides = [1, 1]} : vector<8x360xf32> to vector<8x288xf32>
    %cst_33 = arith.constant dense<0.000000e+00> : vector<8x288xf32>
    %52 = tpu.matmul %50, %51, %cst_33 {dimension_numbers = #tpu.dot_dimension_numbers<[1], [0], [0], [1], [0, 0, 1, 1], [], []>} : vector<8x8xf32>, vector<8x288xf32>, vector<8x288xf32> -> vector<8x288xf32>
    %53 = arith.addf %48, %52 : vector<8x288xf32>
    %c8 = arith.constant 8 : index
    %c0_34 = arith.constant 0 : index
    %c0_35 = arith.constant 0 : index
    %54 = vector.load %arg2[%c8, %c0_34, %c0_35] : memref<9x8x8xf32, #tpu.memory_space<vmem>>, vector<1x8x8xf32>
    %55 = vector.shape_cast %54 : vector<1x8x8xf32> to vector<8x8xf32>
    %56 = vector.extract_strided_slice %12 {offsets = [0, 55], sizes = [8, 288], strides = [1, 1]} : vector<8x360xf32> to vector<8x288xf32>
    %cst_36 = arith.constant dense<0.000000e+00> : vector<8x288xf32>
    %57 = tpu.matmul %55, %56, %cst_36 {dimension_numbers = #tpu.dot_dimension_numbers<[1], [0], [0], [1], [0, 0, 1, 1], [], []>} : vector<8x8xf32>, vector<8x288xf32>, vector<8x288xf32> -> vector<8x288xf32>
    %58 = arith.addf %53, %57 : vector<8x288xf32>
    %c0_37 = arith.constant 0 : index
    %c0_38 = arith.constant 0 : index
    %59 = vector.load %arg3[%c0_37, %c0_38] : memref<1x288xf32, #tpu.memory_space<vmem>>, vector<1x288xf32>
    %60 = vector.broadcast %59 : vector<1x288xf32> to vector<8x288xf32>
    %61 = arith.mulf %58, %60 : vector<8x288xf32>
    %c0_39 = arith.constant 0 : index
    %c0_40 = arith.constant 0 : index
    %c0_41 = arith.constant 0 : index
    %62 = vector.load %arg7[%c0_39, %c0_40, %c0_41] : memref<1x8x288xf32, #tpu.memory_space<vmem>>, vector<1x8x288xf32>
    %63 = vector.shape_cast %62 : vector<1x8x288xf32> to vector<8x288xf32>
    %64 = vector.shape_cast %61 : vector<8x288xf32> to vector<1x8x288xf32>
    tpu.vector_store %arg7[%c0_39, %c0_40, %c0_41], %64 {strides = array<i32>} : memref<1x8x288xf32, #tpu.memory_space<vmem>>, vector<1x8x288xf32>,
    %cst_42 = arith.constant dense<0.000000e+00> : vector<8xf32>
    %65 = vector.multi_reduction <add>, %61, %cst_42 [1] : vector<8x288xf32> to vector<8xf32>
    %66 = vector.shape_cast %65 : vector<8xf32> to vector<8x1xf32>
    %c0_43 = arith.constant 0 : index
    %c0_44 = arith.constant 0 : index
    %c0_45 = arith.constant 0 : index
    %67 = vector.load %arg8[%c0_43, %c0_44, %c0_45] : memref<1x8x2xf32, #tpu.memory_space<vmem>>, vector<1x8x1xf32>
    %68 = vector.shape_cast %67 : vector<1x8x1xf32> to vector<8x1xf32>
    %69 = vector.shape_cast %66 : vector<8x1xf32> to vector<1x8x1xf32>
    tpu.vector_store %arg8[%c0_43, %c0_44, %c0_45], %69 {strides = array<i32>} : memref<1x8x2xf32, #tpu.memory_space<vmem>>, vector<1x8x1xf32>,
    %70 = arith.mulf %61, %61 : vector<8x288xf32>
    %cst_46 = arith.constant dense<0.000000e+00> : vector<8xf32>
    %71 = vector.multi_reduction <add>, %70, %cst_46 [1] : vector<8x288xf32> to vector<8xf32>
    %72 = vector.shape_cast %71 : vector<8xf32> to vector<8x1xf32>
    %c0_47 = arith.constant 0 : index
    %c0_48 = arith.constant 0 : index
    %c1_49 = arith.constant 1 : index
    %73 = vector.load %arg8[%c0_47, %c0_48, %c1_49] : memref<1x8x2xf32, #tpu.memory_space<vmem>>, vector<1x8x1xf32>
    %74 = vector.shape_cast %73 : vector<1x8x1xf32> to vector<8x1xf32>
    %75 = vector.shape_cast %72 : vector<8x1xf32> to vector<1x8x1xf32>
    tpu.vector_store %arg8[%c0_47, %c0_48, %c1_49], %75 {strides = array<i32>} : memref<1x8x2xf32, #tpu.memory_space<vmem>>, vector<1x8x1xf32>,
    return
  }
  func.func @transform_0(%arg0: i32) -> (i32, i32, i32) {
    %c0_i32 = arith.constant 0 : i32
    %c0_i32_0 = arith.constant 0 : i32
    %c0_i32_1 = arith.constant 0 : i32
    return %arg0, %c0_i32, %c0_i32_0 : i32, i32, i32
  }
  func.func @transform_1(%arg0: i32) -> (i32, i32, i32) {
    %c0_i32 = arith.constant 0 : i32
    %c0_i32_0 = arith.constant 0 : i32
    %c0_i32_1 = arith.constant 0 : i32
    %c0_i32_2 = arith.constant 0 : i32
    return %c0_i32, %c0_i32_0, %c0_i32_1 : i32, i32, i32
  }
  func.func @transform_2(%arg0: i32) -> (i32, i32) {
    %c0_i32 = arith.constant 0 : i32
    %c0_i32_0 = arith.constant 0 : i32
    %c0_i32_1 = arith.constant 0 : i32
    return %c0_i32, %c0_i32_0 : i32, i32
  }
  func.func @transform_3(%arg0: i32) -> (i32, i32) {
    %c0_i32 = arith.constant 0 : i32
    %c0_i32_0 = arith.constant 0 : i32
    %c0_i32_1 = arith.constant 0 : i32
    return %c0_i32, %c0_i32_0 : i32, i32
  }
  func.func @transform_4(%arg0: i32) -> (i32, i32) {
    %c0_i32 = arith.constant 0 : i32
    %c0_i32_0 = arith.constant 0 : i32
    %c0_i32_1 = arith.constant 0 : i32
    return %c0_i32, %c0_i32_0 : i32, i32
  }
  func.func @transform_5(%arg0: i32) -> (i32, i32) {
    %c0_i32 = arith.constant 0 : i32
    %c0_i32_0 = arith.constant 0 : i32
    %c0_i32_1 = arith.constant 0 : i32
    return %c0_i32, %c0_i32_0 : i32, i32
  }
  func.func @transform_6(%arg0: i32) -> (i32, i32, i32) {
    %c0_i32 = arith.constant 0 : i32
    %c0_i32_0 = arith.constant 0 : i32
    %c0_i32_1 = arith.constant 0 : i32
    return %arg0, %c0_i32, %c0_i32_0 : i32, i32, i32
  }
  func.func @transform_7(%arg0: i32) -> (i32, i32, i32) {
    %c0_i32 = arith.constant 0 : i32
    %c0_i32_0 = arith.constant 0 : i32
    %c0_i32_1 = arith.constant 0 : i32
    return %arg0, %c0_i32, %c0_i32_0 : i32, i32, i32
  }
}

module attributes {stable_mosaic.version = 11 : i64} {
  func.func @kernel(%arg0: i32, %arg1: memref<1x8x288xf32, #tpu.memory_space<vmem>>, %arg2: memref<8x1xf32, #tpu.memory_space<vmem>>, %arg3: memref<8x1xf32, #tpu.memory_space<vmem>>, %arg4: memref<1x8x288xf32, #tpu.memory_space<vmem>>) attributes {dimension_semantics = [#tpu.dimension_semantics<parallel>], iteration_bounds = array<i64: 2>, scalar_prefetch = 0 : i64, scratch_operands = 0 : i64, tpu.core_type = #tpu.core_type<tc>, window_params = [{transform_indices = @transform_0, window_bounds = array<i64: 1, 8, 288>}, {pipeline_mode = #tpu.pipeline_mode<synchronous>, transform_indices = @transform_1, window_bounds = array<i64: 8, 1>}, {pipeline_mode = #tpu.pipeline_mode<synchronous>, transform_indices = @transform_2, window_bounds = array<i64: 8, 1>}, {transform_indices = @transform_3, window_bounds = array<i64: 1, 8, 288>}]} {
    %c0 = arith.constant 0 : index
    %c0_0 = arith.constant 0 : index
    %c0_1 = arith.constant 0 : index
    %0 = vector.load %arg1[%c0, %c0_0, %c0_1] : memref<1x8x288xf32, #tpu.memory_space<vmem>>, vector<1x8x288xf32>
    %1 = vector.shape_cast %0 : vector<1x8x288xf32> to vector<8x288xf32>
    %c0_2 = arith.constant 0 : index
    %c0_3 = arith.constant 0 : index
    %2 = vector.load %arg2[%c0_2, %c0_3] : memref<8x1xf32, #tpu.memory_space<vmem>>, vector<8x1xf32>
    %3 = vector.broadcast %2 : vector<8x1xf32> to vector<8x288xf32>
    %4 = arith.mulf %1, %3 : vector<8x288xf32>
    %c0_4 = arith.constant 0 : index
    %c0_5 = arith.constant 0 : index
    %5 = vector.load %arg3[%c0_4, %c0_5] : memref<8x1xf32, #tpu.memory_space<vmem>>, vector<8x1xf32>
    %6 = vector.broadcast %5 : vector<8x1xf32> to vector<8x288xf32>
    %7 = arith.addf %4, %6 : vector<8x288xf32>
    %cst = arith.constant 0.000000e+00 : f32
    %8 = vector.broadcast %cst : f32 to vector<8x288xf32>
    %9 = arith.maximumf %7, %8 : vector<8x288xf32>
    %c0_6 = arith.constant 0 : index
    %c0_7 = arith.constant 0 : index
    %c0_8 = arith.constant 0 : index
    %10 = vector.load %arg4[%c0_6, %c0_7, %c0_8] : memref<1x8x288xf32, #tpu.memory_space<vmem>>, vector<1x8x288xf32>
    %11 = vector.shape_cast %10 : vector<1x8x288xf32> to vector<8x288xf32>
    %12 = vector.shape_cast %9 : vector<8x288xf32> to vector<1x8x288xf32>
    tpu.vector_store %arg4[%c0_6, %c0_7, %c0_8], %12 {strides = array<i32>} : memref<1x8x288xf32, #tpu.memory_space<vmem>>, vector<1x8x288xf32>,
    return
  }
  func.func @transform_0(%arg0: i32) -> (i32, i32, i32) {
    %c0_i32 = arith.constant 0 : i32
    %c0_i32_0 = arith.constant 0 : i32
    %c0_i32_1 = arith.constant 0 : i32
    return %arg0, %c0_i32, %c0_i32_0 : i32, i32, i32
  }
  func.func @transform_1(%arg0: i32) -> (i32, i32) {
    %c0_i32 = arith.constant 0 : i32
    %c0_i32_0 = arith.constant 0 : i32
    %c0_i32_1 = arith.constant 0 : i32
    return %c0_i32, %c0_i32_0 : i32, i32
  }
  func.func @transform_2(%arg0: i32) -> (i32, i32) {
    %c0_i32 = arith.constant 0 : i32
    %c0_i32_0 = arith.constant 0 : i32
    %c0_i32_1 = arith.constant 0 : i32
    return %c0_i32, %c0_i32_0 : i32, i32
  }
  func.func @transform_3(%arg0: i32) -> (i32, i32, i32) {
    %c0_i32 = arith.constant 0 : i32
    %c0_i32_0 = arith.constant 0 : i32
    %c0_i32_1 = arith.constant 0 : i32
    return %arg0, %c0_i32, %c0_i32_0 : i32, i32, i32
  }
}

</mosaic_0001>

<llo_original>
// kernel: tile.8
$region0: #{tile.8}
  #allocation0 [shape = 's32[1]{0}', space=sflag, size = 0x4, scoped, tag = 'scoped memory for tile.8']
  %s0 = inlined_call_operand.vmem [shape: f32[18], index: 0, kind: input, shape index: {}]
  %s1 = inlined_call_operand.vmem [shape: f32[16,18], index: 1, kind: output, shape index: {}]
  // Predicated region
  $region2: #{tile.8} parent=0 // pred_check
    _
  $region3: #{tile.8} parent=0 // pred_check_branch
    %3 = sbr.rel (0) target = $region5
  $region4: #{tile.8} parent=0 // pred_region
    _
  $region5: #{tile.8} parent=0 // pred_fallthru
    _
  %v4 = vld [vmem:[%s0] ss:$0 sm:$0xff]
  %5 = vst [vmem:[%s1] sm:$0xff] %v4
  %s6 = scalar_lea.vmem %s1, 8
  %7 = vst [vmem:[%s6] sm:$0xff] %v4

// kernel: tile.9
$region0: #{tile.9}
  %s0 = inlined_call_operand.vmem [shape: f32[16,18], index: 0, kind: input, shape index: {}]
  %s1 = inlined_call_operand.vmem [shape: f32[1,288], index: 1, kind: output, shape index: {}]
  $region1: #{tile.9} parent=0
    #allocation0 [shape = 'u8[12288]{0}', space=vmem, size = 0x3000, scoped, tag = 'scoped mem for output reshape']
    %v2 = vld [vmem:[%s0] sm:$0x1]
    %vm3 = vcmask 146432
    %4 = vst.msk [vmem:[#allocation0] sm:$0x1] %vm3, %v2
    %s5 = scalar_lea.vmem %s0, 7
    %v6 = vld [vmem:[%s5] sm:$0x1]
    %s7 = scalar_lea.vmem %s0, 7
    %v8 = vld [vmem:[%s7] sm:$0x1]
    %vm9 = vcmask 15360
    %v10 = vsel %vm9, %v8, %v6
    %11 = vrot.lane.b32.xlu0 %v10, 126
    %v12 = vpop.permute.xlu0 %11
    %vm13 = vcmask 130048
    %s14 = scalar_lea.vmem [#allocation0], 8
    %15 = vst.msk [vmem:[%s14] sm:$0x1] %vm13, %v12
    %vm16 = vcmask 1048560
    %17 = vst.msk [vmem:[#allocation0] sm:$0x1] %vm16, %v12
    %s18 = scalar_lea.vmem %s0, 14
    %v19 = vld [vmem:[%s18] sm:$0x1]
    %s20 = scalar_lea.vmem %s0, 14
    %v21 = vld [vmem:[%s20] sm:$0x1]
    %vm22 = vcmask 31744
    %v23 = vsel %vm22, %v21, %v19
    %24 = vrot.lane.b32.xlu0 %v23, 124
    %v25 = vpop.permute.xlu0 %24
    %vm26 = vcmask 113664
    %s27 = scalar_lea.vmem [#allocation0], 16
    %28 = vst.msk [vmem:[%s27] sm:$0x1] %vm26, %v25
    %vm29 = vcmask 1048544
    %s30 = scalar_lea.vmem [#allocation0], 8
    %31 = vst.msk [vmem:[%s30] sm:$0x1] %vm29, %v25
    %s32 = scalar_lea.vmem %s0, 6
    %v33 = vld [vmem:[%s32] sm:$0x1]
    %34 = vrot.lane.b32.xlu0 %v33, 108
    %v35 = vpop.permute.xlu0 %34
    %vm36 = vcmask 1032032
    %37 = vst.msk [vmem:[#allocation0] sm:$0x1] %vm36, %v35
    %s38 = scalar_lea.vmem %s0, 13
    %v39 = vld [vmem:[%s38] sm:$0x1]
    %40 = vrot.lane.b32.xlu0 %v39, 106
    %v41 = vpop.permute.xlu0 %40
    %vm42 = vcmask 1015632
    %s43 = scalar_lea.vmem [#allocation0], 8
    %44 = vst.msk [vmem:[%s43] sm:$0x1] %vm42, %v41
    %s45 = scalar_lea.vmem %s0, 5
    %v46 = vld [vmem:[%s45] sm:$0x1]
    %47 = vrot.lane.b32.xlu0 %v46, 90
    %v48 = vpop.permute.xlu0 %47
    %vm49 = vcmask 884432
    %50 = vst.msk [vmem:[#allocation0] sm:$0x1] %vm49, %v48
    %s51 = scalar_lea.vmem %s0, 12
    %v52 = vld [vmem:[%s51] sm:$0x1]
    %53 = vrot.lane.b32.xlu0 %v52, 88
    %v54 = vpop.permute.xlu0 %53
    %vm55 = vcmask 868032
    %s56 = scalar_lea.vmem [#allocation0], 8
    %57 = vst.msk [vmem:[%s56] sm:$0x1] %vm55, %v54
    %s58 = scalar_lea.vmem %s0, 4
    %v59 = vld [vmem:[%s58] sm:$0x1]
    %60 = vrot.lane.b32.xlu0 %v59, 72
    %v61 = vpop.permute.xlu0 %60
    %vm62 = vcmask 736832
    %63 = vst.msk [vmem:[#allocation0] sm:$0x1] %vm62, %v61
    %s64 = scalar_lea.vmem %s0, 11
    %v65 = vld [vmem:[%s64] sm:$0x1]
    %66 = vrot.lane.b32.xlu0 %v65, 70
    %v67 = vpop.permute.xlu0 %66
    %vm68 = vcmask 720432
    %s69 = scalar_lea.vmem [#allocation0], 8
    %70 = vst.msk [vmem:[%s69] sm:$0x1] %vm68, %v67
    %s71 = scalar_lea.vmem %s0, 3
    %v72 = vld [vmem:[%s71] sm:$0x1]
    %73 = vrot.lane.b32.xlu0 %v72, 54
    %v74 = vpop.permute.xlu0 %73
    %vm75 = vcmask 589232
    %76 = vst.msk [vmem:[#allocation0] sm:$0x1] %vm75, %v74
    %s77 = scalar_lea.vmem %s0, 10
    %v78 = vld [vmem:[%s77] sm:$0x1]
    %79 = vrot.lane.b32.xlu0 %v78, 52
    %v80 = vpop.permute.xlu0 %79
    %vm81 = vcmask 572832
    %s82 = scalar_lea.vmem [#allocation0], 8
    %83 = vst.msk [vmem:[%s82] sm:$0x1] %vm81, %v80
    %s84 = scalar_lea.vmem %s0, 2
    %v85 = vld [vmem:[%s84] sm:$0x1]
    %86 = vrot.lane.b32.xlu0 %v85, 36
    %v87 = vpop.permute.xlu0 %86
    %vm88 = vcmask 441632
    %89 = vst.msk [vmem:[#allocation0] sm:$0x1] %vm88, %v87
    %s90 = scalar_lea.vmem %s0, 9
    %v91 = vld [vmem:[%s90] sm:$0x1]
    %92 = vrot.lane.b32.xlu0 %v91, 34
    %v93 = vpop.permute.xlu0 %92
    %vm94 = vcmask 425232
    %s95 = scalar_lea.vmem [#allocation0], 8
    %96 = vst.msk [vmem:[%s95] sm:$0x1] %vm94, %v93
    %s97 = scalar_lea.vmem %s0, 1
    %v98 = vld [vmem:[%s97] sm:$0x1]
    %99 = vrot.lane.b32.xlu0 %v98, 18
    %v100 = vpop.permute.xlu0 %99
    %vm101 = vcmask 294032
    %102 = vst.msk [vmem:[#allocation0] sm:$0x1] %vm101, %v100
    %s103 = scalar_lea.vmem %s0, 8
    %v104 = vld [vmem:[%s103] sm:$0x1]
    %105 = vrot.lane.b32.xlu0 %v104, 16
    %v106 = vpop.permute.xlu0 %105
    %vm107 = vcmask 277632
    %s108 = scalar_lea.vmem [#allocation0], 8
    %109 = vst.msk [vmem:[%s108] sm:$0x1] %vm107, %v106
    %s110 = scalar_lea.vmem %s0, 15
    %v111 = vld [vmem:[%s110] sm:$0x1]
    %112 = vrot.lane.b32.xlu0 %v111, 14
    %v113 = vpop.permute.xlu0 %112
    %vm114 = vcmask 261232
    %s115 = scalar_lea.vmem [#allocation0], 16
    %116 = vst.msk [vmem:[%s115] sm:$0x1] %vm114, %v113
    %s118 = sshllo.u32 0, 1
    %v120 = vld [vmem:[#allocation0] sm:%s118]
    %s121 = sshllo.u32 0, 1
    %122 = vst [vmem:[%s1] sm:%s121] %v120
    %s123 = scalar_lea.vmem [#allocation0], 8
    %v124 = vld [vmem:[%s123] sm:%s118]
    %s125 = sshllo.u32 0, 1
    %s126 = scalar_lea.vmem %s1, 1
    %127 = vst [vmem:[%s126] sm:%s125] %v124
    %s128 = scalar_lea.vmem [#allocation0], 16
    %v129 = vld [vmem:[%s128] sm:%s118]
    %s130 = sshllo.u32 0, 1
    %s131 = smul.addr 1, 2
    %s132 = scalar_lea.vmem %s1, %s131
    %133 = vst [vmem:[%s132] sm:%s130] %v129

// kernel: conv_block_forward.5
$region0: #{conv_block_forward.5}
  #allocation0 [shape = 'u32[]', space=smem, size = 0x4, offset = 0x4, fixed_abs, tag = 'smem constant byte address 0x4 - core index']
  #allocation1 [shape = 'u32[144,128]{1,0:T(1,128)}', space=vmem, size = 0x12000, scoped, tag = 'internal scratch']
  %s0 = inlined_call_operand.vmem [shape: f32[2,8,288], index: 0, kind: input, shape index: {}]
  %s1 = inlined_call_operand.vmem [shape: f32[8,1], index: 1, kind: input, shape index: {}]
  %s2 = inlined_call_operand.vmem [shape: f32[8,1], index: 2, kind: input, shape index: {}]
  %s3 = inlined_call_operand.vmem [shape: f32[2,8,288], index: 3, kind: output, shape index: {}]
  %s4 = sld [smem:[#allocation0]]
  $region45: #{conv_block_forward.5} parent=0
    _
  %s6 = ssub.s32 1, %s4
  %s7 = scalar_select 0, %s6, %s4
  loop: start=0, step=1, limit=4
  $region2: #{conv_block_forward.5} parent=0 // loop_pre_header
    _
  $region3: #{conv_block_forward.5} parent=0 // loop_header
    %s9 = sphi 0, %s13
    %p10 = scmp.ge.s32.totalorder %s9, 4
    %s19 = sphi 0, %s21
    %s22 = sphi 0, %s19
    %s23 = sphi 0, %s22
    %s39 = sphi 0, %s23
    %s43 = sphi 0, %s43
    %s45 = sphi 0, %s43
    %s46 = sphi 0, %s45
    %s60 = sphi 0, %s46
    %s64 = sphi 0, %s64
    %s66 = sphi 0, %s64
    %s67 = sphi 0, %s66
    %s81 = sphi 0, %s67
    %s87 = sphi 0, %s89
    %s90 = sphi 0, %s87
    %s91 = sphi 0, %s90
    %s107 = sphi 0, %s91
  $region4: #{conv_block_forward.5} parent=0 // loop_header_branch
    %12 = sbr.rel (%p10) target = $region8
  $region5: #{conv_block_forward.5} parent=0 // loop_body
    %s14 = ssub.s32 %s9, 1
    %s15 = ssub.s32 %s9, 2
    %s16 = sadd.s32 %s9, 1
    %s17 = ssub.s32 %s9, %s16
    %p18 = scmp.eq.s32.totalorder %s17, 0
    %s20 = sadd.s32 %s19, 1
    %s21 = scalar_select %p18, %s19, %s20
    %p24 = pneg %p18
    %p25 = scmp.eq.s32.totalorder %s9, 1
    %p26 = por %p24, %p25
    %p27 = scmp.ne.s32.totalorder %s19, %s22
    %p28 = scmp.eq.s32.totalorder %s9, 0
    %p29 = por %p27, %p28
    %p30 = scmp.ne.s32.totalorder %s19, %s22
    %p31 = scmp.eq.s32.totalorder %s14, 1
    %p32 = por %p30, %p31
    %p33 = scmp.ne.s32.totalorder %s22, %s23
    %p34 = scmp.eq.s32.totalorder %s14, 0
    %p35 = por %p33, %p34
    %p36 = scmp.ne.s32.totalorder %s22, %s23
    %p37 = scmp.eq.s32.totalorder %s15, 1
    %p38 = por %p36, %p37
    %p40 = scmp.ne.s32.totalorder %s23, %s39
    %p41 = scmp.eq.s32.totalorder %s15, 0
    %p42 = por %p40, %p41
    %s44 = sadd.s32 %s43, 1
    %p47 = scmp.eq.s32.totalorder %s9, 1
    %p48 = scmp.ne.s32.totalorder %s43, %s45
    %p49 = scmp.eq.s32.totalorder %s9, 0
    %p50 = por %p48, %p49
    %p51 = scmp.ne.s32.totalorder %s43, %s45
    %p52 = scmp.eq.s32.totalorder %s14, 1
    %p53 = por %p51, %p52
    %p54 = scmp.ne.s32.totalorder %s45, %s46
    %p55 = scmp.eq.s32.totalorder %s14, 0
    %p56 = por %p54, %p55
    %p57 = scmp.ne.s32.totalorder %s45, %s46
    %p58 = scmp.eq.s32.totalorder %s15, 1
    %p59 = por %p57, %p58
    %p61 = scmp.ne.s32.totalorder %s46, %s60
    %p62 = scmp.eq.s32.totalorder %s15, 0
    %p63 = por %p61, %p62
    %s65 = sadd.s32 %s64, 1
    %p68 = scmp.eq.s32.totalorder %s9, 1
    %p69 = scmp.ne.s32.totalorder %s64, %s66
    %p70 = scmp.eq.s32.totalorder %s9, 0
    %p71 = por %p69, %p70
    %p72 = scmp.ne.s32.totalorder %s64, %s66
    %p73 = scmp.eq.s32.totalorder %s14, 1
    %p74 = por %p72, %p73
    %p75 = scmp.ne.s32.totalorder %s66, %s67
    %p76 = scmp.eq.s32.totalorder %s14, 0
    %p77 = por %p75, %p76
    %p78 = scmp.ne.s32.totalorder %s66, %s67
    %p79 = scmp.eq.s32.totalorder %s15, 1
    %p80 = por %p78, %p79
    %p82 = scmp.ne.s32.totalorder %s67, %s81
    %p83 = scmp.eq.s32.totalorder %s15, 0
    %p84 = por %p82, %p83
    %s85 = ssub.s32 %s9, %s16
    %p86 = scmp.eq.s32.totalorder %s85, 0
    %s88 = sadd.s32 %s87, 1
    %s89 = scalar_select %p86, %s87, %s88
    %p92 = pneg %p86
    %p93 = scmp.eq.s32.totalorder %s9, 1
    %p94 = por %p92, %p93
    %p95 = scmp.ne.s32.totalorder %s87, %s90
    %p96 = scmp.eq.s32.totalorder %s9, 0
    %p97 = por %p95, %p96
    %p98 = scmp.ne.s32.totalorder %s87, %s90
    %p99 = scmp.eq.s32.totalorder %s14, 1
    %p100 = por %p98, %p99
    %p101 = scmp.ne.s32.totalorder %s90, %s91
    %p102 = scmp.eq.s32.totalorder %s14, 0
    %p103 = por %p101, %p102
    %p104 = scmp.ne.s32.totalorder %s90, %s91
    %p105 = scmp.eq.s32.totalorder %s15, 1
    %p106 = por %p104, %p105
    %p108 = scmp.ne.s32.totalorder %s91, %s107
    %p109 = scmp.eq.s32.totalorder %s15, 0
    %p110 = por %p108, %p109
    %p111 = scmp.le.s32.totalorder 1, %s9
    %p112 = scmp.lt.s32.totalorder %s9, 3
    %p113 = pnand %p111, %p112
    %p114 = pneg %p113
    // Predicated region
    $region9: #{conv_block_forward.5} parent=5 // pred_check
      _
    $region10: #{conv_block_forward.5} parent=5 // pred_check_branch
      %116 = sbr.rel (%p113) target = $region12
    $region11: #{conv_block_forward.5} parent=5 // pred_region
      %s117 = ssub.s32 %s9, 1
      // Predicated region
      $region13: #{conv_block_forward.5} parent=11 // pred_check
        %p118 = pneg %p56
      $region14: #{conv_block_forward.5} parent=11 // pred_check_branch
        %120 = sbr.rel (%p118) target = $region16
      $region15: #{conv_block_forward.5} parent=11 // pred_region
        _
      $region16: #{conv_block_forward.5} parent=11 // pred_fallthru
        _
      // Predicated region
      $region17: #{conv_block_forward.5} parent=11 // pred_check
        %p121 = pneg %p77
      $region18: #{conv_block_forward.5} parent=11 // pred_check_branch
        %123 = sbr.rel (%p121) target = $region20
      $region19: #{conv_block_forward.5} parent=11 // pred_region
        _
      $region20: #{conv_block_forward.5} parent=11 // pred_fallthru
        _
    $region12: #{conv_block_forward.5} parent=5 // pred_fallthru
      _
    %p124 = scmp.lt.s32.totalorder %s9, 2
    // Predicated region
    $region21: #{conv_block_forward.5} parent=5 // pred_check
      %p125 = pneg %p124
    $region22: #{conv_block_forward.5} parent=5 // pred_check_branch
      %127 = sbr.rel (%p125) target = $region24
    $region23: #{conv_block_forward.5} parent=5 // pred_region
      // Predicated region
      $region25: #{conv_block_forward.5} parent=23 // pred_check
        %p128 = pneg %p29
      $region26: #{conv_block_forward.5} parent=23 // pred_check_branch
        %130 = sbr.rel (%p128) target = $region28
      $region27: #{conv_block_forward.5} parent=23 // pred_region
        %p131 = scmp.lt.s32.totalorder %s9, 1
        %s132 = scalar_select %p131, %s9, 1
        %s133 = smul.addr %s132, 3
        %s134 = smul.addr %s133, 8
        %s135 = scalar_lea.vmem %s0, %s134
      $region28: #{conv_block_forward.5} parent=23 // pred_fallthru
        _
    $region24: #{conv_block_forward.5} parent=5 // pred_fallthru
      _
    %p136 = scmp.le.s32.totalorder 1, %s9
    %p137 = scmp.lt.s32.totalorder %s9, 3
    %p138 = pnand %p136, %p137
    %p139 = pneg %p138
    // Predicated region
    $region29: #{conv_block_forward.5} parent=5 // pred_check
      _
    $region30: #{conv_block_forward.5} parent=5 // pred_check_branch
      %141 = sbr.rel (%p138) target = $region32
    $region31: #{conv_block_forward.5} parent=5 // pred_region
      %s142 = ssub.s32 %s9, 1
      %p143 = scmp.lt.s32.totalorder %s14, 1
      %s144 = scalar_select %p143, %s14, 1
      %s145 = smul.addr %s144, 3
      %s146 = smul.addr %s145, 8
      %s147 = scalar_lea.vmem %s0, %s146
      %p148 = pneg %p35
      %p149 = pneg %p32
      %p150 = pneg %p56
      %p151 = pneg %p53
      %p152 = pneg %p77
      %p153 = pneg %p74
      %p154 = pneg %p103
      %p155 = pneg %p100
      %p156 = scmp.lt.s32.totalorder %s14, 1
      %s157 = scalar_select %p156, %s14, 1
      %s158 = smul.addr %s157, 3
      %s159 = smul.addr %s158, 8
      %s160 = scalar_lea.vmem %s3, %s159
      %p161 = scmp.lt.s32.totalorder %s14, 1
      %s162 = scalar_select %p161, %s14, 1
      %s163 = smul.addr %s162, 3
      %s164 = smul.addr %s163, 8
      %s165 = scalar_lea.vmem %s0, %s164
      %p166 = scmp.lt.s32.totalorder %s14, 1
      %s167 = scalar_select %p166, %s14, 1
      %s168 = smul.addr %s167, 3
      %s169 = smul.addr %s168, 8
      %s170 = scalar_lea.vmem %s3, %s169
      %v171 = vld [vmem:[%s165] sm:$0xff]
      %v172 = vld [vmem:[%s165 + $0x8] sm:$0xff]
      %v173 = vld [vmem:[%s165 + $0x10] sm:$0xff]
      %v174 = vld [vmem:[%s1] sm:$0xff]
      %176 = vset.pattern.permute.xlu0 0
      %177 = vperm.xlu0 %176, %v174
      %v178 = vpop.permute.xlu0 %177
      %v180 = vmul.f32 %v171, %v178
      %v181 = vmul.f32 %v172, %v178
      %v182 = vmul.f32 %v173, %v178
      %v183 = vld [vmem:[%s2] sm:$0xff]
      %185 = vset.pattern.permute.xlu0 0
      %186 = vperm.xlu0 %185, %v183
      %v187 = vpop.permute.xlu0 %186
      %v189 = vadd.f32 %v180, %v187
      %v190 = vadd.f32 %v181, %v187
      %v191 = vadd.f32 %v182, %v187
      %v192 = vmax.f32 %v189, 0.0
      %v193 = vmax.f32 %v190, 0.0
      %v194 = vmax.f32 %v191, 0.0
      %195 = vst [vmem:[%s170] sm:$0xff] %v192
      %196 = vst [vmem:[%s170 + $0x8] sm:$0xff] %v193
      %vm197 = vcmask 261120
      %198 = vst.msk [vmem:[%s170 + $0x10] sm:$0xff] %vm197, %v194
      %p199 = scmp.lt.s32.totalorder %s14, 1
      %s200 = scalar_select %p199, %s14, 1
      %s201 = smul.addr %s200, 3
      %s202 = smul.addr %s201, 8
      %s203 = scalar_lea.vmem %s3, %s202
      // Predicated region
      $region33: #{conv_block_forward.5} parent=31 // pred_check
        %p204 = pneg %p100
      $region34: #{conv_block_forward.5} parent=31 // pred_check_branch
        %206 = sbr.rel (%p204) target = $region36
      $region35: #{conv_block_forward.5} parent=31 // pred_region
        _
      $region36: #{conv_block_forward.5} parent=31 // pred_fallthru
        _
    $region32: #{conv_block_forward.5} parent=5 // pred_fallthru
      _
    %p207 = scmp.le.s32.totalorder 2, %s9
    // Predicated region
    $region37: #{conv_block_forward.5} parent=5 // pred_check
      %p208 = pneg %p207
    $region38: #{conv_block_forward.5} parent=5 // pred_check_branch
      %210 = sbr.rel (%p208) target = $region40
    $region39: #{conv_block_forward.5} parent=5 // pred_region
      %s211 = ssub.s32 %s9, 2
      // Predicated region
      $region41: #{conv_block_forward.5} parent=39 // pred_check
        %p212 = pneg %p106
      $region42: #{conv_block_forward.5} parent=39 // pred_check_branch
        %214 = sbr.rel (%p212) target = $region44
      $region43: #{conv_block_forward.5} parent=39 // pred_region
        %p215 = scmp.lt.s32.totalorder %s15, 1
        %s216 = scalar_select %p215, %s15, 1
        %s217 = smul.addr %s216, 3
        %s218 = smul.addr %s217, 8
        %s219 = scalar_lea.vmem %s3, %s218
      $region44: #{conv_block_forward.5} parent=39 // pred_fallthru
        _
    $region40: #{conv_block_forward.5} parent=5 // pred_fallthru
      _
  $region6: #{conv_block_forward.5} parent=0 // loop_footer
    %s13 = sadd.s32 1, %s9
  $region7: #{conv_block_forward.5} parent=0 // loop_footer_branch
    %8 = sbr.rel target = $region3
  $region8: #{conv_block_forward.5} parent=0 // loop_exit
    _

// kernel: conv_block_forward.3
$region0: #{conv_block_forward.3}
  #allocation0 [shape = 'u32[]', space=smem, size = 0x4, offset = 0x4, fixed_abs, tag = 'smem constant byte address 0x4 - core index']
  #allocation1 [shape = 'u32[144,128]{1,0:T(1,128)}', space=vmem, size = 0x12000, scoped, tag = 'internal scratch']
  %s0 = inlined_call_operand.vmem [shape: f32[2,4,360], index: 0, kind: input, shape index: {}]
  %s1 = inlined_call_operand.vmem [shape: f32[9,8,4], index: 1, kind: input, shape index: {}]
  %s2 = inlined_call_operand.vmem [shape: f32[1,288], index: 2, kind: input, shape index: {}]
  %s3 = inlined_call_operand.vmem [shape: f32[2,8,288], index: 3, kind: output, shape index: {0}]
  %s4 = inlined_call_operand.vmem [shape: f32[2,8,2], index: 4, kind: output, shape index: {1}]
  %5 = xla_tuple %s3, %s4
  %s6 = sld [smem:[#allocation0]]
  $region53: #{conv_block_forward.3} parent=0
    _
  %s8 = ssub.s32 1, %s6
  %s9 = scalar_select 0, %s8, %s6
  loop: start=0, step=1, limit=4
  $region2: #{conv_block_forward.3} parent=0 // loop_pre_header
    _
  $region3: #{conv_block_forward.3} parent=0 // loop_header
    %s11 = sphi 0, %s15
    %p12 = scmp.ge.s32.totalorder %s11, 4
    %s21 = sphi 0, %s23
    %s24 = sphi 0, %s21
    %s25 = sphi 0, %s24
    %s41 = sphi 0, %s25
    %s45 = sphi 0, %s45
    %s47 = sphi 0, %s45
    %s48 = sphi 0, %s47
    %s62 = sphi 0, %s48
    %s66 = sphi 0, %s66
    %s68 = sphi 0, %s66
    %s69 = sphi 0, %s68
    %s83 = sphi 0, %s69
    %s89 = sphi 0, %s91
    %s92 = sphi 0, %s89
    %s93 = sphi 0, %s92
    %s109 = sphi 0, %s93
    %s115 = sphi 0, %s117
    %s118 = sphi 0, %s115
    %s119 = sphi 0, %s118
    %s135 = sphi 0, %s119
  $region4: #{conv_block_forward.3} parent=0 // loop_header_branch
    %14 = sbr.rel (%p12) target = $region8
  $region5: #{conv_block_forward.3} parent=0 // loop_body
    %s16 = ssub.s32 %s11, 1
    %s17 = ssub.s32 %s11, 2
    %s18 = sadd.s32 %s11, 1
    %s19 = ssub.s32 %s11, %s18
    %p20 = scmp.eq.s32.totalorder %s19, 0
    %s22 = sadd.s32 %s21, 1
    %s23 = scalar_select %p20, %s21, %s22
    %p26 = pneg %p20
    %p27 = scmp.eq.s32.totalorder %s11, 1
    %p28 = por %p26, %p27
    %p29 = scmp.ne.s32.totalorder %s21, %s24
    %p30 = scmp.eq.s32.totalorder %s11, 0
    %p31 = por %p29, %p30
    %p32 = scmp.ne.s32.totalorder %s21, %s24
    %p33 = scmp.eq.s32.totalorder %s16, 1
    %p34 = por %p32, %p33
    %p35 = scmp.ne.s32.totalorder %s24, %s25
    %p36 = scmp.eq.s32.totalorder %s16, 0
    %p37 = por %p35, %p36
    %p38 = scmp.ne.s32.totalorder %s24, %s25
    %p39 = scmp.eq.s32.totalorder %s17, 1
    %p40 = por %p38, %p39
    %p42 = scmp.ne.s32.totalorder %s25, %s41
    %p43 = scmp.eq.s32.totalorder %s17, 0
    %p44 = por %p42, %p43
    %s46 = sadd.s32 %s45, 1
    %p49 = scmp.eq.s32.totalorder %s11, 1
    %p50 = scmp.ne.s32.totalorder %s45, %s47
    %p51 = scmp.eq.s32.totalorder %s11, 0
    %p52 = por %p50, %p51
    %p53 = scmp.ne.s32.totalorder %s45, %s47
    %p54 = scmp.eq.s32.totalorder %s16, 1
    %p55 = por %p53, %p54
    %p56 = scmp.ne.s32.totalorder %s47, %s48
    %p57 = scmp.eq.s32.totalorder %s16, 0
    %p58 = por %p56, %p57
    %p59 = scmp.ne.s32.totalorder %s47, %s48
    %p60 = scmp.eq.s32.totalorder %s17, 1
    %p61 = por %p59, %p60
    %p63 = scmp.ne.s32.totalorder %s48, %s62
    %p64 = scmp.eq.s32.totalorder %s17, 0
    %p65 = por %p63, %p64
    %s67 = sadd.s32 %s66, 1
    %p70 = scmp.eq.s32.totalorder %s11, 1
    %p71 = scmp.ne.s32.totalorder %s66, %s68
    %p72 = scmp.eq.s32.totalorder %s11, 0
    %p73 = por %p71, %p72
    %p74 = scmp.ne.s32.totalorder %s66, %s68
    %p75 = scmp.eq.s32.totalorder %s16, 1
    %p76 = por %p74, %p75
    %p77 = scmp.ne.s32.totalorder %s68, %s69
    %p78 = scmp.eq.s32.totalorder %s16, 0
    %p79 = por %p77, %p78
    %p80 = scmp.ne.s32.totalorder %s68, %s69
    %p81 = scmp.eq.s32.totalorder %s17, 1
    %p82 = por %p80, %p81
    %p84 = scmp.ne.s32.totalorder %s69, %s83
    %p85 = scmp.eq.s32.totalorder %s17, 0
    %p86 = por %p84, %p85
    %s87 = ssub.s32 %s11, %s18
    %p88 = scmp.eq.s32.totalorder %s87, 0
    %s90 = sadd.s32 %s89, 1
    %s91 = scalar_select %p88, %s89, %s90
    %p94 = pneg %p88
    %p95 = scmp.eq.s32.totalorder %s11, 1
    %p96 = por %p94, %p95
    %p97 = scmp.ne.s32.totalorder %s89, %s92
    %p98 = scmp.eq.s32.totalorder %s11, 0
    %p99 = por %p97, %p98
    %p100 = scmp.ne.s32.totalorder %s89, %s92
    %p101 = scmp.eq.s32.totalorder %s16, 1
    %p102 = por %p100, %p101
    %p103 = scmp.ne.s32.totalorder %s92, %s93
    %p104 = scmp.eq.s32.totalorder %s16, 0
    %p105 = por %p103, %p104
    %p106 = scmp.ne.s32.totalorder %s92, %s93
    %p107 = scmp.eq.s32.totalorder %s17, 1
    %p108 = por %p106, %p107
    %p110 = scmp.ne.s32.totalorder %s93, %s109
    %p111 = scmp.eq.s32.totalorder %s17, 0
    %p112 = por %p110, %p111
    %s113 = ssub.s32 %s11, %s18
    %p114 = scmp.eq.s32.totalorder %s113, 0
    %s116 = sadd.s32 %s115, 1
    %s117 = scalar_select %p114, %s115, %s116
    %p120 = pneg %p114
    %p121 = scmp.eq.s32.totalorder %s11, 1
    %p122 = por %p120, %p121
    %p123 = scmp.ne.s32.totalorder %s115, %s118
    %p124 = scmp.eq.s32.totalorder %s11, 0
    %p125 = por %p123, %p124
    %p126 = scmp.ne.s32.totalorder %s115, %s118
    %p127 = scmp.eq.s32.totalorder %s16, 1
    %p128 = por %p126, %p127
    %p129 = scmp.ne.s32.totalorder %s118, %s119
    %p130 = scmp.eq.s32.totalorder %s16, 0
    %p131 = por %p129, %p130
    %p132 = scmp.ne.s32.totalorder %s118, %s119
    %p133 = scmp.eq.s32.totalorder %s17, 1
    %p134 = por %p132, %p133
    %p136 = scmp.ne.s32.totalorder %s119, %s135
    %p137 = scmp.eq.s32.totalorder %s17, 0
    %p138 = por %p136, %p137
    %p139 = scmp.le.s32.totalorder 1, %s11
    %p140 = scmp.lt.s32.totalorder %s11, 3
    %p141 = pnand %p139, %p140
    %p142 = pneg %p141
    // Predicated region
    $region9: #{conv_block_forward.3} parent=5 // pred_check
      _
    $region10: #{conv_block_forward.3} parent=5 // pred_check_branch
      %144 = sbr.rel (%p141) target = $region12
    $region11: #{conv_block_forward.3} parent=5 // pred_region
      %s145 = ssub.s32 %s11, 1
      // Predicated region
      $region13: #{conv_block_forward.3} parent=11 // pred_check
        %p146 = pneg %p58
      $region14: #{conv_block_forward.3} parent=11 // pred_check_branch
        %148 = sbr.rel (%p146) target = $region16
      $region15: #{conv_block_forward.3} parent=11 // pred_region
        _
      $region16: #{conv_block_forward.3} parent=11 // pred_fallthru
        _
      // Predicated region
      $region17: #{conv_block_forward.3} parent=11 // pred_check
        %p149 = pneg %p79
      $region18: #{conv_block_forward.3} parent=11 // pred_check_branch
        %151 = sbr.rel (%p149) target = $region20
      $region19: #{conv_block_forward.3} parent=11 // pred_region
        _
      $region20: #{conv_block_forward.3} parent=11 // pred_fallthru
        _
    $region12: #{conv_block_forward.3} parent=5 // pred_fallthru
      _
    %p152 = scmp.lt.s32.totalorder %s11, 2
    // Predicated region
    $region21: #{conv_block_forward.3} parent=5 // pred_check
      %p153 = pneg %p152
    $region22: #{conv_block_forward.3} parent=5 // pred_check_branch
      %155 = sbr.rel (%p153) target = $region24
    $region23: #{conv_block_forward.3} parent=5 // pred_region
      // Predicated region
      $region25: #{conv_block_forward.3} parent=23 // pred_check
        %p156 = pneg %p31
      $region26: #{conv_block_forward.3} parent=23 // pred_check_branch
        %158 = sbr.rel (%p156) target = $region28
      $region27: #{conv_block_forward.3} parent=23 // pred_region
        %p159 = scmp.lt.s32.totalorder %s11, 1
        %s160 = scalar_select %p159, %s11, 1
        %s161 = smul.addr %s160, 3
        %s162 = smul.addr %s161, 4
        %s163 = scalar_lea.vmem %s0, %s162
      $region28: #{conv_block_forward.3} parent=23 // pred_fallthru
        _
    $region24: #{conv_block_forward.3} parent=5 // pred_fallthru
      _
    %p164 = scmp.le.s32.totalorder 1, %s11
    %p165 = scmp.lt.s32.totalorder %s11, 3
    %p166 = pnand %p164, %p165
    %p167 = pneg %p166
    // Predicated region
    $region29: #{conv_block_forward.3} parent=5 // pred_check
      _
    $region30: #{conv_block_forward.3} parent=5 // pred_check_branch
      %169 = sbr.rel (%p166) target = $region32
    $region31: #{conv_block_forward.3} parent=5 // pred_region
      %s170 = ssub.s32 %s11, 1
      %p171 = scmp.lt.s32.totalorder %s16, 1
      %s172 = scalar_select %p171, %s16, 1
      %s173 = smul.addr %s172, 3
      %s174 = smul.addr %s173, 4
      %s175 = scalar_lea.vmem %s0, %s174
      %p176 = pneg %p37
      %p177 = pneg %p34
      %p178 = pneg %p58
      %p179 = pneg %p55
      %p180 = pneg %p79
      %p181 = pneg %p76
      %p182 = pneg %p105
      %p183 = pneg %p102
      %p184 = scmp.lt.s32.totalorder %s16, 1
      %s185 = scalar_select %p184, %s16, 1
      %s186 = smul.addr %s185, 3
      %s187 = smul.addr %s186, 8
      %s188 = scalar_lea.vmem %s3, %s187
      %p189 = pneg %p131
      %p190 = pneg %p128
      %p191 = scmp.lt.s32.totalorder %s16, 1
      %s192 = scalar_select %p191, %s16, 1
      %s193 = smul.addr %s192, 8
      %s194 = scalar_lea.vmem %s4, %s193
      %p195 = scmp.lt.s32.totalorder %s16, 1
      %s196 = scalar_select %p195, %s16, 1
      %s197 = smul.addr %s196, 3
      %s198 = smul.addr %s197, 4
      %s199 = scalar_lea.vmem %s0, %s198
      %p200 = scmp.lt.s32.totalorder %s16, 1
      %s201 = scalar_select %p200, %s16, 1
      %s202 = smul.addr %s201, 3
      %s203 = smul.addr %s202, 8
      %s204 = scalar_lea.vmem %s3, %s203
      %p205 = scmp.lt.s32.totalorder %s16, 1
      %s206 = scalar_select %p205, %s16, 1
      %s207 = smul.addr %s206, 8
      %s208 = scalar_lea.vmem %s4, %s207
      %v209 = vld [vmem:[%s199] sm:$0xff]
      %v210 = vld [vmem:[%s199 + $0x8] sm:$0xf]
      %v211 = vld [vmem:[%s1] sm:$0xff]
      %s212 = scalar_lea.vmem %s1, 8
      %v213 = vld [vmem:[%s212] sm:$0xff]
      %v216 = vcombine.high %v209, %v209
      %217 = vrot.lane.b32.xlu0 %v209, 110
      %v218 = vpop.permute.xlu0 %217
      %219 = vrot.lane.b32.xlu0 %v216, 110
      %v220 = vpop.permute.xlu0 %219
      %221 = vrot.lane.b32.xlu0 %v210, 110
      %v222 = vpop.permute.xlu0 %221
      %vm223 = vcmask 900096
      %v224 = vsel %vm223, %v218, %v220
      %v225 = vsel %vm223, %v220, %v222
      %vm226 = vcmask 31744
      %v228 = vsel %vm226, %v213, 0
      %vm230 = vcmask 1043456
      %v231 = vsel %vm230, %v224, 0
      %v233 = vsel %vm230, %v225, 0
      %v235 = vsel %vm230, %v222, 0
      %237 = vmatprep.subr.mxu0 %v233
      %238 = vmatpush1.msra.mxu0 %v231
      %239 = vmatprep.subr.mxu0 0.0
      %240 = vmatpush1.msra.mxu0 0.0
      %241 = vmatprep.subr.mxu0 0.0
      %242 = vmatpush1.msra.mxu0 0.0
      %243 = vmatprep.subr.mxu0 0.0
      %244 = vmatpush1.msra.mxu0 0.0
      %245 = vmatprep.subr.mxu0 0.0
      %246 = vmatpush1.msra.mxu0 0.0
      %247 = vmatprep.subr.mxu0 0.0
      %248 = vmatpush1.msra.mxu0 0.0
      %249 = vmatprep.subr.mxu0 0.0
      %250 = vmatpush1.msra.mxu0 0.0
      %251 = vmatprep.subr.mxu0 0.0
      %252 = vmatpush1.msra.mxu0 0.0
      %253 = vmatprep.subr.mxu0 0.0
      %254 = vmatpush1.msra.mxu0 0.0
      %255 = vmatprep.subr.mxu0 0.0
      %256 = vmatpush1.msra.mxu0 0.0
      %257 = vmatprep.subr.mxu0 0.0
      %258 = vmatpush1.msra.mxu0 0.0
      %259 = vmatprep.subr.mxu0 0.0
      %260 = vmatpush1.msra.mxu0 0.0
      %261 = vmatprep.subr.mxu0 0.0
      %262 = vmatpush1.msra.mxu0 0.0
      %263 = vmatprep.subr.mxu0 0.0
      %264 = vmatpush1.msra.mxu0 0.0
      %265 = vmatprep.subr.mxu0 0.0
      %266 = vmatpush1.msra.mxu0 0.0
      %267 = vmatprep.subr.mxu0 0.0
      %268 = vmatpush1.msra.mxu0 0.0
      %269 = vmatprep.subr.mxu0 0.0
      %270 = vmatpush1.msra.mxu0 0.0
      %271 = vmatprep.subr.mxu0 0.0
      %272 = vmatpush1.msra.mxu0 0.0
      %273 = vmatprep.subr.mxu0 0.0
      %274 = vmatpush1.msra.mxu0 0.0
      %275 = vmatprep.subr.mxu0 0.0
      %276 = vmatpush1.msra.mxu0 0.0
      %277 = vmatprep.subr.mxu0 0.0
      %278 = vmatpush1.msra.mxu0 0.0
      %279 = vmatprep.subr.mxu0 0.0
      %280 = vmatpush1.msra.mxu0 0.0
      %281 = vmatprep.subr.mxu0 0.0
      %282 = vmatpush1.msra.mxu0 0.0
      %283 = vmatprep.subr.mxu0 0.0
      %284 = vmatpush1.msra.mxu0 0.0
      %285 = vmatprep.subr.mxu0 0.0
      %286 = vmatpush1.msra.mxu0 0.0
      %287 = vmatprep.subr.mxu0 0.0
      %288 = vmatpush1.msra.mxu0 0.0
      %289 = vmatprep.subr.mxu0 0.0
      %290 = vmatpush1.msra.mxu0 0.0
      %291 = vmatprep.subr.mxu0 0.0
      %292 = vmatpush1.msra.mxu0 0.0
      %293 = vmatprep.subr.mxu0 0.0
      %294 = vmatpush1.msra.mxu0 0.0
      %295 = vmatprep.subr.mxu0 0.0
      %296 = vmatpush1.msra.mxu0 0.0
      %297 = vmatprep.subr.mxu0 0.0
      %298 = vmatpush1.msra.mxu0 0.0
      %299 = vmatprep.subr.mxu0 0.0
      %300 = vmatpush1.msra.mxu0 0.0
      %301 = vmatprep.mubr.f32.mxu0 0.0
      %302 = vmatmul.mubr.f32.gmra.mrb[0].mxu0 %v228
      %v303 = vpop.f32.mrb[0].mxu0
      %v304 = vadd.f32 0.0, %v303
      %v305 = vpop.f32.mrb[0].mxu0
      %v306 = vadd.f32 0.0, %v305
      %307 = vdwg.mxu0
      %308 = vmatprep.subr.mxu0 0.0
      %309 = vmatpush1.msra.mxu0 %v235
      %310 = vmatprep.subr.mxu0 0.0
      %311 = vmatpush1.msra.mxu0 0.0
      %312 = vmatprep.subr.mxu0 0.0
      %313 = vmatpush1.msra.mxu0 0.0
      %314 = vmatprep.subr.mxu0 0.0
      %315 = vmatpush1.msra.mxu0 0.0
      %316 = vmatprep.subr.mxu0 0.0
      %317 = vmatpush1.msra.mxu0 0.0
      %318 = vmatprep.subr.mxu0 0.0
      %319 = vmatpush1.msra.mxu0 0.0
      %320 = vmatprep.subr.mxu0 0.0
      %321 = vmatpush1.msra.mxu0 0.0
      %322 = vmatprep.subr.mxu0 0.0
      %323 = vmatpush1.msra.mxu0 0.0
      %324 = vmatprep.subr.mxu0 0.0
      %325 = vmatpush1.msra.mxu0 0.0
      %326 = vmatprep.subr.mxu0 0.0
      %327 = vmatpush1.msra.mxu0 0.0
      %328 = vmatprep.subr.mxu0 0.0
      %329 = vmatpush1.msra.mxu0 0.0
      %330 = vmatprep.subr.mxu0 0.0
      %331 = vmatpush1.msra.mxu0 0.0
      %332 = vmatprep.subr.mxu0 0.0
      %333 = vmatpush1.msra.mxu0 0.0
      %334 = vmatprep.subr.mxu0 0.0
      %335 = vmatpush1.msra.mxu0 0.0
      %336 = vmatprep.subr.mxu0 0.0
      %337 = vmatpush1.msra.mxu0 0.0
      %338 = vmatprep.subr.mxu0 0.0
      %339 = vmatpush1.msra.mxu0 0.0
      %340 = vmatprep.subr.mxu0 0.0
      %341 = vmatpush1.msra.mxu0 0.0
      %342 = vmatprep.subr.mxu0 0.0
      %343 = vmatpush1.msra.mxu0 0.0
      %344 = vmatprep.subr.mxu0 0.0
      %345 = vmatpush1.msra.mxu0 0.0
      %346 = vmatprep.subr.mxu0 0.0
      %347 = vmatpush1.msra.mxu0 0.0
      %348 = vmatprep.subr.mxu0 0.0
      %349 = vmatpush1.msra.mxu0 0.0
      %350 = vmatprep.subr.mxu0 0.0
      %351 = vmatpush1.msra.mxu0 0.0
      %352 = vmatprep.subr.mxu0 0.0
      %353 = vmatpush1.msra.mxu0 0.0
      %354 = vmatprep.subr.mxu0 0.0
      %355 = vmatpush1.msra.mxu0 0.0
      %356 = vmatprep.subr.mxu0 0.0
      %357 = vmatpush1.msra.mxu0 0.0
      %358 = vmatprep.subr.mxu0 0.0
      %359 = vmatpush1.msra.mxu0 0.0
      %360 = vmatprep.subr.mxu0 0.0
      %361 = vmatpush1.msra.mxu0 0.0
      %362 = vmatprep.subr.mxu0 0.0
      %363 = vmatpush1.msra.mxu0 0.0
      %364 = vmatprep.subr.mxu0 0.0
      %365 = vmatpush1.msra.mxu0 0.0
      %366 = vmatprep.subr.mxu0 0.0
      %367 = vmatpush1.msra.mxu0 0.0
      %368 = vmatprep.subr.mxu0 0.0
      %369 = vmatpush1.msra.mxu0 0.0
      %370 = vmatprep.subr.mxu0 0.0
      %371 = vmatpush1.msra.mxu0 0.0
      %372 = vmatprep.mubr.f32.mxu0 0.0
      %373 = vmatmul.mubr.f32.gmra.mrb[0].mxu0 %v228
      %v374 = vpop.f32.mrb[0].mxu0
      %v375 = vadd.f32 0.0, %v374
      %v376 = vpop.f32.mrb[0].mxu0
      %377 = vdwg.mxu0
      %378 = vrot.lane.b32.xlu0 %v209, 111
      %v379 = vpop.permute.xlu0 %378
      %380 = vrot.lane.b32.xlu0 %v216, 111
      %v381 = vpop.permute.xlu0 %380
      %382 = vrot.lane.b32.xlu0 %v210, 111
      %v383 = vpop.permute.xlu0 %382
      %vm384 = vcmask 908288
      %v385 = vsel %vm384, %v379, %v381
      %v386 = vsel %vm384, %v381, %v383
      %v388 = vsel %vm226, %v211, 0
      %v390 = vsel %vm230, %v385, 0
      %v392 = vsel %vm230, %v386, 0
      %v394 = vsel %vm230, %v383, 0
      %396 = vmatprep.subr.mxu0 %v392
      %397 = vmatpush1.msra.mxu0 %v390
      %398 = vmatprep.subr.mxu0 0.0
      %399 = vmatpush1.msra.mxu0 0.0
      %400 = vmatprep.subr.mxu0 0.0
      %401 = vmatpush1.msra.mxu0 0.0
      %402 = vmatprep.subr.mxu0 0.0
      %403 = vmatpush1.msra.mxu0 0.0
      %404 = vmatprep.subr.mxu0 0.0
      %405 = vmatpush1.msra.mxu0 0.0
      %406 = vmatprep.subr.mxu0 0.0
      %407 = vmatpush1.msra.mxu0 0.0
      %408 = vmatprep.subr.mxu0 0.0
      %409 = vmatpush1.msra.mxu0 0.0
      %410 = vmatprep.subr.mxu0 0.0
      %411 = vmatpush1.msra.mxu0 0.0
      %412 = vmatprep.subr.mxu0 0.0
      %413 = vmatpush1.msra.mxu0 0.0
      %414 = vmatprep.subr.mxu0 0.0
      %415 = vmatpush1.msra.mxu0 0.0
      %416 = vmatprep.subr.mxu0 0.0
      %417 = vmatpush1.msra.mxu0 0.0
      %418 = vmatprep.subr.mxu0 0.0
      %419 = vmatpush1.msra.mxu0 0.0
      %420 = vmatprep.subr.mxu0 0.0
      %421 = vmatpush1.msra.mxu0 0.0
      %422 = vmatprep.subr.mxu0 0.0
      %423 = vmatpush1.msra.mxu0 0.0
      %424 = vmatprep.subr.mxu0 0.0
      %425 = vmatpush1.msra.mxu0 0.0
      %426 = vmatprep.subr.mxu0 0.0
      %427 = vmatpush1.msra.mxu0 0.0
      %428 = vmatprep.subr.mxu0 0.0
      %429 = vmatpush1.msra.mxu0 0.0
      %430 = vmatprep.subr.mxu0 0.0
      %431 = vmatpush1.msra.mxu0 0.0
      %432 = vmatprep.subr.mxu0 0.0
      %433 = vmatpush1.msra.mxu0 0.0
      %434 = vmatprep.subr.mxu0 0.0
      %435 = vmatpush1.msra.mxu0 0.0
      %436 = vmatprep.subr.mxu0 0.0
      %437 = vmatpush1.msra.mxu0 0.0
      %438 = vmatprep.subr.mxu0 0.0
      %439 = vmatpush1.msra.mxu0 0.0
      %440 = vmatprep.subr.mxu0 0.0
      %441 = vmatpush1.msra.mxu0 0.0
      %442 = vmatprep.subr.mxu0 0.0
      %443 = vmatpush1.msra.mxu0 0.0
      %444 = vmatprep.subr.mxu0 0.0
      %445 = vmatpush1.msra.mxu0 0.0
      %446 = vmatprep.subr.mxu0 0.0
      %447 = vmatpush1.msra.mxu0 0.0
      %448 = vmatprep.subr.mxu0 0.0
      %449 = vmatpush1.msra.mxu0 0.0
      %450 = vmatprep.subr.mxu0 0.0
      %451 = vmatpush1.msra.mxu0 0.0
      %452 = vmatprep.subr.mxu0 0.0
      %453 = vmatpush1.msra.mxu0 0.0
      %454 = vmatprep.subr.mxu0 0.0
      %455 = vmatpush1.msra.mxu0 0.0
      %456 = vmatprep.subr.mxu0 0.0
      %457 = vmatpush1.msra.mxu0 0.0
      %458 = vmatprep.subr.mxu0 0.0
      %459 = vmatpush1.msra.mxu0 0.0
      %460 = vmatprep.mubr.f32.mxu0 0.0
      %461 = vmatmul.mubr.f32.gmra.mrb[0].mxu0 %v388
      %v462 = vpop.f32.mrb[0].mxu0
      %v463 = vadd.f32 %v304, %v462
      %v464 = vpop.f32.mrb[0].mxu0
      %v465 = vadd.f32 %v306, %v464
      %466 = vdwg.mxu0
      %467 = vmatprep.subr.mxu0 0.0
      %468 = vmatpush1.msra.mxu0 %v394
      %469 = vmatprep.subr.mxu0 0.0
      %470 = vmatpush1.msra.mxu0 0.0
      %471 = vmatprep.subr.mxu0 0.0
      %472 = vmatpush1.msra.mxu0 0.0
      %473 = vmatprep.subr.mxu0 0.0
      %474 = vmatpush1.msra.mxu0 0.0
      %475 = vmatprep.subr.mxu0 0.0
      %476 = vmatpush1.msra.mxu0 0.0
      %477 = vmatprep.subr.mxu0 0.0
      %478 = vmatpush1.msra.mxu0 0.0
      %479 = vmatprep.subr.mxu0 0.0
      %480 = vmatpush1.msra.mxu0 0.0
      %481 = vmatprep.subr.mxu0 0.0
      %482 = vmatpush1.msra.mxu0 0.0
      %483 = vmatprep.subr.mxu0 0.0
      %484 = vmatpush1.msra.mxu0 0.0
      %485 = vmatprep.subr.mxu0 0.0
      %486 = vmatpush1.msra.mxu0 0.0
      %487 = vmatprep.subr.mxu0 0.0
      %488 = vmatpush1.msra.mxu0 0.0
      %489 = vmatprep.subr.mxu0 0.0
      %490 = vmatpush1.msra.mxu0 0.0
      %491 = vmatprep.subr.mxu0 0.0
      %492 = vmatpush1.msra.mxu0 0.0
      %493 = vmatprep.subr.mxu0 0.0
      %494 = vmatpush1.msra.mxu0 0.0
      %495 = vmatprep.subr.mxu0 0.0
      %496 = vmatpush1.msra.mxu0 0.0
      %497 = vmatprep.subr.mxu0 0.0
      %498 = vmatpush1.msra.mxu0 0.0
      %499 = vmatprep.subr.mxu0 0.0
      %500 = vmatpush1.msra.mxu0 0.0
      %501 = vmatprep.subr.mxu0 0.0
      %502 = vmatpush1.msra.mxu0 0.0
      %503 = vmatprep.subr.mxu0 0.0
      %504 = vmatpush1.msra.mxu0 0.0
      %505 = vmatprep.subr.mxu0 0.0
      %506 = vmatpush1.msra.mxu0 0.0
      %507 = vmatprep.subr.mxu0 0.0
      %508 = vmatpush1.msra.mxu0 0.0
      %509 = vmatprep.subr.mxu0 0.0
      %510 = vmatpush1.msra.mxu0 0.0
      %511 = vmatprep.subr.mxu0 0.0
      %512 = vmatpush1.msra.mxu0 0.0
      %513 = vmatprep.subr.mxu0 0.0
      %514 = vmatpush1.msra.mxu0 0.0
      %515 = vmatprep.subr.mxu0 0.0
      %516 = vmatpush1.msra.mxu0 0.0
      %517 = vmatprep.subr.mxu0 0.0
      %518 = vmatpush1.msra.mxu0 0.0
      %519 = vmatprep.subr.mxu0 0.0
      %520 = vmatpush1.msra.mxu0 0.0
      %521 = vmatprep.subr.mxu0 0.0
      %522 = vmatpush1.msra.mxu0 0.0
      %523 = vmatprep.subr.mxu0 0.0
      %524 = vmatpush1.msra.mxu0 0.0
      %525 = vmatprep.subr.mxu0 0.0
      %526 = vmatpush1.msra.mxu0 0.0
      %527 = vmatprep.subr.mxu0 0.0
      %528 = vmatpush1.msra.mxu0 0.0
      %529 = vmatprep.subr.mxu0 0.0
      %530 = vmatpush1.msra.mxu0 0.0
      %531 = vmatprep.mubr.f32.mxu0 0.0
      %532 = vmatmul.mubr.f32.gmra.mrb[0].mxu0 %v388
      %v533 = vpop.f32.mrb[0].mxu0
      %v534 = vadd.f32 %v375, %v533
      %v535 = vpop.f32.mrb[0].mxu0
      %536 = vdwg.mxu0
      %s537 = scalar_lea.vmem %s1, 16
      %v538 = vld [vmem:[%s537] sm:$0xff]
      %539 = vrot.lane.b32.xlu0 %v209, 109
      %v540 = vpop.permute.xlu0 %539
      %541 = vrot.lane.b32.xlu0 %v216, 109
      %v542 = vpop.permute.xlu0 %541
      %543 = vrot.lane.b32.xlu0 %v210, 109
      %v544 = vpop.permute.xlu0 %543
      %vm545 = vcmask 891904
      %v546 = vsel %vm545, %v540, %v542
      %v547 = vsel %vm545, %v542, %v544
      %v549 = vsel %vm226, %v538, 0
      %v551 = vsel %vm230, %v546, 0
      %v553 = vsel %vm230, %v547, 0
      %v555 = vsel %vm230, %v544, 0
      %557 = vmatprep.subr.mxu0 %v553
      %558 = vmatpush1.msra.mxu0 %v551
      %559 = vmatprep.subr.mxu0 0.0
      %560 = vmatpush1.msra.mxu0 0.0
      %561 = vmatprep.subr.mxu0 0.0
      %562 = vmatpush1.msra.mxu0 0.0
      %563 = vmatprep.subr.mxu0 0.0
      %564 = vmatpush1.msra.mxu0 0.0
      %565 = vmatprep.subr.mxu0 0.0
      %566 = vmatpush1.msra.mxu0 0.0
      %567 = vmatprep.subr.mxu0 0.0
      %568 = vmatpush1.msra.mxu0 0.0
      %569 = vmatprep.subr.mxu0 0.0
      %570 = vmatpush1.msra.mxu0 0.0
      %571 = vmatprep.subr.mxu0 0.0
      %572 = vmatpush1.msra.mxu0 0.0
      %573 = vmatprep.subr.mxu0 0.0
      %574 = vmatpush1.msra.mxu0 0.0
      %575 = vmatprep.subr.mxu0 0.0
      %576 = vmatpush1.msra.mxu0 0.0
      %577 = vmatprep.subr.mxu0 0.0
      %578 = vmatpush1.msra.mxu0 0.0
      %579 = vmatprep.subr.mxu0 0.0
      %580 = vmatpush1.msra.mxu0 0.0
      %581 = vmatprep.subr.mxu0 0.0
      %582 = vmatpush1.msra.mxu0 0.0
      %583 = vmatprep.subr.mxu0 0.0
      %584 = vmatpush1.msra.mxu0 0.0
      %585 = vmatprep.subr.mxu0 0.0
      %586 = vmatpush1.msra.mxu0 0.0
      %587 = vmatprep.subr.mxu0 0.0
      %588 = vmatpush1.msra.mxu0 0.0
      %589 = vmatprep.subr.mxu0 0.0
      %590 = vmatpush1.msra.mxu0 0.0
      %591 = vmatprep.subr.mxu0 0.0
      %592 = vmatpush1.msra.mxu0 0.0
      %593 = vmatprep.subr.mxu0 0.0
      %594 = vmatpush1.msra.mxu0 0.0
      %595 = vmatprep.subr.mxu0 0.0
      %596 = vmatpush1.msra.mxu0 0.0
      %597 = vmatprep.subr.mxu0 0.0
      %598 = vmatpush1.msra.mxu0 0.0
      %599 = vmatprep.subr.mxu0 0.0
      %600 = vmatpush1.msra.mxu0 0.0
      %601 = vmatprep.subr.mxu0 0.0
      %602 = vmatpush1.msra.mxu0 0.0
      %603 = vmatprep.subr.mxu0 0.0
      %604 = vmatpush1.msra.mxu0 0.0
      %605 = vmatprep.subr.mxu0 0.0
      %606 = vmatpush1.msra.mxu0 0.0
      %607 = vmatprep.subr.mxu0 0.0
      %608 = vmatpush1.msra.mxu0 0.0
      %609 = vmatprep.subr.mxu0 0.0
      %610 = vmatpush1.msra.mxu0 0.0
      %611 = vmatprep.subr.mxu0 0.0
      %612 = vmatpush1.msra.mxu0 0.0
      %613 = vmatprep.subr.mxu0 0.0
      %614 = vmatpush1.msra.mxu0 0.0
      %615 = vmatprep.subr.mxu0 0.0
      %616 = vmatpush1.msra.mxu0 0.0
      %617 = vmatprep.subr.mxu0 0.0
      %618 = vmatpush1.msra.mxu0 0.0
      %619 = vmatprep.subr.mxu0 0.0
      %620 = vmatpush1.msra.mxu0 0.0
      %621 = vmatprep.mubr.f32.mxu0 0.0
      %622 = vmatmul.mubr.f32.gmra.mrb[0].mxu0 %v549
      %v623 = vpop.f32.mrb[0].mxu0
      %v624 = vadd.f32 0.0, %v623
      %v625 = vpop.f32.mrb[0].mxu0
      %v626 = vadd.f32 0.0, %v625
      %627 = vdwg.mxu0
      %628 = vmatprep.subr.mxu0 0.0
      %629 = vmatpush1.msra.mxu0 %v555
      %630 = vmatprep.subr.mxu0 0.0
      %631 = vmatpush1.msra.mxu0 0.0
      %632 = vmatprep.subr.mxu0 0.0
      %633 = vmatpush1.msra.mxu0 0.0
      %634 = vmatprep.subr.mxu0 0.0
      %635 = vmatpush1.msra.mxu0 0.0
      %636 = vmatprep.subr.mxu0 0.0
      %637 = vmatpush1.msra.mxu0 0.0
      %638 = vmatprep.subr.mxu0 0.0
      %639 = vmatpush1.msra.mxu0 0.0
      %640 = vmatprep.subr.mxu0 0.0
      %641 = vmatpush1.msra.mxu0 0.0
      %642 = vmatprep.subr.mxu0 0.0
      %643 = vmatpush1.msra.mxu0 0.0
      %644 = vmatprep.subr.mxu0 0.0
      %645 = vmatpush1.msra.mxu0 0.0
      %646 = vmatprep.subr.mxu0 0.0
      %647 = vmatpush1.msra.mxu0 0.0
      %648 = vmatprep.subr.mxu0 0.0
      %649 = vmatpush1.msra.mxu0 0.0
      %650 = vmatprep.subr.mxu0 0.0
      %651 = vmatpush1.msra.mxu0 0.0
      %652 = vmatprep.subr.mxu0 0.0
      %653 = vmatpush1.msra.mxu0 0.0
      %654 = vmatprep.subr.mxu0 0.0
      %655 = vmatpush1.msra.mxu0 0.0
      %656 = vmatprep.subr.mxu0 0.0
      %657 = vmatpush1.msra.mxu0 0.0
      %658 = vmatprep.subr.mxu0 0.0
      %659 = vmatpush1.msra.mxu0 0.0
      %660 = vmatprep.subr.mxu0 0.0
      %661 = vmatpush1.msra.mxu0 0.0
      %662 = vmatprep.subr.mxu0 0.0
      %663 = vmatpush1.msra.mxu0 0.0
      %664 = vmatprep.subr.mxu0 0.0
      %665 = vmatpush1.msra.mxu0 0.0
      %666 = vmatprep.subr.mxu0 0.0
      %667 = vmatpush1.msra.mxu0 0.0
      %668 = vmatprep.subr.mxu0 0.0
      %669 = vmatpush1.msra.mxu0 0.0
      %670 = vmatprep.subr.mxu0 0.0
      %671 = vmatpush1.msra.mxu0 0.0
      %672 = vmatprep.subr.mxu0 0.0
      %673 = vmatpush1.msra.mxu0 0.0
      %674 = vmatprep.subr.mxu0 0.0
      %675 = vmatpush1.msra.mxu0 0.0
      %676 = vmatprep.subr.mxu0 0.0
      %677 = vmatpush1.msra.mxu0 0.0
      %678 = vmatprep.subr.mxu0 0.0
      %679 = vmatpush1.msra.mxu0 0.0
      %680 = vmatprep.subr.mxu0 0.0
      %681 = vmatpush1.msra.mxu0 0.0
      %682 = vmatprep.subr.mxu0 0.0
      %683 = vmatpush1.msra.mxu0 0.0
      %684 = vmatprep.subr.mxu0 0.0
      %685 = vmatpush1.msra.mxu0 0.0
      %686 = vmatprep.subr.mxu0 0.0
      %687 = vmatpush1.msra.mxu0 0.0
      %688 = vmatprep.subr.mxu0 0.0
      %689 = vmatpush1.msra.mxu0 0.0
      %690 = vmatprep.subr.mxu0 0.0
      %691 = vmatpush1.msra.mxu0 0.0
      %692 = vmatprep.mubr.f32.mxu0 0.0
      %693 = vmatmul.mubr.f32.gmra.mrb[0].mxu0 %v549
      %v694 = vpop.f32.mrb[0].mxu0
      %v695 = vadd.f32 0.0, %v694
      %v696 = vpop.f32.mrb[0].mxu0
      %697 = vdwg.mxu0
      %v698 = vadd.f32 %v463, %v624
      %v699 = vadd.f32 %v465, %v626
      %v700 = vadd.f32 %v534, %v695
      %s701 = scalar_lea.vmem %s1, 24
      %v702 = vld [vmem:[%s701] sm:$0xff]
      %703 = vrot.lane.b32.xlu0 %v209, 93
      %v704 = vpop.permute.xlu0 %703
      %705 = vrot.lane.b32.xlu0 %v216, 93
      %v706 = vpop.permute.xlu0 %705
      %707 = vrot.lane.b32.xlu0 %v210, 93
      %v708 = vpop.permute.xlu0 %707
      %vm709 = vcmask 760832
      %v710 = vsel %vm709, %v704, %v706
      %v711 = vsel %vm709, %v706, %v708
      %v713 = vsel %vm226, %v702, 0
      %v715 = vsel %vm230, %v710, 0
      %v717 = vsel %vm230, %v711, 0
      %v719 = vsel %vm230, %v708, 0
      %721 = vmatprep.subr.mxu0 %v717
      %722 = vmatpush1.msra.mxu0 %v715
      %723 = vmatprep.subr.mxu0 0.0
      %724 = vmatpush1.msra.mxu0 0.0
      %725 = vmatprep.subr.mxu0 0.0
      %726 = vmatpush1.msra.mxu0 0.0
      %727 = vmatprep.subr.mxu0 0.0
      %728 = vmatpush1.msra.mxu0 0.0
      %729 = vmatprep.subr.mxu0 0.0
      %730 = vmatpush1.msra.mxu0 0.0
      %731 = vmatprep.subr.mxu0 0.0
      %732 = vmatpush1.msra.mxu0 0.0
      %733 = vmatprep.subr.mxu0 0.0
      %734 = vmatpush1.msra.mxu0 0.0
      %735 = vmatprep.subr.mxu0 0.0
      %736 = vmatpush1.msra.mxu0 0.0
      %737 = vmatprep.subr.mxu0 0.0
      %738 = vmatpush1.msra.mxu0 0.0
      %739 = vmatprep.subr.mxu0 0.0
      %740 = vmatpush1.msra.mxu0 0.0
      %741 = vmatprep.subr.mxu0 0.0
      %742 = vmatpush1.msra.mxu0 0.0
      %743 = vmatprep.subr.mxu0 0.0
      %744 = vmatpush1.msra.mxu0 0.0
      %745 = vmatprep.subr.mxu0 0.0
      %746 = vmatpush1.msra.mxu0 0.0
      %747 = vmatprep.subr.mxu0 0.0
      %748 = vmatpush1.msra.mxu0 0.0
      %749 = vmatprep.subr.mxu0 0.0
      %750 = vmatpush1.msra.mxu0 0.0
      %751 = vmatprep.subr.mxu0 0.0
      %752 = vmatpush1.msra.mxu0 0.0
      %753 = vmatprep.subr.mxu0 0.0
      %754 = vmatpush1.msra.mxu0 0.0
      %755 = vmatprep.subr.mxu0 0.0
      %756 = vmatpush1.msra.mxu0 0.0
      %757 = vmatprep.subr.mxu0 0.0
      %758 = vmatpush1.msra.mxu0 0.0
      %759 = vmatprep.subr.mxu0 0.0
      %760 = vmatpush1.msra.mxu0 0.0
      %761 = vmatprep.subr.mxu0 0.0
      %762 = vmatpush1.msra.mxu0 0.0
      %763 = vmatprep.subr.mxu0 0.0
      %764 = vmatpush1.msra.mxu0 0.0
      %765 = vmatprep.subr.mxu0 0.0
      %766 = vmatpush1.msra.mxu0 0.0
      %767 = vmatprep.subr.mxu0 0.0
      %768 = vmatpush1.msra.mxu0 0.0
      %769 = vmatprep.subr.mxu0 0.0
      %770 = vmatpush1.msra.mxu0 0.0
      %771 = vmatprep.subr.mxu0 0.0
      %772 = vmatpush1.msra.mxu0 0.0
      %773 = vmatprep.subr.mxu0 0.0
      %774 = vmatpush1.msra.mxu0 0.0
      %775 = vmatprep.subr.mxu0 0.0
      %776 = vmatpush1.msra.mxu0 0.0
      %777 = vmatprep.subr.mxu0 0.0
      %778 = vmatpush1.msra.mxu0 0.0
      %779 = vmatprep.subr.mxu0 0.0
      %780 = vmatpush1.msra.mxu0 0.0
      %781 = vmatprep.subr.mxu0 0.0
      %782 = vmatpush1.msra.mxu0 0.0
      %783 = vmatprep.subr.mxu0 0.0
      %784 = vmatpush1.msra.mxu0 0.0
      %785 = vmatprep.mubr.f32.mxu0 0.0
      %786 = vmatmul.mubr.f32.gmra.mrb[0].mxu0 %v713
      %v787 = vpop.f32.mrb[0].mxu0
      %v788 = vadd.f32 0.0, %v787
      %v789 = vpop.f32.mrb[0].mxu0
      %v790 = vadd.f32 0.0, %v789
      %791 = vdwg.mxu0
      %792 = vmatprep.subr.mxu0 0.0
      %793 = vmatpush1.msra.mxu0 %v719
      %794 = vmatprep.subr.mxu0 0.0
      %795 = vmatpush1.msra.mxu0 0.0
      %796 = vmatprep.subr.mxu0 0.0
      %797 = vmatpush1.msra.mxu0 0.0
      %798 = vmatprep.subr.mxu0 0.0
      %799 = vmatpush1.msra.mxu0 0.0
      %800 = vmatprep.subr.mxu0 0.0
      %801 = vmatpush1.msra.mxu0 0.0
      %802 = vmatprep.subr.mxu0 0.0
      %803 = vmatpush1.msra.mxu0 0.0
      %804 = vmatprep.subr.mxu0 0.0
      %805 = vmatpush1.msra.mxu0 0.0
      %806 = vmatprep.subr.mxu0 0.0
      %807 = vmatpush1.msra.mxu0 0.0
      %808 = vmatprep.subr.mxu0 0.0
      %809 = vmatpush1.msra.mxu0 0.0
      %810 = vmatprep.subr.mxu0 0.0
      %811 = vmatpush1.msra.mxu0 0.0
      %812 = vmatprep.subr.mxu0 0.0
      %813 = vmatpush1.msra.mxu0 0.0
      %814 = vmatprep.subr.mxu0 0.0
      %815 = vmatpush1.msra.mxu0 0.0
      %816 = vmatprep.subr.mxu0 0.0
      %817 = vmatpush1.msra.mxu0 0.0
      %818 = vmatprep.subr.mxu0 0.0
      %819 = vmatpush1.msra.mxu0 0.0
      %820 = vmatprep.subr.mxu0 0.0
      %821 = vmatpush1.msra.mxu0 0.0
      %822 = vmatprep.subr.mxu0 0.0
      %823 = vmatpush1.msra.mxu0 0.0
      %824 = vmatprep.subr.mxu0 0.0
      %825 = vmatpush1.msra.mxu0 0.0
      %826 = vmatprep.subr.mxu0 0.0
      %827 = vmatpush1.msra.mxu0 0.0
      %828 = vmatprep.subr.mxu0 0.0
      %829 = vmatpush1.msra.mxu0 0.0
      %830 = vmatprep.subr.mxu0 0.0
      %831 = vmatpush1.msra.mxu0 0.0
      %832 = vmatprep.subr.mxu0 0.0
      %833 = vmatpush1.msra.mxu0 0.0
      %834 = vmatprep.subr.mxu0 0.0
      %835 = vmatpush1.msra.mxu0 0.0
      %836 = vmatprep.subr.mxu0 0.0
      %837 = vmatpush1.msra.mxu0 0.0
      %838 = vmatprep.subr.mxu0 0.0
      %839 = vmatpush1.msra.mxu0 0.0
      %840 = vmatprep.subr.mxu0 0.0
      %841 = vmatpush1.msra.mxu0 0.0
      %842 = vmatprep.subr.mxu0 0.0
      %843 = vmatpush1.msra.mxu0 0.0
      %844 = vmatprep.subr.mxu0 0.0
      %845 = vmatpush1.msra.mxu0 0.0
      %846 = vmatprep.subr.mxu0 0.0
      %847 = vmatpush1.msra.mxu0 0.0
      %848 = vmatprep.subr.mxu0 0.0
      %849 = vmatpush1.msra.mxu0 0.0
      %850 = vmatprep.subr.mxu0 0.0
      %851 = vmatpush1.msra.mxu0 0.0
      %852 = vmatprep.subr.mxu0 0.0
      %853 = vmatpush1.msra.mxu0 0.0
      %854 = vmatprep.subr.mxu0 0.0
      %855 = vmatpush1.msra.mxu0 0.0
      %856 = vmatprep.mubr.f32.mxu0 0.0
      %857 = vmatmul.mubr.f32.gmra.mrb[0].mxu0 %v713
      %v858 = vpop.f32.mrb[0].mxu0
      %v859 = vadd.f32 0.0, %v858
      %v860 = vpop.f32.mrb[0].mxu0
      %861 = vdwg.mxu0
      %v862 = vadd.f32 %v698, %v788
      %v863 = vadd.f32 %v699, %v790
      %v864 = vadd.f32 %v700, %v859
      %s865 = scalar_lea.vmem %s1, 32
      %v866 = vld [vmem:[%s865] sm:$0xff]
      %867 = vrot.lane.b32.xlu0 %v209, 92
      %v868 = vpop.permute.xlu0 %867
      %869 = vrot.lane.b32.xlu0 %v216, 92
      %v870 = vpop.permute.xlu0 %869
      %871 = vrot.lane.b32.xlu0 %v210, 92
      %v872 = vpop.permute.xlu0 %871
      %vm873 = vcmask 752640
      %v874 = vsel %vm873, %v868, %v870
      %v875 = vsel %vm873, %v870, %v872
      %v877 = vsel %vm226, %v866, 0
      %v879 = vsel %vm230, %v874, 0
      %v881 = vsel %vm230, %v875, 0
      %v883 = vsel %vm230, %v872, 0
      %885 = vmatprep.subr.mxu0 %v881
      %886 = vmatpush1.msra.mxu0 %v879
      %887 = vmatprep.subr.mxu0 0.0
      %888 = vmatpush1.msra.mxu0 0.0
      %889 = vmatprep.subr.mxu0 0.0
      %890 = vmatpush1.msra.mxu0 0.0
      %891 = vmatprep.subr.mxu0 0.0
      %892 = vmatpush1.msra.mxu0 0.0
      %893 = vmatprep.subr.mxu0 0.0
      %894 = vmatpush1.msra.mxu0 0.0
      %895 = vmatprep.subr.mxu0 0.0
      %896 = vmatpush1.msra.mxu0 0.0
      %897 = vmatprep.subr.mxu0 0.0
      %898 = vmatpush1.msra.mxu0 0.0
      %899 = vmatprep.subr.mxu0 0.0
      %900 = vmatpush1.msra.mxu0 0.0
      %901 = vmatprep.subr.mxu0 0.0
      %902 = vmatpush1.msra.mxu0 0.0
      %903 = vmatprep.subr.mxu0 0.0
      %904 = vmatpush1.msra.mxu0 0.0
      %905 = vmatprep.subr.mxu0 0.0
      %906 = vmatpush1.msra.mxu0 0.0
      %907 = vmatprep.subr.mxu0 0.0
      %908 = vmatpush1.msra.mxu0 0.0
      %909 = vmatprep.subr.mxu0 0.0
      %910 = vmatpush1.msra.mxu0 0.0
      %911 = vmatprep.subr.mxu0 0.0
      %912 = vmatpush1.msra.mxu0 0.0
      %913 = vmatprep.subr.mxu0 0.0
      %914 = vmatpush1.msra.mxu0 0.0
      %915 = vmatprep.subr.mxu0 0.0
      %916 = vmatpush1.msra.mxu0 0.0
      %917 = vmatprep.subr.mxu0 0.0
      %918 = vmatpush1.msra.mxu0 0.0
      %919 = vmatprep.subr.mxu0 0.0
      %920 = vmatpush1.msra.mxu0 0.0
      %921 = vmatprep.subr.mxu0 0.0
      %922 = vmatpush1.msra.mxu0 0.0
      %923 = vmatprep.subr.mxu0 0.0
      %924 = vmatpush1.msra.mxu0 0.0
      %925 = vmatprep.subr.mxu0 0.0
      %926 = vmatpush1.msra.mxu0 0.0
      %927 = vmatprep.subr.mxu0 0.0
      %928 = vmatpush1.msra.mxu0 0.0
      %929 = vmatprep.subr.mxu0 0.0
      %930 = vmatpush1.msra.mxu0 0.0
      %931 = vmatprep.subr.mxu0 0.0
      %932 = vmatpush1.msra.mxu0 0.0
      %933 = vmatprep.subr.mxu0 0.0
      %934 = vmatpush1.msra.mxu0 0.0
      %935 = vmatprep.subr.mxu0 0.0
      %936 = vmatpush1.msra.mxu0 0.0
      %937 = vmatprep.subr.mxu0 0.0
      %938 = vmatpush1.msra.mxu0 0.0
      %939 = vmatprep.subr.mxu0 0.0
      %940 = vmatpush1.msra.mxu0 0.0
      %941 = vmatprep.subr.mxu0 0.0
      %942 = vmatpush1.msra.mxu0 0.0
      %943 = vmatprep.subr.mxu0 0.0
      %944 = vmatpush1.msra.mxu0 0.0
      %945 = vmatprep.subr.mxu0 0.0
      %946 = vmatpush1.msra.mxu0 0.0
      %947 = vmatprep.subr.mxu0 0.0
      %948 = vmatpush1.msra.mxu0 0.0
      %949 = vmatprep.mubr.f32.mxu0 0.0
      %950 = vmatmul.mubr.f32.gmra.mrb[0].mxu0 %v877
      %v951 = vpop.f32.mrb[0].mxu0
      %v952 = vadd.f32 0.0, %v951
      %v953 = vpop.f32.mrb[0].mxu0
      %v954 = vadd.f32 0.0, %v953
      %955 = vdwg.mxu0
      %956 = vmatprep.subr.mxu0 0.0
      %957 = vmatpush1.msra.mxu0 %v883
      %958 = vmatprep.subr.mxu0 0.0
      %959 = vmatpush1.msra.mxu0 0.0
      %960 = vmatprep.subr.mxu0 0.0
      %961 = vmatpush1.msra.mxu0 0.0
      %962 = vmatprep.subr.mxu0 0.0
      %963 = vmatpush1.msra.mxu0 0.0
      %964 = vmatprep.subr.mxu0 0.0
      %965 = vmatpush1.msra.mxu0 0.0
      %966 = vmatprep.subr.mxu0 0.0
      %967 = vmatpush1.msra.mxu0 0.0
      %968 = vmatprep.subr.mxu0 0.0
      %969 = vmatpush1.msra.mxu0 0.0
      %970 = vmatprep.subr.mxu0 0.0
      %971 = vmatpush1.msra.mxu0 0.0
      %972 = vmatprep.subr.mxu0 0.0
      %973 = vmatpush1.msra.mxu0 0.0
      %974 = vmatprep.subr.mxu0 0.0
      %975 = vmatpush1.msra.mxu0 0.0
      %976 = vmatprep.subr.mxu0 0.0
      %977 = vmatpush1.msra.mxu0 0.0
      %978 = vmatprep.subr.mxu0 0.0
      %979 = vmatpush1.msra.mxu0 0.0
      %980 = vmatprep.subr.mxu0 0.0
      %981 = vmatpush1.msra.mxu0 0.0
      %982 = vmatprep.subr.mxu0 0.0
      %983 = vmatpush1.msra.mxu0 0.0
      %984 = vmatprep.subr.mxu0 0.0
      %985 = vmatpush1.msra.mxu0 0.0
      %986 = vmatprep.subr.mxu0 0.0
      %987 = vmatpush1.msra.mxu0 0.0
      %988 = vmatprep.subr.mxu0 0.0
      %989 = vmatpush1.msra.mxu0 0.0
      %990 = vmatprep.subr.mxu0 0.0
      %991 = vmatpush1.msra.mxu0 0.0
      %992 = vmatprep.subr.mxu0 0.0
      %993 = vmatpush1.msra.mxu0 0.0
      %994 = vmatprep.subr.mxu0 0.0
      %995 = vmatpush1.msra.mxu0 0.0
      %996 = vmatprep.subr.mxu0 0.0
      %997 = vmatpush1.msra.mxu0 0.0
      %998 = vmatprep.subr.mxu0 0.0
      %999 = vmatpush1.msra.mxu0 0.0
      %1000 = vmatprep.subr.mxu0 0.0
      %1001 = vmatpush1.msra.mxu0 0.0
      %1002 = vmatprep.subr.mxu0 0.0
      %1003 = vmatpush1.msra.mxu0 0.0
      %1004 = vmatprep.subr.mxu0 0.0
      %1005 = vmatpush1.msra.mxu0 0.0
      %1006 = vmatprep.subr.mxu0 0.0
      %1007 = vmatpush1.msra.mxu0 0.0
      %1008 = vmatprep.subr.mxu0 0.0
      %1009 = vmatpush1.msra.mxu0 0.0
      %1010 = vmatprep.subr.mxu0 0.0
      %1011 = vmatpush1.msra.mxu0 0.0
      %1012 = vmatprep.subr.mxu0 0.0
      %1013 = vmatpush1.msra.mxu0 0.0
      %1014 = vmatprep.subr.mxu0 0.0
      %1015 = vmatpush1.msra.mxu0 0.0
      %1016 = vmatprep.subr.mxu0 0.0
      %1017 = vmatpush1.msra.mxu0 0.0
      %1018 = vmatprep.subr.mxu0 0.0
      %1019 = vmatpush1.msra.mxu0 0.0
      %1020 = vmatprep.mubr.f32.mxu0 0.0
      %1021 = vmatmul.mubr.f32.gmra.mrb[0].mxu0 %v877
      %v1022 = vpop.f32.mrb[0].mxu0
      %v1023 = vadd.f32 0.0, %v1022
      %v1024 = vpop.f32.mrb[0].mxu0
      %1025 = vdwg.mxu0
      %v1026 = vadd.f32 %v862, %v952
      %v1027 = vadd.f32 %v863, %v954
      %v1028 = vadd.f32 %v864, %v1023
      %s1029 = scalar_lea.vmem %s1, 40
      %v1030 = vld [vmem:[%s1029] sm:$0xff]
      %1031 = vrot.lane.b32.xlu0 %v209, 91
      %v1032 = vpop.permute.xlu0 %1031
      %1033 = vrot.lane.b32.xlu0 %v216, 91
      %v1034 = vpop.permute.xlu0 %1033
      %1035 = vrot.lane.b32.xlu0 %v210, 91
      %v1036 = vpop.permute.xlu0 %1035
      %vm1037 = vcmask 744448
      %v1038 = vsel %vm1037, %v1032, %v1034
      %v1039 = vsel %vm1037, %v1034, %v1036
      %v1041 = vsel %vm226, %v1030, 0
      %v1043 = vsel %vm230, %v1038, 0
      %v1045 = vsel %vm230, %v1039, 0
      %v1047 = vsel %vm230, %v1036, 0
      %1049 = vmatprep.subr.mxu0 %v1045
      %1050 = vmatpush1.msra.mxu0 %v1043
      %1051 = vmatprep.subr.mxu0 0.0
      %1052 = vmatpush1.msra.mxu0 0.0
      %1053 = vmatprep.subr.mxu0 0.0
      %1054 = vmatpush1.msra.mxu0 0.0
      %1055 = vmatprep.subr.mxu0 0.0
      %1056 = vmatpush1.msra.mxu0 0.0
      %1057 = vmatprep.subr.mxu0 0.0
      %1058 = vmatpush1.msra.mxu0 0.0
      %1059 = vmatprep.subr.mxu0 0.0
      %1060 = vmatpush1.msra.mxu0 0.0
      %1061 = vmatprep.subr.mxu0 0.0
      %1062 = vmatpush1.msra.mxu0 0.0
      %1063 = vmatprep.subr.mxu0 0.0
      %1064 = vmatpush1.msra.mxu0 0.0
      %1065 = vmatprep.subr.mxu0 0.0
      %1066 = vmatpush1.msra.mxu0 0.0
      %1067 = vmatprep.subr.mxu0 0.0
      %1068 = vmatpush1.msra.mxu0 0.0
      %1069 = vmatprep.subr.mxu0 0.0
      %1070 = vmatpush1.msra.mxu0 0.0
      %1071 = vmatprep.subr.mxu0 0.0
      %1072 = vmatpush1.msra.mxu0 0.0
      %1073 = vmatprep.subr.mxu0 0.0
      %1074 = vmatpush1.msra.mxu0 0.0
      %1075 = vmatprep.subr.mxu0 0.0
      %1076 = vmatpush1.msra.mxu0 0.0
      %1077 = vmatprep.subr.mxu0 0.0
      %1078 = vmatpush1.msra.mxu0 0.0
      %1079 = vmatprep.subr.mxu0 0.0
      %1080 = vmatpush1.msra.mxu0 0.0
      %1081 = vmatprep.subr.mxu0 0.0
      %1082 = vmatpush1.msra.mxu0 0.0
      %1083 = vmatprep.subr.mxu0 0.0
      %1084 = vmatpush1.msra.mxu0 0.0
      %1085 = vmatprep.subr.mxu0 0.0
      %1086 = vmatpush1.msra.mxu0 0.0
      %1087 = vmatprep.subr.mxu0 0.0
      %1088 = vmatpush1.msra.mxu0 0.0
      %1089 = vmatprep.subr.mxu0 0.0
      %1090 = vmatpush1.msra.mxu0 0.0
      %1091 = vmatprep.subr.mxu0 0.0
      %1092 = vmatpush1.msra.mxu0 0.0
      %1093 = vmatprep.subr.mxu0 0.0
      %1094 = vmatpush1.msra.mxu0 0.0
      %1095 = vmatprep.subr.mxu0 0.0
      %1096 = vmatpush1.msra.mxu0 0.0
      %1097 = vmatprep.subr.mxu0 0.0
      %1098 = vmatpush1.msra.mxu0 0.0
      %1099 = vmatprep.subr.mxu0 0.0
      %1100 = vmatpush1.msra.mxu0 0.0
      %1101 = vmatprep.subr.mxu0 0.0
      %1102 = vmatpush1.msra.mxu0 0.0
      %1103 = vmatprep.subr.mxu0 0.0
      %1104 = vmatpush1.msra.mxu0 0.0
      %1105 = vmatprep.subr.mxu0 0.0
      %1106 = vmatpush1.msra.mxu0 0.0
      %1107 = vmatprep.subr.mxu0 0.0
      %1108 = vmatpush1.msra.mxu0 0.0
      %1109 = vmatprep.subr.mxu0 0.0
      %1110 = vmatpush1.msra.mxu0 0.0
      %1111 = vmatprep.subr.mxu0 0.0
      %1112 = vmatpush1.msra.mxu0 0.0
      %1113 = vmatprep.mubr.f32.mxu0 0.0
      %1114 = vmatmul.mubr.f32.gmra.mrb[0].mxu0 %v1041
      %v1115 = vpop.f32.mrb[0].mxu0
      %v1116 = vadd.f32 0.0, %v1115
      %v1117 = vpop.f32.mrb[0].mxu0
      %v1118 = vadd.f32 0.0, %v1117
      %1119 = vdwg.mxu0
      %1120 = vmatprep.subr.mxu0 0.0
      %1121 = vmatpush1.msra.mxu0 %v1047
      %1122 = vmatprep.subr.mxu0 0.0
      %1123 = vmatpush1.msra.mxu0 0.0
      %1124 = vmatprep.subr.mxu0 0.0
      %1125 = vmatpush1.msra.mxu0 0.0
      %1126 = vmatprep.subr.mxu0 0.0
      %1127 = vmatpush1.msra.mxu0 0.0
      %1128 = vmatprep.subr.mxu0 0.0
      %1129 = vmatpush1.msra.mxu0 0.0
      %1130 = vmatprep.subr.mxu0 0.0
      %1131 = vmatpush1.msra.mxu0 0.0
      %1132 = vmatprep.subr.mxu0 0.0
      %1133 = vmatpush1.msra.mxu0 0.0
      %1134 = vmatprep.subr.mxu0 0.0
      %1135 = vmatpush1.msra.mxu0 0.0
      %1136 = vmatprep.subr.mxu0 0.0
      %1137 = vmatpush1.msra.mxu0 0.0
      %1138 = vmatprep.subr.mxu0 0.0
      %1139 = vmatpush1.msra.mxu0 0.0
      %1140 = vmatprep.subr.mxu0 0.0
      %1141 = vmatpush1.msra.mxu0 0.0
      %1142 = vmatprep.subr.mxu0 0.0
      %1143 = vmatpush1.msra.mxu0 0.0
      %1144 = vmatprep.subr.mxu0 0.0
      %1145 = vmatpush1.msra.mxu0 0.0
      %1146 = vmatprep.subr.mxu0 0.0
      %1147 = vmatpush1.msra.mxu0 0.0
      %1148 = vmatprep.subr.mxu0 0.0
      %1149 = vmatpush1.msra.mxu0 0.0
      %1150 = vmatprep.subr.mxu0 0.0
      %1151 = vmatpush1.msra.mxu0 0.0
      %1152 = vmatprep.subr.mxu0 0.0
      %1153 = vmatpush1.msra.mxu0 0.0
      %1154 = vmatprep.subr.mxu0 0.0
      %1155 = vmatpush1.msra.mxu0 0.0
      %1156 = vmatprep.subr.mxu0 0.0
      %1157 = vmatpush1.msra.mxu0 0.0
      %1158 = vmatprep.subr.mxu0 0.0
      %1159 = vmatpush1.msra.mxu0 0.0
      %1160 = vmatprep.subr.mxu0 0.0
      %1161 = vmatpush1.msra.mxu0 0.0
      %1162 = vmatprep.subr.mxu0 0.0
      %1163 = vmatpush1.msra.mxu0 0.0
      %1164 = vmatprep.subr.mxu0 0.0
      %1165 = vmatpush1.msra.mxu0 0.0
      %1166 = vmatprep.subr.mxu0 0.0
      %1167 = vmatpush1.msra.mxu0 0.0
      %1168 = vmatprep.subr.mxu0 0.0
      %1169 = vmatpush1.msra.mxu0 0.0
      %1170 = vmatprep.subr.mxu0 0.0
      %1171 = vmatpush1.msra.mxu0 0.0
      %1172 = vmatprep.subr.mxu0 0.0
      %1173 = vmatpush1.msra.mxu0 0.0
      %1174 = vmatprep.subr.mxu0 0.0
      %1175 = vmatpush1.msra.mxu0 0.0
      %1176 = vmatprep.subr.mxu0 0.0
      %1177 = vmatpush1.msra.mxu0 0.0
      %1178 = vmatprep.subr.mxu0 0.0
      %1179 = vmatpush1.msra.mxu0 0.0
      %1180 = vmatprep.subr.mxu0 0.0
      %1181 = vmatpush1.msra.mxu0 0.0
      %1182 = vmatprep.subr.mxu0 0.0
      %1183 = vmatpush1.msra.mxu0 0.0
      %1184 = vmatprep.mubr.f32.mxu0 0.0
      %1185 = vmatmul.mubr.f32.gmra.mrb[0].mxu0 %v1041
      %v1186 = vpop.f32.mrb[0].mxu0
      %v1187 = vadd.f32 0.0, %v1186
      %v1188 = vpop.f32.mrb[0].mxu0
      %1189 = vdwg.mxu0
      %v1190 = vadd.f32 %v1026, %v1116
      %v1191 = vadd.f32 %v1027, %v1118
      %v1192 = vadd.f32 %v1028, %v1187
      %s1193 = scalar_lea.vmem %s1, 48
      %v1194 = vld [vmem:[%s1193] sm:$0xff]
      %1195 = vrot.lane.b32.xlu0 %v209, 75
      %v1196 = vpop.permute.xlu0 %1195
      %1197 = vrot.lane.b32.xlu0 %v216, 75
      %v1198 = vpop.permute.xlu0 %1197
      %1199 = vrot.lane.b32.xlu0 %v210, 75
      %v1200 = vpop.permute.xlu0 %1199
      %vm1201 = vcmask 613376
      %v1202 = vsel %vm1201, %v1196, %v1198
      %v1203 = vsel %vm1201, %v1198, %v1200
      %v1205 = vsel %vm226, %v1194, 0
      %v1207 = vsel %vm230, %v1202, 0
      %v1209 = vsel %vm230, %v1203, 0
      %v1211 = vsel %vm230, %v1200, 0
      %1213 = vmatprep.subr.mxu0 %v1209
      %1214 = vmatpush1.msra.mxu0 %v1207
      %1215 = vmatprep.subr.mxu0 0.0
      %1216 = vmatpush1.msra.mxu0 0.0
      %1217 = vmatprep.subr.mxu0 0.0
      %1218 = vmatpush1.msra.mxu0 0.0
      %1219 = vmatprep.subr.mxu0 0.0
      %1220 = vmatpush1.msra.mxu0 0.0
      %1221 = vmatprep.subr.mxu0 0.0
      %1222 = vmatpush1.msra.mxu0 0.0
      %1223 = vmatprep.subr.mxu0 0.0
      %1224 = vmatpush1.msra.mxu0 0.0
      %1225 = vmatprep.subr.mxu0 0.0
      %1226 = vmatpush1.msra.mxu0 0.0
      %1227 = vmatprep.subr.mxu0 0.0
      %1228 = vmatpush1.msra.mxu0 0.0
      %1229 = vmatprep.subr.mxu0 0.0
      %1230 = vmatpush1.msra.mxu0 0.0
      %1231 = vmatprep.subr.mxu0 0.0
      %1232 = vmatpush1.msra.mxu0 0.0
      %1233 = vmatprep.subr.mxu0 0.0
      %1234 = vmatpush1.msra.mxu0 0.0
      %1235 = vmatprep.subr.mxu0 0.0
      %1236 = vmatpush1.msra.mxu0 0.0
      %1237 = vmatprep.subr.mxu0 0.0
      %1238 = vmatpush1.msra.mxu0 0.0
      %1239 = vmatprep.subr.mxu0 0.0
      %1240 = vmatpush1.msra.mxu0 0.0
      %1241 = vmatprep.subr.mxu0 0.0
      %1242 = vmatpush1.msra.mxu0 0.0
      %1243 = vmatprep.subr.mxu0 0.0
      %1244 = vmatpush1.msra.mxu0 0.0
      %1245 = vmatprep.subr.mxu0 0.0
      %1246 = vmatpush1.msra.mxu0 0.0
      %1247 = vmatprep.subr.mxu0 0.0
      %1248 = vmatpush1.msra.mxu0 0.0
      %1249 = vmatprep.subr.mxu0 0.0
      %1250 = vmatpush1.msra.mxu0 0.0
      %1251 = vmatprep.subr.mxu0 0.0
      %1252 = vmatpush1.msra.mxu0 0.0
      %1253 = vmatprep.subr.mxu0 0.0
      %1254 = vmatpush1.msra.mxu0 0.0
      %1255 = vmatprep.subr.mxu0 0.0
      %1256 = vmatpush1.msra.mxu0 0.0
      %1257 = vmatprep.subr.mxu0 0.0
      %1258 = vmatpush1.msra.mxu0 0.0
      %1259 = vmatprep.subr.mxu0 0.0
      %1260 = vmatpush1.msra.mxu0 0.0
      %1261 = vmatprep.subr.mxu0 0.0
      %1262 = vmatpush1.msra.mxu0 0.0
      %1263 = vmatprep.subr.mxu0 0.0
      %1264 = vmatpush1.msra.mxu0 0.0
      %1265 = vmatprep.subr.mxu0 0.0
      %1266 = vmatpush1.msra.mxu0 0.0
      %1267 = vmatprep.subr.mxu0 0.0
      %1268 = vmatpush1.msra.mxu0 0.0
      %1269 = vmatprep.subr.mxu0 0.0
      %1270 = vmatpush1.msra.mxu0 0.0
      %1271 = vmatprep.subr.mxu0 0.0
      %1272 = vmatpush1.msra.mxu0 0.0
      %1273 = vmatprep.subr.mxu0 0.0
      %1274 = vmatpush1.msra.mxu0 0.0
      %1275 = vmatprep.subr.mxu0 0.0
      %1276 = vmatpush1.msra.mxu0 0.0
      %1277 = vmatprep.mubr.f32.mxu0 0.0
      %1278 = vmatmul.mubr.f32.gmra.mrb[0].mxu0 %v1205
      %v1279 = vpop.f32.mrb[0].mxu0
      %v1280 = vadd.f32 0.0, %v1279
      %v1281 = vpop.f32.mrb[0].mxu0
      %v1282 = vadd.f32 0.0, %v1281
      %1283 = vdwg.mxu0
      %1284 = vmatprep.subr.mxu0 0.0
      %1285 = vmatpush1.msra.mxu0 %v1211
      %1286 = vmatprep.subr.mxu0 0.0
      %1287 = vmatpush1.msra.mxu0 0.0
      %1288 = vmatprep.subr.mxu0 0.0
      %1289 = vmatpush1.msra.mxu0 0.0
      %1290 = vmatprep.subr.mxu0 0.0
      %1291 = vmatpush1.msra.mxu0 0.0
      %1292 = vmatprep.subr.mxu0 0.0
      %1293 = vmatpush1.msra.mxu0 0.0
      %1294 = vmatprep.subr.mxu0 0.0
      %1295 = vmatpush1.msra.mxu0 0.0
      %1296 = vmatprep.subr.mxu0 0.0
      %1297 = vmatpush1.msra.mxu0 0.0
      %1298 = vmatprep.subr.mxu0 0.0
      %1299 = vmatpush1.msra.mxu0 0.0
      %1300 = vmatprep.subr.mxu0 0.0
      %1301 = vmatpush1.msra.mxu0 0.0
      %1302 = vmatprep.subr.mxu0 0.0
      %1303 = vmatpush1.msra.mxu0 0.0
      %1304 = vmatprep.subr.mxu0 0.0
      %1305 = vmatpush1.msra.mxu0 0.0
      %1306 = vmatprep.subr.mxu0 0.0
      %1307 = vmatpush1.msra.mxu0 0.0
      %1308 = vmatprep.subr.mxu0 0.0
      %1309 = vmatpush1.msra.mxu0 0.0
      %1310 = vmatprep.subr.mxu0 0.0
      %1311 = vmatpush1.msra.mxu0 0.0
      %1312 = vmatprep.subr.mxu0 0.0
      %1313 = vmatpush1.msra.mxu0 0.0
      %1314 = vmatprep.subr.mxu0 0.0
      %1315 = vmatpush1.msra.mxu0 0.0
      %1316 = vmatprep.subr.mxu0 0.0
      %1317 = vmatpush1.msra.mxu0 0.0
      %1318 = vmatprep.subr.mxu0 0.0
      %1319 = vmatpush1.msra.mxu0 0.0
      %1320 = vmatprep.subr.mxu0 0.0
      %1321 = vmatpush1.msra.mxu0 0.0
      %1322 = vmatprep.subr.mxu0 0.0
      %1323 = vmatpush1.msra.mxu0 0.0
      %1324 = vmatprep.subr.mxu0 0.0
      %1325 = vmatpush1.msra.mxu0 0.0
      %1326 = vmatprep.subr.mxu0 0.0
      %1327 = vmatpush1.msra.mxu0 0.0
      %1328 = vmatprep.subr.mxu0 0.0
      %1329 = vmatpush1.msra.mxu0 0.0
      %1330 = vmatprep.subr.mxu0 0.0
      %1331 = vmatpush1.msra.mxu0 0.0
      %1332 = vmatprep.subr.mxu0 0.0
      %1333 = vmatpush1.msra.mxu0 0.0
      %1334 = vmatprep.subr.mxu0 0.0
      %1335 = vmatpush1.msra.mxu0 0.0
      %1336 = vmatprep.subr.mxu0 0.0
      %1337 = vmatpush1.msra.mxu0 0.0
      %1338 = vmatprep.subr.mxu0 0.0
      %1339 = vmatpush1.msra.mxu0 0.0
      %1340 = vmatprep.subr.mxu0 0.0
      %1341 = vmatpush1.msra.mxu0 0.0
      %1342 = vmatprep.subr.mxu0 0.0
      %1343 = vmatpush1.msra.mxu0 0.0
      %1344 = vmatprep.subr.mxu0 0.0
      %1345 = vmatpush1.msra.mxu0 0.0
      %1346 = vmatprep.subr.mxu0 0.0
      %1347 = vmatpush1.msra.mxu0 0.0
      %1348 = vmatprep.mubr.f32.mxu0 0.0
      %1349 = vmatmul.mubr.f32.gmra.mrb[0].mxu0 %v1205
      %v1350 = vpop.f32.mrb[0].mxu0
      %v1351 = vadd.f32 0.0, %v1350
      %v1352 = vpop.f32.mrb[0].mxu0
      %1353 = vdwg.mxu0
      %v1354 = vadd.f32 %v1190, %v1280
      %v1355 = vadd.f32 %v1191, %v1282
      %v1356 = vadd.f32 %v1192, %v1351
      %s1357 = scalar_lea.vmem %s1, 56
      %v1358 = vld [vmem:[%s1357] sm:$0xff]
      %1359 = vrot.lane.b32.xlu0 %v209, 74
      %v1360 = vpop.permute.xlu0 %1359
      %1361 = vrot.lane.b32.xlu0 %v216, 74
      %v1362 = vpop.permute.xlu0 %1361
      %1363 = vrot.lane.b32.xlu0 %v210, 74
      %v1364 = vpop.permute.xlu0 %1363
      %vm1365 = vcmask 605184
      %v1366 = vsel %vm1365, %v1360, %v1362
      %v1367 = vsel %vm1365, %v1362, %v1364
      %v1369 = vsel %vm226, %v1358, 0
      %v1371 = vsel %vm230, %v1366, 0
      %v1373 = vsel %vm230, %v1367, 0
      %v1375 = vsel %vm230, %v1364, 0
      %1377 = vmatprep.subr.mxu0 %v1373
      %1378 = vmatpush1.msra.mxu0 %v1371
      %1379 = vmatprep.subr.mxu0 0.0
      %1380 = vmatpush1.msra.mxu0 0.0
      %1381 = vmatprep.subr.mxu0 0.0
      %1382 = vmatpush1.msra.mxu0 0.0
      %1383 = vmatprep.subr.mxu0 0.0
      %1384 = vmatpush1.msra.mxu0 0.0
      %1385 = vmatprep.subr.mxu0 0.0
      %1386 = vmatpush1.msra.mxu0 0.0
      %1387 = vmatprep.subr.mxu0 0.0
      %1388 = vmatpush1.msra.mxu0 0.0
      %1389 = vmatprep.subr.mxu0 0.0
      %1390 = vmatpush1.msra.mxu0 0.0
      %1391 = vmatprep.subr.mxu0 0.0
      %1392 = vmatpush1.msra.mxu0 0.0
      %1393 = vmatprep.subr.mxu0 0.0
      %1394 = vmatpush1.msra.mxu0 0.0
      %1395 = vmatprep.subr.mxu0 0.0
      %1396 = vmatpush1.msra.mxu0 0.0
      %1397 = vmatprep.subr.mxu0 0.0
      %1398 = vmatpush1.msra.mxu0 0.0
      %1399 = vmatprep.subr.mxu0 0.0
      %1400 = vmatpush1.msra.mxu0 0.0
      %1401 = vmatprep.subr.mxu0 0.0
      %1402 = vmatpush1.msra.mxu0 0.0
      %1403 = vmatprep.subr.mxu0 0.0
      %1404 = vmatpush1.msra.mxu0 0.0
      %1405 = vmatprep.subr.mxu0 0.0
      %1406 = vmatpush1.msra.mxu0 0.0
      %1407 = vmatprep.subr.mxu0 0.0
      %1408 = vmatpush1.msra.mxu0 0.0
      %1409 = vmatprep.subr.mxu0 0.0
      %1410 = vmatpush1.msra.mxu0 0.0
      %1411 = vmatprep.subr.mxu0 0.0
      %1412 = vmatpush1.msra.mxu0 0.0
      %1413 = vmatprep.subr.mxu0 0.0
      %1414 = vmatpush1.msra.mxu0 0.0
      %1415 = vmatprep.subr.mxu0 0.0
      %1416 = vmatpush1.msra.mxu0 0.0
      %1417 = vmatprep.subr.mxu0 0.0
      %1418 = vmatpush1.msra.mxu0 0.0
      %1419 = vmatprep.subr.mxu0 0.0
      %1420 = vmatpush1.msra.mxu0 0.0
      %1421 = vmatprep.subr.mxu0 0.0
      %1422 = vmatpush1.msra.mxu0 0.0
      %1423 = vmatprep.subr.mxu0 0.0
      %1424 = vmatpush1.msra.mxu0 0.0
      %1425 = vmatprep.subr.mxu0 0.0
      %1426 = vmatpush1.msra.mxu0 0.0
      %1427 = vmatprep.subr.mxu0 0.0
      %1428 = vmatpush1.msra.mxu0 0.0
      %1429 = vmatprep.subr.mxu0 0.0
      %1430 = vmatpush1.msra.mxu0 0.0
      %1431 = vmatprep.subr.mxu0 0.0
      %1432 = vmatpush1.msra.mxu0 0.0
      %1433 = vmatprep.subr.mxu0 0.0
      %1434 = vmatpush1.msra.mxu0 0.0
      %1435 = vmatprep.subr.mxu0 0.0
      %1436 = vmatpush1.msra.mxu0 0.0
      %1437 = vmatprep.subr.mxu0 0.0
      %1438 = vmatpush1.msra.mxu0 0.0
      %1439 = vmatprep.subr.mxu0 0.0
      %1440 = vmatpush1.msra.mxu0 0.0
      %1441 = vmatprep.mubr.f32.mxu0 0.0
      %1442 = vmatmul.mubr.f32.gmra.mrb[0].mxu0 %v1369
      %v1443 = vpop.f32.mrb[0].mxu0
      %v1444 = vadd.f32 0.0, %v1443
      %v1445 = vpop.f32.mrb[0].mxu0
      %v1446 = vadd.f32 0.0, %v1445
      %1447 = vdwg.mxu0
      %1448 = vmatprep.subr.mxu0 0.0
      %1449 = vmatpush1.msra.mxu0 %v1375
      %1450 = vmatprep.subr.mxu0 0.0
      %1451 = vmatpush1.msra.mxu0 0.0
      %1452 = vmatprep.subr.mxu0 0.0
      %1453 = vmatpush1.msra.mxu0 0.0
      %1454 = vmatprep.subr.mxu0 0.0
      %1455 = vmatpush1.msra.mxu0 0.0
      %1456 = vmatprep.subr.mxu0 0.0
      %1457 = vmatpush1.msra.mxu0 0.0
      %1458 = vmatprep.subr.mxu0 0.0
      %1459 = vmatpush1.msra.mxu0 0.0
      %1460 = vmatprep.subr.mxu0 0.0
      %1461 = vmatpush1.msra.mxu0 0.0
      %1462 = vmatprep.subr.mxu0 0.0
      %1463 = vmatpush1.msra.mxu0 0.0
      %1464 = vmatprep.subr.mxu0 0.0
      %1465 = vmatpush1.msra.mxu0 0.0
      %1466 = vmatprep.subr.mxu0 0.0
      %1467 = vmatpush1.msra.mxu0 0.0
      %1468 = vmatprep.subr.mxu0 0.0
      %1469 = vmatpush1.msra.mxu0 0.0
      %1470 = vmatprep.subr.mxu0 0.0
      %1471 = vmatpush1.msra.mxu0 0.0
      %1472 = vmatprep.subr.mxu0 0.0
      %1473 = vmatpush1.msra.mxu0 0.0
      %1474 = vmatprep.subr.mxu0 0.0
      %1475 = vmatpush1.msra.mxu0 0.0
      %1476 = vmatprep.subr.mxu0 0.0
      %1477 = vmatpush1.msra.mxu0 0.0
      %1478 = vmatprep.subr.mxu0 0.0
      %1479 = vmatpush1.msra.mxu0 0.0
      %1480 = vmatprep.subr.mxu0 0.0
      %1481 = vmatpush1.msra.mxu0 0.0
      %1482 = vmatprep.subr.mxu0 0.0
      %1483 = vmatpush1.msra.mxu0 0.0
      %1484 = vmatprep.subr.mxu0 0.0
      %1485 = vmatpush1.msra.mxu0 0.0
      %1486 = vmatprep.subr.mxu0 0.0
      %1487 = vmatpush1.msra.mxu0 0.0
      %1488 = vmatprep.subr.mxu0 0.0
      %1489 = vmatpush1.msra.mxu0 0.0
      %1490 = vmatprep.subr.mxu0 0.0
      %1491 = vmatpush1.msra.mxu0 0.0
      %1492 = vmatprep.subr.mxu0 0.0
      %1493 = vmatpush1.msra.mxu0 0.0
      %1494 = vmatprep.subr.mxu0 0.0
      %1495 = vmatpush1.msra.mxu0 0.0
      %1496 = vmatprep.subr.mxu0 0.0
      %1497 = vmatpush1.msra.mxu0 0.0
      %1498 = vmatprep.subr.mxu0 0.0
      %1499 = vmatpush1.msra.mxu0 0.0
      %1500 = vmatprep.subr.mxu0 0.0
      %1501 = vmatpush1.msra.mxu0 0.0
      %1502 = vmatprep.subr.mxu0 0.0
      %1503 = vmatpush1.msra.mxu0 0.0
      %1504 = vmatprep.subr.mxu0 0.0
      %1505 = vmatpush1.msra.mxu0 0.0
      %1506 = vmatprep.subr.mxu0 0.0
      %1507 = vmatpush1.msra.mxu0 0.0
      %1508 = vmatprep.subr.mxu0 0.0
      %1509 = vmatpush1.msra.mxu0 0.0
      %1510 = vmatprep.subr.mxu0 0.0
      %1511 = vmatpush1.msra.mxu0 0.0
      %1512 = vmatprep.mubr.f32.mxu0 0.0
      %1513 = vmatmul.mubr.f32.gmra.mrb[0].mxu0 %v1369
      %v1514 = vpop.f32.mrb[0].mxu0
      %v1515 = vadd.f32 0.0, %v1514
      %v1516 = vpop.f32.mrb[0].mxu0
      %1517 = vdwg.mxu0
      %v1518 = vadd.f32 %v1354, %v1444
      %v1519 = vadd.f32 %v1355, %v1446
      %v1520 = vadd.f32 %v1356, %v1515
      %s1521 = scalar_lea.vmem %s1, 64
      %v1522 = vld [vmem:[%s1521] sm:$0xff]
      %1523 = vrot.lane.b32.xlu0 %v209, 73
      %v1524 = vpop.permute.xlu0 %1523
      %1525 = vrot.lane.b32.xlu0 %v216, 73
      %v1526 = vpop.permute.xlu0 %1525
      %1527 = vrot.lane.b32.xlu0 %v210, 73
      %v1528 = vpop.permute.xlu0 %1527
      %vm1529 = vcmask 596992
      %v1530 = vsel %vm1529, %v1524, %v1526
      %v1531 = vsel %vm1529, %v1526, %v1528
      %v1533 = vsel %vm226, %v1522, 0
      %v1535 = vsel %vm230, %v1530, 0
      %v1537 = vsel %vm230, %v1531, 0
      %v1539 = vsel %vm230, %v1528, 0
      %1541 = vmatprep.subr.mxu0 %v1537
      %1542 = vmatpush1.msra.mxu0 %v1535
      %1543 = vmatprep.subr.mxu0 0.0
      %1544 = vmatpush1.msra.mxu0 0.0
      %1545 = vmatprep.subr.mxu0 0.0
      %1546 = vmatpush1.msra.mxu0 0.0
      %1547 = vmatprep.subr.mxu0 0.0
      %1548 = vmatpush1.msra.mxu0 0.0
      %1549 = vmatprep.subr.mxu0 0.0
      %1550 = vmatpush1.msra.mxu0 0.0
      %1551 = vmatprep.subr.mxu0 0.0
      %1552 = vmatpush1.msra.mxu0 0.0
      %1553 = vmatprep.subr.mxu0 0.0
      %1554 = vmatpush1.msra.mxu0 0.0
      %1555 = vmatprep.subr.mxu0 0.0
      %1556 = vmatpush1.msra.mxu0 0.0
      %1557 = vmatprep.subr.mxu0 0.0
      %1558 = vmatpush1.msra.mxu0 0.0
      %1559 = vmatprep.subr.mxu0 0.0
      %1560 = vmatpush1.msra.mxu0 0.0
      %1561 = vmatprep.subr.mxu0 0.0
      %1562 = vmatpush1.msra.mxu0 0.0
      %1563 = vmatprep.subr.mxu0 0.0
      %1564 = vmatpush1.msra.mxu0 0.0
      %1565 = vmatprep.subr.mxu0 0.0
      %1566 = vmatpush1.msra.mxu0 0.0
      %1567 = vmatprep.subr.mxu0 0.0
      %1568 = vmatpush1.msra.mxu0 0.0
      %1569 = vmatprep.subr.mxu0 0.0
      %1570 = vmatpush1.msra.mxu0 0.0
      %1571 = vmatprep.subr.mxu0 0.0
      %1572 = vmatpush1.msra.mxu0 0.0
      %1573 = vmatprep.subr.mxu0 0.0
      %1574 = vmatpush1.msra.mxu0 0.0
      %1575 = vmatprep.subr.mxu0 0.0
      %1576 = vmatpush1.msra.mxu0 0.0
      %1577 = vmatprep.subr.mxu0 0.0
      %1578 = vmatpush1.msra.mxu0 0.0
      %1579 = vmatprep.subr.mxu0 0.0
      %1580 = vmatpush1.msra.mxu0 0.0
      %1581 = vmatprep.subr.mxu0 0.0
      %1582 = vmatpush1.msra.mxu0 0.0
      %1583 = vmatprep.subr.mxu0 0.0
      %1584 = vmatpush1.msra.mxu0 0.0
      %1585 = vmatprep.subr.mxu0 0.0
      %1586 = vmatpush1.msra.mxu0 0.0
      %1587 = vmatprep.subr.mxu0 0.0
      %1588 = vmatpush1.msra.mxu0 0.0
      %1589 = vmatprep.subr.mxu0 0.0
      %1590 = vmatpush1.msra.mxu0 0.0
      %1591 = vmatprep.subr.mxu0 0.0
      %1592 = vmatpush1.msra.mxu0 0.0
      %1593 = vmatprep.subr.mxu0 0.0
      %1594 = vmatpush1.msra.mxu0 0.0
      %1595 = vmatprep.subr.mxu0 0.0
      %1596 = vmatpush1.msra.mxu0 0.0
      %1597 = vmatprep.subr.mxu0 0.0
      %1598 = vmatpush1.msra.mxu0 0.0
      %1599 = vmatprep.subr.mxu0 0.0
      %1600 = vmatpush1.msra.mxu0 0.0
      %1601 = vmatprep.subr.mxu0 0.0
      %1602 = vmatpush1.msra.mxu0 0.0
      %1603 = vmatprep.subr.mxu0 0.0
      %1604 = vmatpush1.msra.mxu0 0.0
      %1605 = vmatprep.mubr.f32.mxu0 0.0
      %1606 = vmatmul.mubr.f32.gmra.mrb[0].mxu0 %v1533
      %v1607 = vpop.f32.mrb[0].mxu0
      %v1608 = vadd.f32 0.0, %v1607
      %v1609 = vpop.f32.mrb[0].mxu0
      %v1610 = vadd.f32 0.0, %v1609
      %1611 = vdwg.mxu0
      %1612 = vmatprep.subr.mxu0 0.0
      %1613 = vmatpush1.msra.mxu0 %v1539
      %1614 = vmatprep.subr.mxu0 0.0
      %1615 = vmatpush1.msra.mxu0 0.0
      %1616 = vmatprep.subr.mxu0 0.0
      %1617 = vmatpush1.msra.mxu0 0.0
      %1618 = vmatprep.subr.mxu0 0.0
      %1619 = vmatpush1.msra.mxu0 0.0
      %1620 = vmatprep.subr.mxu0 0.0
      %1621 = vmatpush1.msra.mxu0 0.0
      %1622 = vmatprep.subr.mxu0 0.0
      %1623 = vmatpush1.msra.mxu0 0.0
      %1624 = vmatprep.subr.mxu0 0.0
      %1625 = vmatpush1.msra.mxu0 0.0
      %1626 = vmatprep.subr.mxu0 0.0
      %1627 = vmatpush1.msra.mxu0 0.0
      %1628 = vmatprep.subr.mxu0 0.0
      %1629 = vmatpush1.msra.mxu0 0.0
      %1630 = vmatprep.subr.mxu0 0.0
      %1631 = vmatpush1.msra.mxu0 0.0
      %1632 = vmatprep.subr.mxu0 0.0
      %1633 = vmatpush1.msra.mxu0 0.0
      %1634 = vmatprep.subr.mxu0 0.0
      %1635 = vmatpush1.msra.mxu0 0.0
      %1636 = vmatprep.subr.mxu0 0.0
      %1637 = vmatpush1.msra.mxu0 0.0
      %1638 = vmatprep.subr.mxu0 0.0
      %1639 = vmatpush1.msra.mxu0 0.0
      %1640 = vmatprep.subr.mxu0 0.0
      %1641 = vmatpush1.msra.mxu0 0.0
      %1642 = vmatprep.subr.mxu0 0.0
      %1643 = vmatpush1.msra.mxu0 0.0
      %1644 = vmatprep.subr.mxu0 0.0
      %1645 = vmatpush1.msra.mxu0 0.0
      %1646 = vmatprep.subr.mxu0 0.0
      %1647 = vmatpush1.msra.mxu0 0.0
      %1648 = vmatprep.subr.mxu0 0.0
      %1649 = vmatpush1.msra.mxu0 0.0
      %1650 = vmatprep.subr.mxu0 0.0
      %1651 = vmatpush1.msra.mxu0 0.0
      %1652 = vmatprep.subr.mxu0 0.0
      %1653 = vmatpush1.msra.mxu0 0.0
      %1654 = vmatprep.subr.mxu0 0.0
      %1655 = vmatpush1.msra.mxu0 0.0
      %1656 = vmatprep.subr.mxu0 0.0
      %1657 = vmatpush1.msra.mxu0 0.0
      %1658 = vmatprep.subr.mxu0 0.0
      %1659 = vmatpush1.msra.mxu0 0.0
      %1660 = vmatprep.subr.mxu0 0.0
      %1661 = vmatpush1.msra.mxu0 0.0
      %1662 = vmatprep.subr.mxu0 0.0
      %1663 = vmatpush1.msra.mxu0 0.0
      %1664 = vmatprep.subr.mxu0 0.0
      %1665 = vmatpush1.msra.mxu0 0.0
      %1666 = vmatprep.subr.mxu0 0.0
      %1667 = vmatpush1.msra.mxu0 0.0
      %1668 = vmatprep.subr.mxu0 0.0
      %1669 = vmatpush1.msra.mxu0 0.0
      %1670 = vmatprep.subr.mxu0 0.0
      %1671 = vmatpush1.msra.mxu0 0.0
      %1672 = vmatprep.subr.mxu0 0.0
      %1673 = vmatpush1.msra.mxu0 0.0
      %1674 = vmatprep.subr.mxu0 0.0
      %1675 = vmatpush1.msra.mxu0 0.0
      %1676 = vmatprep.mubr.f32.mxu0 0.0
      %1677 = vmatmul.mubr.f32.gmra.mrb[0].mxu0 %v1533
      %v1678 = vpop.f32.mrb[0].mxu0
      %v1679 = vadd.f32 0.0, %v1678
      %v1680 = vpop.f32.mrb[0].mxu0
      %1681 = vdwg.mxu0
      %v1682 = vadd.f32 %v1518, %v1608
      %v1683 = vadd.f32 %v1519, %v1610
      %v1684 = vadd.f32 %v1520, %v1679
      %v1685 = vld [vmem:[%s2] sm:$0x7]
      %v1687 = vlaneseq
      %v1688 = vshrl.u32 %v1687, 7
      %v1689 = vsub.s32 0, %v1688
      %v1690 = vrot.slane %v1685, %v1689
      %v1691 = vlaneseq
      %v1692 = vshrl.u32 %v1691, 7
      %v1693 = vsub.s32 1, %v1692
      %v1694 = vrot.slane %v1685, %v1693
      %v1695 = vlaneseq
      %v1696 = vshrl.u32 %v1695, 7
      %v1697 = vsub.s32 2, %v1696
      %v1698 = vrot.slane %v1685, %v1697
      %v1702 = vmul.f32 %v1682, %v1690
      %v1703 = vmul.f32 %v1683, %v1694
      %v1704 = vmul.f32 %v1684, %v1698
      %1705 = vst [vmem:[%s204] sm:$0xff] %v1702
      %1706 = vst [vmem:[%s204 + $0x8] sm:$0xff] %v1703
      %vm1707 = vcmask 261120
      %1708 = vst.msk [vmem:[%s204 + $0x10] sm:$0xff] %vm1707, %v1704
      %v1709 = vadd.f32 %v1702, %v1703
      %v1710 = vsel %vm1707, %v1704, 0.0
      %v1711 = vadd.f32 %v1709, %v1710
      %1712 = vadd.xlane.f32.xlu0 %v1711
      %v1713 = vpop.xlane.xlu0 %1712
      %vm1714 = vcmask 7168
      %1715 = vst.msk [vmem:[%s208] sm:$0xff] %vm1714, %v1713
      %v1716 = vmul.f32 %v1702, %v1702
      %v1717 = vmul.f32 %v1703, %v1703
      %v1718 = vmul.f32 %v1704, %v1704
      %v1719 = vadd.f32 %v1716, %v1717
      %v1720 = vsel %vm1707, %v1718, 0.0
      %v1721 = vadd.f32 %v1719, %v1720
      %1722 = vadd.xlane.f32.xlu0 %v1721
      %v1723 = vpop.xlane.xlu0 %1722
      %vm1724 = vcmask 15368
      %1725 = vst.msk [vmem:[%s208] sm:$0xff] %vm1724, %v1723
      %p1726 = scmp.lt.s32.totalorder %s16, 1
      %s1727 = scalar_select %p1726, %s16, 1
      %s1728 = smul.addr %s1727, 3
      %s1729 = smul.addr %s1728, 8
      %s1730 = scalar_lea.vmem %s3, %s1729
      %p1731 = scmp.lt.s32.totalorder %s16, 1
      %s1732 = scalar_select %p1731, %s16, 1
      %s1733 = smul.addr %s1732, 8
      %s1734 = scalar_lea.vmem %s4, %s1733
      // Predicated region
      $region33: #{conv_block_forward.3} parent=31 // pred_check
        %p1735 = pneg %p102
      $region34: #{conv_block_forward.3} parent=31 // pred_check_branch
        %1737 = sbr.rel (%p1735) target = $region36
      $region35: #{conv_block_forward.3} parent=31 // pred_region
        _
      $region36: #{conv_block_forward.3} parent=31 // pred_fallthru
        _
      // Predicated region
      $region37: #{conv_block_forward.3} parent=31 // pred_check
        %p1738 = pneg %p128
      $region38: #{conv_block_forward.3} parent=31 // pred_check_branch
        %1740 = sbr.rel (%p1738) target = $region40
      $region39: #{conv_block_forward.3} parent=31 // pred_region
        _
      $region40: #{conv_block_forward.3} parent=31 // pred_fallthru
        _
    $region32: #{conv_block_forward.3} parent=5 // pred_fallthru
      _
    %p1741 = scmp.le.s32.totalorder 2, %s11
    // Predicated region
    $region41: #{conv_block_forward.3} parent=5 // pred_check
      %p1742 = pneg %p1741
    $region42: #{conv_block_forward.3} parent=5 // pred_check_branch
      %1744 = sbr.rel (%p1742) target = $region44
    $region43: #{conv_block_forward.3} parent=5 // pred_region
      %s1745 = ssub.s32 %s11, 2
      // Predicated region
      $region45: #{conv_block_forward.3} parent=43 // pred_check
        %p1746 = pneg %p108
      $region46: #{conv_block_forward.3} parent=43 // pred_check_branch
        %1748 = sbr.rel (%p1746) target = $region48
      $region47: #{conv_block_forward.3} parent=43 // pred_region
        %p1749 = scmp.lt.s32.totalorder %s17, 1
        %s1750 = scalar_select %p1749, %s17, 1
        %s1751 = smul.addr %s1750, 3
        %s1752 = smul.addr %s1751, 8
        %s1753 = scalar_lea.vmem %s3, %s1752
      $region48: #{conv_block_forward.3} parent=43 // pred_fallthru
        _
      // Predicated region
      $region49: #{conv_block_forward.3} parent=43 // pred_check
        %p1754 = pneg %p134
      $region50: #{conv_block_forward.3} parent=43 // pred_check_branch
        %1756 = sbr.rel (%p1754) target = $region52
      $region51: #{conv_block_forward.3} parent=43 // pred_region
        %p1757 = scmp.lt.s32.totalorder %s17, 1
        %s1758 = scalar_select %p1757, %s17, 1
        %s1759 = smul.addr %s1758, 8
        %s1760 = scalar_lea.vmem %s4, %s1759
      $region52: #{conv_block_forward.3} parent=43 // pred_fallthru
        _
    $region44: #{conv_block_forward.3} parent=5 // pred_fallthru
      _
  $region6: #{conv_block_forward.3} parent=0 // loop_footer
    %s15 = sadd.s32 1, %s11
  $region7: #{conv_block_forward.3} parent=0 // loop_footer_branch
    %10 = sbr.rel target = $region3
  $region8: #{conv_block_forward.3} parent=0 // loop_exit
    _

// kernel: conv_block_forward.4
$region0: #{conv_block_forward.4}
  #allocation0 [shape = 'u32[]', space=smem, size = 0x4, offset = 0x4, fixed_abs, tag = 'smem constant byte address 0x4 - core index']
  #allocation1 [shape = 'u32[144,128]{1,0:T(1,128)}', space=vmem, size = 0x12000, scoped, tag = 'internal scratch']
  %s0 = inlined_call_operand.vmem [shape: f32[2,8,360], index: 0, kind: input, shape index: {}]
  %s1 = inlined_call_operand.vmem [shape: f32[9,8,8], index: 1, kind: input, shape index: {}]
  %s2 = inlined_call_operand.vmem [shape: f32[1,288], index: 2, kind: input, shape index: {}]
  %s3 = inlined_call_operand.vmem [shape: f32[1,360], index: 3, kind: input, shape index: {}]
  %s4 = inlined_call_operand.vmem [shape: f32[8,1], index: 4, kind: input, shape index: {}]
  %s5 = inlined_call_operand.vmem [shape: f32[8,1], index: 5, kind: input, shape index: {}]
  %s6 = inlined_call_operand.vmem [shape: f32[2,8,288], index: 6, kind: output, shape index: {0}]
  %s7 = inlined_call_operand.vmem [shape: f32[2,8,2], index: 7, kind: output, shape index: {1}]
  %8 = xla_tuple %s6, %s7
  %s9 = sld [smem:[#allocation0]]
  $region65: #{conv_block_forward.4} parent=0
    _
  %s11 = ssub.s32 1, %s9
  %s12 = scalar_select 0, %s11, %s9
  loop: start=0, step=1, limit=4
  $region2: #{conv_block_forward.4} parent=0 // loop_pre_header
    _
  $region3: #{conv_block_forward.4} parent=0 // loop_header
    %s14 = sphi 0, %s18
    %p15 = scmp.ge.s32.totalorder %s14, 4
    %s24 = sphi 0, %s26
    %s27 = sphi 0, %s24
    %s28 = sphi 0, %s27
    %s44 = sphi 0, %s28
    %s48 = sphi 0, %s48
    %s50 = sphi 0, %s48
    %s51 = sphi 0, %s50
    %s65 = sphi 0, %s51
    %s69 = sphi 0, %s69
    %s71 = sphi 0, %s69
    %s72 = sphi 0, %s71
    %s86 = sphi 0, %s72
    %s90 = sphi 0, %s90
    %s92 = sphi 0, %s90
    %s93 = sphi 0, %s92
    %s107 = sphi 0, %s93
    %s111 = sphi 0, %s111
    %s113 = sphi 0, %s111
    %s114 = sphi 0, %s113
    %s128 = sphi 0, %s114
    %s132 = sphi 0, %s132
    %s134 = sphi 0, %s132
    %s135 = sphi 0, %s134
    %s149 = sphi 0, %s135
    %s155 = sphi 0, %s157
    %s158 = sphi 0, %s155
    %s159 = sphi 0, %s158
    %s175 = sphi 0, %s159
    %s181 = sphi 0, %s183
    %s184 = sphi 0, %s181
    %s185 = sphi 0, %s184
    %s201 = sphi 0, %s185
  $region4: #{conv_block_forward.4} parent=0 // loop_header_branch
    %17 = sbr.rel (%p15) target = $region8
  $region5: #{conv_block_forward.4} parent=0 // loop_body
    %s19 = ssub.s32 %s14, 1
    %s20 = ssub.s32 %s14, 2
    %s21 = sadd.s32 %s14, 1
    %s22 = ssub.s32 %s14, %s21
    %p23 = scmp.eq.s32.totalorder %s22, 0
    %s25 = sadd.s32 %s24, 1
    %s26 = scalar_select %p23, %s24, %s25
    %p29 = pneg %p23
    %p30 = scmp.eq.s32.totalorder %s14, 1
    %p31 = por %p29, %p30
    %p32 = scmp.ne.s32.totalorder %s24, %s27
    %p33 = scmp.eq.s32.totalorder %s14, 0
    %p34 = por %p32, %p33
    %p35 = scmp.ne.s32.totalorder %s24, %s27
    %p36 = scmp.eq.s32.totalorder %s19, 1
    %p37 = por %p35, %p36
    %p38 = scmp.ne.s32.totalorder %s27, %s28
    %p39 = scmp.eq.s32.totalorder %s19, 0
    %p40 = por %p38, %p39
    %p41 = scmp.ne.s32.totalorder %s27, %s28
    %p42 = scmp.eq.s32.totalorder %s20, 1
    %p43 = por %p41, %p42
    %p45 = scmp.ne.s32.totalorder %s28, %s44
    %p46 = scmp.eq.s32.totalorder %s20, 0
    %p47 = por %p45, %p46
    %s49 = sadd.s32 %s48, 1
    %p52 = scmp.eq.s32.totalorder %s14, 1
    %p53 = scmp.ne.s32.totalorder %s48, %s50
    %p54 = scmp.eq.s32.totalorder %s14, 0
    %p55 = por %p53, %p54
    %p56 = scmp.ne.s32.totalorder %s48, %s50
    %p57 = scmp.eq.s32.totalorder %s19, 1
    %p58 = por %p56, %p57
    %p59 = scmp.ne.s32.totalorder %s50, %s51
    %p60 = scmp.eq.s32.totalorder %s19, 0
    %p61 = por %p59, %p60
    %p62 = scmp.ne.s32.totalorder %s50, %s51
    %p63 = scmp.eq.s32.totalorder %s20, 1
    %p64 = por %p62, %p63
    %p66 = scmp.ne.s32.totalorder %s51, %s65
    %p67 = scmp.eq.s32.totalorder %s20, 0
    %p68 = por %p66, %p67
    %s70 = sadd.s32 %s69, 1
    %p73 = scmp.eq.s32.totalorder %s14, 1
    %p74 = scmp.ne.s32.totalorder %s69, %s71
    %p75 = scmp.eq.s32.totalorder %s14, 0
    %p76 = por %p74, %p75
    %p77 = scmp.ne.s32.totalorder %s69, %s71
    %p78 = scmp.eq.s32.totalorder %s19, 1
    %p79 = por %p77, %p78
    %p80 = scmp.ne.s32.totalorder %s71, %s72
    %p81 = scmp.eq.s32.totalorder %s19, 0
    %p82 = por %p80, %p81
    %p83 = scmp.ne.s32.totalorder %s71, %s72
    %p84 = scmp.eq.s32.totalorder %s20, 1
    %p85 = por %p83, %p84
    %p87 = scmp.ne.s32.totalorder %s72, %s86
    %p88 = scmp.eq.s32.totalorder %s20, 0
    %p89 = por %p87, %p88
    %s91 = sadd.s32 %s90, 1
    %p94 = scmp.eq.s32.totalorder %s14, 1
    %p95 = scmp.ne.s32.totalorder %s90, %s92
    %p96 = scmp.eq.s32.totalorder %s14, 0
    %p97 = por %p95, %p96
    %p98 = scmp.ne.s32.totalorder %s90, %s92
    %p99 = scmp.eq.s32.totalorder %s19, 1
    %p100 = por %p98, %p99
    %p101 = scmp.ne.s32.totalorder %s92, %s93
    %p102 = scmp.eq.s32.totalorder %s19, 0
    %p103 = por %p101, %p102
    %p104 = scmp.ne.s32.totalorder %s92, %s93
    %p105 = scmp.eq.s32.totalorder %s20, 1
    %p106 = por %p104, %p105
    %p108 = scmp.ne.s32.totalorder %s93, %s107
    %p109 = scmp.eq.s32.totalorder %s20, 0
    %p110 = por %p108, %p109
    %s112 = sadd.s32 %s111, 1
    %p115 = scmp.eq.s32.totalorder %s14, 1
    %p116 = scmp.ne.s32.totalorder %s111, %s113
    %p117 = scmp.eq.s32.totalorder %s14, 0
    %p118 = por %p116, %p117
    %p119 = scmp.ne.s32.totalorder %s111, %s113
    %p120 = scmp.eq.s32.totalorder %s19, 1
    %p121 = por %p119, %p120
    %p122 = scmp.ne.s32.totalorder %s113, %s114
    %p123 = scmp.eq.s32.totalorder %s19, 0
    %p124 = por %p122, %p123
    %p125 = scmp.ne.s32.totalorder %s113, %s114
    %p126 = scmp.eq.s32.totalorder %s20, 1
    %p127 = por %p125, %p126
    %p129 = scmp.ne.s32.totalorder %s114, %s128
    %p130 = scmp.eq.s32.totalorder %s20, 0
    %p131 = por %p129, %p130
    %s133 = sadd.s32 %s132, 1
    %p136 = scmp.eq.s32.totalorder %s14, 1
    %p137 = scmp.ne.s32.totalorder %s132, %s134
    %p138 = scmp.eq.s32.totalorder %s14, 0
    %p139 = por %p137, %p138
    %p140 = scmp.ne.s32.totalorder %s132, %s134
    %p141 = scmp.eq.s32.totalorder %s19, 1
    %p142 = por %p140, %p141
    %p143 = scmp.ne.s32.totalorder %s134, %s135
    %p144 = scmp.eq.s32.totalorder %s19, 0
    %p145 = por %p143, %p144
    %p146 = scmp.ne.s32.totalorder %s134, %s135
    %p147 = scmp.eq.s32.totalorder %s20, 1
    %p148 = por %p146, %p147
    %p150 = scmp.ne.s32.totalorder %s135, %s149
    %p151 = scmp.eq.s32.totalorder %s20, 0
    %p152 = por %p150, %p151
    %s153 = ssub.s32 %s14, %s21
    %p154 = scmp.eq.s32.totalorder %s153, 0
    %s156 = sadd.s32 %s155, 1
    %s157 = scalar_select %p154, %s155, %s156
    %p160 = pneg %p154
    %p161 = scmp.eq.s32.totalorder %s14, 1
    %p162 = por %p160, %p161
    %p163 = scmp.ne.s32.totalorder %s155, %s158
    %p164 = scmp.eq.s32.totalorder %s14, 0
    %p165 = por %p163, %p164
    %p166 = scmp.ne.s32.totalorder %s155, %s158
    %p167 = scmp.eq.s32.totalorder %s19, 1
    %p168 = por %p166, %p167
    %p169 = scmp.ne.s32.totalorder %s158, %s159
    %p170 = scmp.eq.s32.totalorder %s19, 0
    %p171 = por %p169, %p170
    %p172 = scmp.ne.s32.totalorder %s158, %s159
    %p173 = scmp.eq.s32.totalorder %s20, 1
    %p174 = por %p172, %p173
    %p176 = scmp.ne.s32.totalorder %s159, %s175
    %p177 = scmp.eq.s32.totalorder %s20, 0
    %p178 = por %p176, %p177
    %s179 = ssub.s32 %s14, %s21
    %p180 = scmp.eq.s32.totalorder %s179, 0
    %s182 = sadd.s32 %s181, 1
    %s183 = scalar_select %p180, %s181, %s182
    %p186 = pneg %p180
    %p187 = scmp.eq.s32.totalorder %s14, 1
    %p188 = por %p186, %p187
    %p189 = scmp.ne.s32.totalorder %s181, %s184
    %p190 = scmp.eq.s32.totalorder %s14, 0
    %p191 = por %p189, %p190
    %p192 = scmp.ne.s32.totalorder %s181, %s184
    %p193 = scmp.eq.s32.totalorder %s19, 1
    %p194 = por %p192, %p193
    %p195 = scmp.ne.s32.totalorder %s184, %s185
    %p196 = scmp.eq.s32.totalorder %s19, 0
    %p197 = por %p195, %p196
    %p198 = scmp.ne.s32.totalorder %s184, %s185
    %p199 = scmp.eq.s32.totalorder %s20, 1
    %p200 = por %p198, %p199
    %p202 = scmp.ne.s32.totalorder %s185, %s201
    %p203 = scmp.eq.s32.totalorder %s20, 0
    %p204 = por %p202, %p203
    %p205 = scmp.le.s32.totalorder 1, %s14
    %p206 = scmp.lt.s32.totalorder %s14, 3
    %p207 = pnand %p205, %p206
    %p208 = pneg %p207
    // Predicated region
    $region9: #{conv_block_forward.4} parent=5 // pred_check
      _
    $region10: #{conv_block_forward.4} parent=5 // pred_check_branch
      %210 = sbr.rel (%p207) target = $region12
    $region11: #{conv_block_forward.4} parent=5 // pred_region
      %s211 = ssub.s32 %s14, 1
      // Predicated region
      $region13: #{conv_block_forward.4} parent=11 // pred_check
        %p212 = pneg %p61
      $region14: #{conv_block_forward.4} parent=11 // pred_check_branch
        %214 = sbr.rel (%p212) target = $region16
      $region15: #{conv_block_forward.4} parent=11 // pred_region
        _
      $region16: #{conv_block_forward.4} parent=11 // pred_fallthru
        _
      // Predicated region
      $region17: #{conv_block_forward.4} parent=11 // pred_check
        %p215 = pneg %p82
      $region18: #{conv_block_forward.4} parent=11 // pred_check_branch
        %217 = sbr.rel (%p215) target = $region20
      $region19: #{conv_block_forward.4} parent=11 // pred_region
        _
      $region20: #{conv_block_forward.4} parent=11 // pred_fallthru
        _
      // Predicated region
      $region21: #{conv_block_forward.4} parent=11 // pred_check
        %p218 = pneg %p103
      $region22: #{conv_block_forward.4} parent=11 // pred_check_branch
        %220 = sbr.rel (%p218) target = $region24
      $region23: #{conv_block_forward.4} parent=11 // pred_region
        _
      $region24: #{conv_block_forward.4} parent=11 // pred_fallthru
        _
      // Predicated region
      $region25: #{conv_block_forward.4} parent=11 // pred_check
        %p221 = pneg %p124
      $region26: #{conv_block_forward.4} parent=11 // pred_check_branch
        %223 = sbr.rel (%p221) target = $region28
      $region27: #{conv_block_forward.4} parent=11 // pred_region
        _
      $region28: #{conv_block_forward.4} parent=11 // pred_fallthru
        _
      // Predicated region
      $region29: #{conv_block_forward.4} parent=11 // pred_check
        %p224 = pneg %p145
      $region30: #{conv_block_forward.4} parent=11 // pred_check_branch
        %226 = sbr.rel (%p224) target = $region32
      $region31: #{conv_block_forward.4} parent=11 // pred_region
        _
      $region32: #{conv_block_forward.4} parent=11 // pred_fallthru
        _
    $region12: #{conv_block_forward.4} parent=5 // pred_fallthru
      _
    %p227 = scmp.lt.s32.totalorder %s14, 2
    // Predicated region
    $region33: #{conv_block_forward.4} parent=5 // pred_check
      %p228 = pneg %p227
    $region34: #{conv_block_forward.4} parent=5 // pred_check_branch
      %230 = sbr.rel (%p228) target = $region36
    $region35: #{conv_block_forward.4} parent=5 // pred_region
      // Predicated region
      $region37: #{conv_block_forward.4} parent=35 // pred_check
        %p231 = pneg %p34
      $region38: #{conv_block_forward.4} parent=35 // pred_check_branch
        %233 = sbr.rel (%p231) target = $region40
      $region39: #{conv_block_forward.4} parent=35 // pred_region
        %p234 = scmp.lt.s32.totalorder %s14, 1
        %s235 = scalar_select %p234, %s14, 1
        %s236 = smul.addr %s235, 3
        %s237 = smul.addr %s236, 8
        %s238 = scalar_lea.vmem %s0, %s237
      $region40: #{conv_block_forward.4} parent=35 // pred_fallthru
        _
    $region36: #{conv_block_forward.4} parent=5 // pred_fallthru
      _
    %p239 = scmp.le.s32.totalorder 1, %s14
    %p240 = scmp.lt.s32.totalorder %s14, 3
    %p241 = pnand %p239, %p240
    %p242 = pneg %p241
    // Predicated region
    $region41: #{conv_block_forward.4} parent=5 // pred_check
      _
    $region42: #{conv_block_forward.4} parent=5 // pred_check_branch
      %244 = sbr.rel (%p241) target = $region44
    $region43: #{conv_block_forward.4} parent=5 // pred_region
      %s245 = ssub.s32 %s14, 1
      %p246 = scmp.lt.s32.totalorder %s19, 1
      %s247 = scalar_select %p246, %s19, 1
      %s248 = smul.addr %s247, 3
      %s249 = smul.addr %s248, 8
      %s250 = scalar_lea.vmem %s0, %s249
      %p251 = pneg %p40
      %p252 = pneg %p37
      %p253 = pneg %p61
      %p254 = pneg %p58
      %p255 = pneg %p82
      %p256 = pneg %p79
      %p257 = pneg %p103
      %p258 = pneg %p100
      %p259 = pneg %p124
      %p260 = pneg %p121
      %p261 = pneg %p145
      %p262 = pneg %p142
      %p263 = pneg %p171
      %p264 = pneg %p168
      %p265 = scmp.lt.s32.totalorder %s19, 1
      %s266 = scalar_select %p265, %s19, 1
      %s267 = smul.addr %s266, 3
      %s268 = smul.addr %s267, 8
      %s269 = scalar_lea.vmem %s6, %s268
      %p270 = pneg %p197
      %p271 = pneg %p194
      %p272 = scmp.lt.s32.totalorder %s19, 1
      %s273 = scalar_select %p272, %s19, 1
      %s274 = smul.addr %s273, 8
      %s275 = scalar_lea.vmem %s7, %s274
      %p276 = scmp.lt.s32.totalorder %s19, 1
      %s277 = scalar_select %p276, %s19, 1
      %s278 = smul.addr %s277, 3
      %s279 = smul.addr %s278, 8
      %s280 = scalar_lea.vmem %s0, %s279
      %p281 = scmp.lt.s32.totalorder %s19, 1
      %s282 = scalar_select %p281, %s19, 1
      %s283 = smul.addr %s282, 3
      %s284 = smul.addr %s283, 8
      %s285 = scalar_lea.vmem %s6, %s284
      %p286 = scmp.lt.s32.totalorder %s19, 1
      %s287 = scalar_select %p286, %s19, 1
      %s288 = smul.addr %s287, 8
      %s289 = scalar_lea.vmem %s7, %s288
      %v290 = vld [vmem:[%s280] sm:$0xff]
      %v291 = vld [vmem:[%s280 + $0x8] sm:$0xff]
      %v292 = vld [vmem:[%s280 + $0x10] sm:$0xff]
      %v293 = vld [vmem:[%s4] sm:$0xff]
      %295 = vset.pattern.permute.xlu0 0
      %296 = vperm.xlu0 %295, %v293
      %v297 = vpop.permute.xlu0 %296
      %v299 = vmul.f32 %v290, %v297
      %v300 = vmul.f32 %v291, %v297
      %v301 = vmul.f32 %v292, %v297
      %v302 = vld [vmem:[%s5] sm:$0xff]
      %304 = vset.pattern.permute.xlu0 0
      %305 = vperm.xlu0 %304, %v302
      %v306 = vpop.permute.xlu0 %305
      %v308 = vadd.f32 %v299, %v306
      %v309 = vadd.f32 %v300, %v306
      %v310 = vadd.f32 %v301, %v306
      %v311 = vmax.f32 %v308, 0.0
      %v312 = vmax.f32 %v309, 0.0
      %v313 = vmax.f32 %v310, 0.0
      %v314 = vld [vmem:[%s3] sm:$0x7]
      %v316 = vlaneseq
      %v317 = vshrl.u32 %v316, 7
      %v318 = vsub.s32 0, %v317
      %v319 = vrot.slane %v314, %v318
      %v320 = vlaneseq
      %v321 = vshrl.u32 %v320, 7
      %v322 = vsub.s32 1, %v321
      %v323 = vrot.slane %v314, %v322
      %v324 = vlaneseq
      %v325 = vshrl.u32 %v324, 7
      %v326 = vsub.s32 2, %v325
      %v327 = vrot.slane %v314, %v326
      %v331 = vmul.f32 %v311, %v319
      %v332 = vmul.f32 %v312, %v323
      %v333 = vmul.f32 %v313, %v327
      %v334 = vld [vmem:[%s1] sm:$0xff]
      %s335 = scalar_lea.vmem %s1, 8
      %v336 = vld [vmem:[%s335] sm:$0xff]
      %340 = vrot.lane.b32.xlu0 %v331, 110
      %v341 = vpop.permute.xlu0 %340
      %342 = vrot.lane.b32.xlu0 %v332, 110
      %v343 = vpop.permute.xlu0 %342
      %344 = vrot.lane.b32.xlu0 %v333, 110
      %v345 = vpop.permute.xlu0 %344
      %vm346 = vcmask 900096
      %v347 = vsel %vm346, %v341, %v343
      %v348 = vsel %vm346, %v343, %v345
      %vm352 = vcmask 64512
      %v354 = vsel %vm352, %v336, 0
      %356 = vmatprep.subr.mxu0 %v348
      %357 = vmatpush1.msra.mxu0 %v347
      %358 = vmatprep.subr.mxu0 0.0
      %359 = vmatpush1.msra.mxu0 0.0
      %360 = vmatprep.subr.mxu0 0.0
      %361 = vmatpush1.msra.mxu0 0.0
      %362 = vmatprep.subr.mxu0 0.0
      %363 = vmatpush1.msra.mxu0 0.0
      %364 = vmatprep.subr.mxu0 0.0
      %365 = vmatpush1.msra.mxu0 0.0
      %366 = vmatprep.subr.mxu0 0.0
      %367 = vmatpush1.msra.mxu0 0.0
      %368 = vmatprep.subr.mxu0 0.0
      %369 = vmatpush1.msra.mxu0 0.0
      %370 = vmatprep.subr.mxu0 0.0
      %371 = vmatpush1.msra.mxu0 0.0
      %372 = vmatprep.subr.mxu0 0.0
      %373 = vmatpush1.msra.mxu0 0.0
      %374 = vmatprep.subr.mxu0 0.0
      %375 = vmatpush1.msra.mxu0 0.0
      %376 = vmatprep.subr.mxu0 0.0
      %377 = vmatpush1.msra.mxu0 0.0
      %378 = vmatprep.subr.mxu0 0.0
      %379 = vmatpush1.msra.mxu0 0.0
      %380 = vmatprep.subr.mxu0 0.0
      %381 = vmatpush1.msra.mxu0 0.0
      %382 = vmatprep.subr.mxu0 0.0
      %383 = vmatpush1.msra.mxu0 0.0
      %384 = vmatprep.subr.mxu0 0.0
      %385 = vmatpush1.msra.mxu0 0.0
      %386 = vmatprep.subr.mxu0 0.0
      %387 = vmatpush1.msra.mxu0 0.0
      %388 = vmatprep.subr.mxu0 0.0
      %389 = vmatpush1.msra.mxu0 0.0
      %390 = vmatprep.subr.mxu0 0.0
      %391 = vmatpush1.msra.mxu0 0.0
      %392 = vmatprep.subr.mxu0 0.0
      %393 = vmatpush1.msra.mxu0 0.0
      %394 = vmatprep.subr.mxu0 0.0
      %395 = vmatpush1.msra.mxu0 0.0
      %396 = vmatprep.subr.mxu0 0.0
      %397 = vmatpush1.msra.mxu0 0.0
      %398 = vmatprep.subr.mxu0 0.0
      %399 = vmatpush1.msra.mxu0 0.0
      %400 = vmatprep.subr.mxu0 0.0
      %401 = vmatpush1.msra.mxu0 0.0
      %402 = vmatprep.subr.mxu0 0.0
      %403 = vmatpush1.msra.mxu0 0.0
      %404 = vmatprep.subr.mxu0 0.0
      %405 = vmatpush1.msra.mxu0 0.0
      %406 = vmatprep.subr.mxu0 0.0
      %407 = vmatpush1.msra.mxu0 0.0
      %408 = vmatprep.subr.mxu0 0.0
      %409 = vmatpush1.msra.mxu0 0.0
      %410 = vmatprep.subr.mxu0 0.0
      %411 = vmatpush1.msra.mxu0 0.0
      %412 = vmatprep.subr.mxu0 0.0
      %413 = vmatpush1.msra.mxu0 0.0
      %414 = vmatprep.subr.mxu0 0.0
      %415 = vmatpush1.msra.mxu0 0.0
      %416 = vmatprep.subr.mxu0 0.0
      %417 = vmatpush1.msra.mxu0 0.0
      %418 = vmatprep.subr.mxu0 0.0
      %419 = vmatpush1.msra.mxu0 0.0
      %420 = vmatprep.mubr.f32.mxu0 0.0
      %421 = vmatmul.mubr.f32.gmra.mrb[0].mxu0 %v354
      %v422 = vpop.f32.mrb[0].mxu0
      %v423 = vadd.f32 0.0, %v422
      %v424 = vpop.f32.mrb[0].mxu0
      %v425 = vadd.f32 0.0, %v424
      %426 = vdwg.mxu0
      %427 = vmatprep.subr.mxu0 0.0
      %428 = vmatpush1.msra.mxu0 %v345
      %429 = vmatprep.subr.mxu0 0.0
      %430 = vmatpush1.msra.mxu0 0.0
      %431 = vmatprep.subr.mxu0 0.0
      %432 = vmatpush1.msra.mxu0 0.0
      %433 = vmatprep.subr.mxu0 0.0
      %434 = vmatpush1.msra.mxu0 0.0
      %435 = vmatprep.subr.mxu0 0.0
      %436 = vmatpush1.msra.mxu0 0.0
      %437 = vmatprep.subr.mxu0 0.0
      %438 = vmatpush1.msra.mxu0 0.0
      %439 = vmatprep.subr.mxu0 0.0
      %440 = vmatpush1.msra.mxu0 0.0
      %441 = vmatprep.subr.mxu0 0.0
      %442 = vmatpush1.msra.mxu0 0.0
      %443 = vmatprep.subr.mxu0 0.0
      %444 = vmatpush1.msra.mxu0 0.0
      %445 = vmatprep.subr.mxu0 0.0
      %446 = vmatpush1.msra.mxu0 0.0
      %447 = vmatprep.subr.mxu0 0.0
      %448 = vmatpush1.msra.mxu0 0.0
      %449 = vmatprep.subr.mxu0 0.0
      %450 = vmatpush1.msra.mxu0 0.0
      %451 = vmatprep.subr.mxu0 0.0
      %452 = vmatpush1.msra.mxu0 0.0
      %453 = vmatprep.subr.mxu0 0.0
      %454 = vmatpush1.msra.mxu0 0.0
      %455 = vmatprep.subr.mxu0 0.0
      %456 = vmatpush1.msra.mxu0 0.0
      %457 = vmatprep.subr.mxu0 0.0
      %458 = vmatpush1.msra.mxu0 0.0
      %459 = vmatprep.subr.mxu0 0.0
      %460 = vmatpush1.msra.mxu0 0.0
      %461 = vmatprep.subr.mxu0 0.0
      %462 = vmatpush1.msra.mxu0 0.0
      %463 = vmatprep.subr.mxu0 0.0
      %464 = vmatpush1.msra.mxu0 0.0
      %465 = vmatprep.subr.mxu0 0.0
      %466 = vmatpush1.msra.mxu0 0.0
      %467 = vmatprep.subr.mxu0 0.0
      %468 = vmatpush1.msra.mxu0 0.0
      %469 = vmatprep.subr.mxu0 0.0
      %470 = vmatpush1.msra.mxu0 0.0
      %471 = vmatprep.subr.mxu0 0.0
      %472 = vmatpush1.msra.mxu0 0.0
      %473 = vmatprep.subr.mxu0 0.0
      %474 = vmatpush1.msra.mxu0 0.0
      %475 = vmatprep.subr.mxu0 0.0
      %476 = vmatpush1.msra.mxu0 0.0
      %477 = vmatprep.subr.mxu0 0.0
      %478 = vmatpush1.msra.mxu0 0.0
      %479 = vmatprep.subr.mxu0 0.0
      %480 = vmatpush1.msra.mxu0 0.0
      %481 = vmatprep.subr.mxu0 0.0
      %482 = vmatpush1.msra.mxu0 0.0
      %483 = vmatprep.subr.mxu0 0.0
      %484 = vmatpush1.msra.mxu0 0.0
      %485 = vmatprep.subr.mxu0 0.0
      %486 = vmatpush1.msra.mxu0 0.0
      %487 = vmatprep.subr.mxu0 0.0
      %488 = vmatpush1.msra.mxu0 0.0
      %489 = vmatprep.subr.mxu0 0.0
      %490 = vmatpush1.msra.mxu0 0.0
      %491 = vmatprep.mubr.f32.mxu0 0.0
      %492 = vmatmul.mubr.f32.gmra.mrb[0].mxu0 %v354
      %v493 = vpop.f32.mrb[0].mxu0
      %v494 = vadd.f32 0.0, %v493
      %v495 = vpop.f32.mrb[0].mxu0
      %496 = vdwg.mxu0
      %497 = vrot.lane.b32.xlu0 %v331, 111
      %v498 = vpop.permute.xlu0 %497
      %499 = vrot.lane.b32.xlu0 %v332, 111
      %v500 = vpop.permute.xlu0 %499
      %501 = vrot.lane.b32.xlu0 %v333, 111
      %v502 = vpop.permute.xlu0 %501
      %vm503 = vcmask 908288
      %v504 = vsel %vm503, %v498, %v500
      %v505 = vsel %vm503, %v500, %v502
      %v510 = vsel %vm352, %v334, 0
      %512 = vmatprep.subr.mxu0 %v505
      %513 = vmatpush1.msra.mxu0 %v504
      %514 = vmatprep.subr.mxu0 0.0
      %515 = vmatpush1.msra.mxu0 0.0
      %516 = vmatprep.subr.mxu0 0.0
      %517 = vmatpush1.msra.mxu0 0.0
      %518 = vmatprep.subr.mxu0 0.0
      %519 = vmatpush1.msra.mxu0 0.0
      %520 = vmatprep.subr.mxu0 0.0
      %521 = vmatpush1.msra.mxu0 0.0
      %522 = vmatprep.subr.mxu0 0.0
      %523 = vmatpush1.msra.mxu0 0.0
      %524 = vmatprep.subr.mxu0 0.0
      %525 = vmatpush1.msra.mxu0 0.0
      %526 = vmatprep.subr.mxu0 0.0
      %527 = vmatpush1.msra.mxu0 0.0
      %528 = vmatprep.subr.mxu0 0.0
      %529 = vmatpush1.msra.mxu0 0.0
      %530 = vmatprep.subr.mxu0 0.0
      %531 = vmatpush1.msra.mxu0 0.0
      %532 = vmatprep.subr.mxu0 0.0
      %533 = vmatpush1.msra.mxu0 0.0
      %534 = vmatprep.subr.mxu0 0.0
      %535 = vmatpush1.msra.mxu0 0.0
      %536 = vmatprep.subr.mxu0 0.0
      %537 = vmatpush1.msra.mxu0 0.0
      %538 = vmatprep.subr.mxu0 0.0
      %539 = vmatpush1.msra.mxu0 0.0
      %540 = vmatprep.subr.mxu0 0.0
      %541 = vmatpush1.msra.mxu0 0.0
      %542 = vmatprep.subr.mxu0 0.0
      %543 = vmatpush1.msra.mxu0 0.0
      %544 = vmatprep.subr.mxu0 0.0
      %545 = vmatpush1.msra.mxu0 0.0
      %546 = vmatprep.subr.mxu0 0.0
      %547 = vmatpush1.msra.mxu0 0.0
      %548 = vmatprep.subr.mxu0 0.0
      %549 = vmatpush1.msra.mxu0 0.0
      %550 = vmatprep.subr.mxu0 0.0
      %551 = vmatpush1.msra.mxu0 0.0
      %552 = vmatprep.subr.mxu0 0.0
      %553 = vmatpush1.msra.mxu0 0.0
      %554 = vmatprep.subr.mxu0 0.0
      %555 = vmatpush1.msra.mxu0 0.0
      %556 = vmatprep.subr.mxu0 0.0
      %557 = vmatpush1.msra.mxu0 0.0
      %558 = vmatprep.subr.mxu0 0.0
      %559 = vmatpush1.msra.mxu0 0.0
      %560 = vmatprep.subr.mxu0 0.0
      %561 = vmatpush1.msra.mxu0 0.0
      %562 = vmatprep.subr.mxu0 0.0
      %563 = vmatpush1.msra.mxu0 0.0
      %564 = vmatprep.subr.mxu0 0.0
      %565 = vmatpush1.msra.mxu0 0.0
      %566 = vmatprep.subr.mxu0 0.0
      %567 = vmatpush1.msra.mxu0 0.0
      %568 = vmatprep.subr.mxu0 0.0
      %569 = vmatpush1.msra.mxu0 0.0
      %570 = vmatprep.subr.mxu0 0.0
      %571 = vmatpush1.msra.mxu0 0.0
      %572 = vmatprep.subr.mxu0 0.0
      %573 = vmatpush1.msra.mxu0 0.0
      %574 = vmatprep.subr.mxu0 0.0
      %575 = vmatpush1.msra.mxu0 0.0
      %576 = vmatprep.mubr.f32.mxu0 0.0
      %577 = vmatmul.mubr.f32.gmra.mrb[0].mxu0 %v510
      %v578 = vpop.f32.mrb[0].mxu0
      %v579 = vadd.f32 %v423, %v578
      %v580 = vpop.f32.mrb[0].mxu0
      %v581 = vadd.f32 %v425, %v580
      %582 = vdwg.mxu0
      %583 = vmatprep.subr.mxu0 0.0
      %584 = vmatpush1.msra.mxu0 %v502
      %585 = vmatprep.subr.mxu0 0.0
      %586 = vmatpush1.msra.mxu0 0.0
      %587 = vmatprep.subr.mxu0 0.0
      %588 = vmatpush1.msra.mxu0 0.0
      %589 = vmatprep.subr.mxu0 0.0
      %590 = vmatpush1.msra.mxu0 0.0
      %591 = vmatprep.subr.mxu0 0.0
      %592 = vmatpush1.msra.mxu0 0.0
      %593 = vmatprep.subr.mxu0 0.0
      %594 = vmatpush1.msra.mxu0 0.0
      %595 = vmatprep.subr.mxu0 0.0
      %596 = vmatpush1.msra.mxu0 0.0
      %597 = vmatprep.subr.mxu0 0.0
      %598 = vmatpush1.msra.mxu0 0.0
      %599 = vmatprep.subr.mxu0 0.0
      %600 = vmatpush1.msra.mxu0 0.0
      %601 = vmatprep.subr.mxu0 0.0
      %602 = vmatpush1.msra.mxu0 0.0
      %603 = vmatprep.subr.mxu0 0.0
      %604 = vmatpush1.msra.mxu0 0.0
      %605 = vmatprep.subr.mxu0 0.0
      %606 = vmatpush1.msra.mxu0 0.0
      %607 = vmatprep.subr.mxu0 0.0
      %608 = vmatpush1.msra.mxu0 0.0
      %609 = vmatprep.subr.mxu0 0.0
      %610 = vmatpush1.msra.mxu0 0.0
      %611 = vmatprep.subr.mxu0 0.0
      %612 = vmatpush1.msra.mxu0 0.0
      %613 = vmatprep.subr.mxu0 0.0
      %614 = vmatpush1.msra.mxu0 0.0
      %615 = vmatprep.subr.mxu0 0.0
      %616 = vmatpush1.msra.mxu0 0.0
      %617 = vmatprep.subr.mxu0 0.0
      %618 = vmatpush1.msra.mxu0 0.0
      %619 = vmatprep.subr.mxu0 0.0
      %620 = vmatpush1.msra.mxu0 0.0
      %621 = vmatprep.subr.mxu0 0.0
      %622 = vmatpush1.msra.mxu0 0.0
      %623 = vmatprep.subr.mxu0 0.0
      %624 = vmatpush1.msra.mxu0 0.0
      %625 = vmatprep.subr.mxu0 0.0
      %626 = vmatpush1.msra.mxu0 0.0
      %627 = vmatprep.subr.mxu0 0.0
      %628 = vmatpush1.msra.mxu0 0.0
      %629 = vmatprep.subr.mxu0 0.0
      %630 = vmatpush1.msra.mxu0 0.0
      %631 = vmatprep.subr.mxu0 0.0
      %632 = vmatpush1.msra.mxu0 0.0
      %633 = vmatprep.subr.mxu0 0.0
      %634 = vmatpush1.msra.mxu0 0.0
      %635 = vmatprep.subr.mxu0 0.0
      %636 = vmatpush1.msra.mxu0 0.0
      %637 = vmatprep.subr.mxu0 0.0
      %638 = vmatpush1.msra.mxu0 0.0
      %639 = vmatprep.subr.mxu0 0.0
      %640 = vmatpush1.msra.mxu0 0.0
      %641 = vmatprep.subr.mxu0 0.0
      %642 = vmatpush1.msra.mxu0 0.0
      %643 = vmatprep.subr.mxu0 0.0
      %644 = vmatpush1.msra.mxu0 0.0
      %645 = vmatprep.subr.mxu0 0.0
      %646 = vmatpush1.msra.mxu0 0.0
      %647 = vmatprep.mubr.f32.mxu0 0.0
      %648 = vmatmul.mubr.f32.gmra.mrb[0].mxu0 %v510
      %v649 = vpop.f32.mrb[0].mxu0
      %v650 = vadd.f32 %v494, %v649
      %v651 = vpop.f32.mrb[0].mxu0
      %652 = vdwg.mxu0
      %s653 = scalar_lea.vmem %s1, 16
      %v654 = vld [vmem:[%s653] sm:$0xff]
      %655 = vrot.lane.b32.xlu0 %v331, 109
      %v656 = vpop.permute.xlu0 %655
      %657 = vrot.lane.b32.xlu0 %v332, 109
      %v658 = vpop.permute.xlu0 %657
      %659 = vrot.lane.b32.xlu0 %v333, 109
      %v660 = vpop.permute.xlu0 %659
      %vm661 = vcmask 891904
      %v662 = vsel %vm661, %v656, %v658
      %v663 = vsel %vm661, %v658, %v660
      %v668 = vsel %vm352, %v654, 0
      %670 = vmatprep.subr.mxu0 %v663
      %671 = vmatpush1.msra.mxu0 %v662
      %672 = vmatprep.subr.mxu0 0.0
      %673 = vmatpush1.msra.mxu0 0.0
      %674 = vmatprep.subr.mxu0 0.0
      %675 = vmatpush1.msra.mxu0 0.0
      %676 = vmatprep.subr.mxu0 0.0
      %677 = vmatpush1.msra.mxu0 0.0
      %678 = vmatprep.subr.mxu0 0.0
      %679 = vmatpush1.msra.mxu0 0.0
      %680 = vmatprep.subr.mxu0 0.0
      %681 = vmatpush1.msra.mxu0 0.0
      %682 = vmatprep.subr.mxu0 0.0
      %683 = vmatpush1.msra.mxu0 0.0
      %684 = vmatprep.subr.mxu0 0.0
      %685 = vmatpush1.msra.mxu0 0.0
      %686 = vmatprep.subr.mxu0 0.0
      %687 = vmatpush1.msra.mxu0 0.0
      %688 = vmatprep.subr.mxu0 0.0
      %689 = vmatpush1.msra.mxu0 0.0
      %690 = vmatprep.subr.mxu0 0.0
      %691 = vmatpush1.msra.mxu0 0.0
      %692 = vmatprep.subr.mxu0 0.0
      %693 = vmatpush1.msra.mxu0 0.0
      %694 = vmatprep.subr.mxu0 0.0
      %695 = vmatpush1.msra.mxu0 0.0
      %696 = vmatprep.subr.mxu0 0.0
      %697 = vmatpush1.msra.mxu0 0.0
      %698 = vmatprep.subr.mxu0 0.0
      %699 = vmatpush1.msra.mxu0 0.0
      %700 = vmatprep.subr.mxu0 0.0
      %701 = vmatpush1.msra.mxu0 0.0
      %702 = vmatprep.subr.mxu0 0.0
      %703 = vmatpush1.msra.mxu0 0.0
      %704 = vmatprep.subr.mxu0 0.0
      %705 = vmatpush1.msra.mxu0 0.0
      %706 = vmatprep.subr.mxu0 0.0
      %707 = vmatpush1.msra.mxu0 0.0
      %708 = vmatprep.subr.mxu0 0.0
      %709 = vmatpush1.msra.mxu0 0.0
      %710 = vmatprep.subr.mxu0 0.0
      %711 = vmatpush1.msra.mxu0 0.0
      %712 = vmatprep.subr.mxu0 0.0
      %713 = vmatpush1.msra.mxu0 0.0
      %714 = vmatprep.subr.mxu0 0.0
      %715 = vmatpush1.msra.mxu0 0.0
      %716 = vmatprep.subr.mxu0 0.0
      %717 = vmatpush1.msra.mxu0 0.0
      %718 = vmatprep.subr.mxu0 0.0
      %719 = vmatpush1.msra.mxu0 0.0
      %720 = vmatprep.subr.mxu0 0.0
      %721 = vmatpush1.msra.mxu0 0.0
      %722 = vmatprep.subr.mxu0 0.0
      %723 = vmatpush1.msra.mxu0 0.0
      %724 = vmatprep.subr.mxu0 0.0
      %725 = vmatpush1.msra.mxu0 0.0
      %726 = vmatprep.subr.mxu0 0.0
      %727 = vmatpush1.msra.mxu0 0.0
      %728 = vmatprep.subr.mxu0 0.0
      %729 = vmatpush1.msra.mxu0 0.0
      %730 = vmatprep.subr.mxu0 0.0
      %731 = vmatpush1.msra.mxu0 0.0
      %732 = vmatprep.subr.mxu0 0.0
      %733 = vmatpush1.msra.mxu0 0.0
      %734 = vmatprep.mubr.f32.mxu0 0.0
      %735 = vmatmul.mubr.f32.gmra.mrb[0].mxu0 %v668
      %v736 = vpop.f32.mrb[0].mxu0
      %v737 = vadd.f32 0.0, %v736
      %v738 = vpop.f32.mrb[0].mxu0
      %v739 = vadd.f32 0.0, %v738
      %740 = vdwg.mxu0
      %741 = vmatprep.subr.mxu0 0.0
      %742 = vmatpush1.msra.mxu0 %v660
      %743 = vmatprep.subr.mxu0 0.0
      %744 = vmatpush1.msra.mxu0 0.0
      %745 = vmatprep.subr.mxu0 0.0
      %746 = vmatpush1.msra.mxu0 0.0
      %747 = vmatprep.subr.mxu0 0.0
      %748 = vmatpush1.msra.mxu0 0.0
      %749 = vmatprep.subr.mxu0 0.0
      %750 = vmatpush1.msra.mxu0 0.0
      %751 = vmatprep.subr.mxu0 0.0
      %752 = vmatpush1.msra.mxu0 0.0
      %753 = vmatprep.subr.mxu0 0.0
      %754 = vmatpush1.msra.mxu0 0.0
      %755 = vmatprep.subr.mxu0 0.0
      %756 = vmatpush1.msra.mxu0 0.0
      %757 = vmatprep.subr.mxu0 0.0
      %758 = vmatpush1.msra.mxu0 0.0
      %759 = vmatprep.subr.mxu0 0.0
      %760 = vmatpush1.msra.mxu0 0.0
      %761 = vmatprep.subr.mxu0 0.0
      %762 = vmatpush1.msra.mxu0 0.0
      %763 = vmatprep.subr.mxu0 0.0
      %764 = vmatpush1.msra.mxu0 0.0
      %765 = vmatprep.subr.mxu0 0.0
      %766 = vmatpush1.msra.mxu0 0.0
      %767 = vmatprep.subr.mxu0 0.0
      %768 = vmatpush1.msra.mxu0 0.0
      %769 = vmatprep.subr.mxu0 0.0
      %770 = vmatpush1.msra.mxu0 0.0
      %771 = vmatprep.subr.mxu0 0.0
      %772 = vmatpush1.msra.mxu0 0.0
      %773 = vmatprep.subr.mxu0 0.0
      %774 = vmatpush1.msra.mxu0 0.0
      %775 = vmatprep.subr.mxu0 0.0
      %776 = vmatpush1.msra.mxu0 0.0
      %777 = vmatprep.subr.mxu0 0.0
      %778 = vmatpush1.msra.mxu0 0.0
      %779 = vmatprep.subr.mxu0 0.0
      %780 = vmatpush1.msra.mxu0 0.0
      %781 = vmatprep.subr.mxu0 0.0
      %782 = vmatpush1.msra.mxu0 0.0
      %783 = vmatprep.subr.mxu0 0.0
      %784 = vmatpush1.msra.mxu0 0.0
      %785 = vmatprep.subr.mxu0 0.0
      %786 = vmatpush1.msra.mxu0 0.0
      %787 = vmatprep.subr.mxu0 0.0
      %788 = vmatpush1.msra.mxu0 0.0
      %789 = vmatprep.subr.mxu0 0.0
      %790 = vmatpush1.msra.mxu0 0.0
      %791 = vmatprep.subr.mxu0 0.0
      %792 = vmatpush1.msra.mxu0 0.0
      %793 = vmatprep.subr.mxu0 0.0
      %794 = vmatpush1.msra.mxu0 0.0
      %795 = vmatprep.subr.mxu0 0.0
      %796 = vmatpush1.msra.mxu0 0.0
      %797 = vmatprep.subr.mxu0 0.0
      %798 = vmatpush1.msra.mxu0 0.0
      %799 = vmatprep.subr.mxu0 0.0
      %800 = vmatpush1.msra.mxu0 0.0
      %801 = vmatprep.subr.mxu0 0.0
      %802 = vmatpush1.msra.mxu0 0.0
      %803 = vmatprep.subr.mxu0 0.0
      %804 = vmatpush1.msra.mxu0 0.0
      %805 = vmatprep.mubr.f32.mxu0 0.0
      %806 = vmatmul.mubr.f32.gmra.mrb[0].mxu0 %v668
      %v807 = vpop.f32.mrb[0].mxu0
      %v808 = vadd.f32 0.0, %v807
      %v809 = vpop.f32.mrb[0].mxu0
      %810 = vdwg.mxu0
      %v811 = vadd.f32 %v579, %v737
      %v812 = vadd.f32 %v581, %v739
      %v813 = vadd.f32 %v650, %v808
      %s814 = scalar_lea.vmem %s1, 24
      %v815 = vld [vmem:[%s814] sm:$0xff]
      %816 = vrot.lane.b32.xlu0 %v331, 93
      %v817 = vpop.permute.xlu0 %816
      %818 = vrot.lane.b32.xlu0 %v332, 93
      %v819 = vpop.permute.xlu0 %818
      %820 = vrot.lane.b32.xlu0 %v333, 93
      %v821 = vpop.permute.xlu0 %820
      %vm822 = vcmask 760832
      %v823 = vsel %vm822, %v817, %v819
      %v824 = vsel %vm822, %v819, %v821
      %v829 = vsel %vm352, %v815, 0
      %831 = vmatprep.subr.mxu0 %v824
      %832 = vmatpush1.msra.mxu0 %v823
      %833 = vmatprep.subr.mxu0 0.0
      %834 = vmatpush1.msra.mxu0 0.0
      %835 = vmatprep.subr.mxu0 0.0
      %836 = vmatpush1.msra.mxu0 0.0
      %837 = vmatprep.subr.mxu0 0.0
      %838 = vmatpush1.msra.mxu0 0.0
      %839 = vmatprep.subr.mxu0 0.0
      %840 = vmatpush1.msra.mxu0 0.0
      %841 = vmatprep.subr.mxu0 0.0
      %842 = vmatpush1.msra.mxu0 0.0
      %843 = vmatprep.subr.mxu0 0.0
      %844 = vmatpush1.msra.mxu0 0.0
      %845 = vmatprep.subr.mxu0 0.0
      %846 = vmatpush1.msra.mxu0 0.0
      %847 = vmatprep.subr.mxu0 0.0
      %848 = vmatpush1.msra.mxu0 0.0
      %849 = vmatprep.subr.mxu0 0.0
      %850 = vmatpush1.msra.mxu0 0.0
      %851 = vmatprep.subr.mxu0 0.0
      %852 = vmatpush1.msra.mxu0 0.0
      %853 = vmatprep.subr.mxu0 0.0
      %854 = vmatpush1.msra.mxu0 0.0
      %855 = vmatprep.subr.mxu0 0.0
      %856 = vmatpush1.msra.mxu0 0.0
      %857 = vmatprep.subr.mxu0 0.0
      %858 = vmatpush1.msra.mxu0 0.0
      %859 = vmatprep.subr.mxu0 0.0
      %860 = vmatpush1.msra.mxu0 0.0
      %861 = vmatprep.subr.mxu0 0.0
      %862 = vmatpush1.msra.mxu0 0.0
      %863 = vmatprep.subr.mxu0 0.0
      %864 = vmatpush1.msra.mxu0 0.0
      %865 = vmatprep.subr.mxu0 0.0
      %866 = vmatpush1.msra.mxu0 0.0
      %867 = vmatprep.subr.mxu0 0.0
      %868 = vmatpush1.msra.mxu0 0.0
      %869 = vmatprep.subr.mxu0 0.0
      %870 = vmatpush1.msra.mxu0 0.0
      %871 = vmatprep.subr.mxu0 0.0
      %872 = vmatpush1.msra.mxu0 0.0
      %873 = vmatprep.subr.mxu0 0.0
      %874 = vmatpush1.msra.mxu0 0.0
      %875 = vmatprep.subr.mxu0 0.0
      %876 = vmatpush1.msra.mxu0 0.0
      %877 = vmatprep.subr.mxu0 0.0
      %878 = vmatpush1.msra.mxu0 0.0
      %879 = vmatprep.subr.mxu0 0.0
      %880 = vmatpush1.msra.mxu0 0.0
      %881 = vmatprep.subr.mxu0 0.0
      %882 = vmatpush1.msra.mxu0 0.0
      %883 = vmatprep.subr.mxu0 0.0
      %884 = vmatpush1.msra.mxu0 0.0
      %885 = vmatprep.subr.mxu0 0.0
      %886 = vmatpush1.msra.mxu0 0.0
      %887 = vmatprep.subr.mxu0 0.0
      %888 = vmatpush1.msra.mxu0 0.0
      %889 = vmatprep.subr.mxu0 0.0
      %890 = vmatpush1.msra.mxu0 0.0
      %891 = vmatprep.subr.mxu0 0.0
      %892 = vmatpush1.msra.mxu0 0.0
      %893 = vmatprep.subr.mxu0 0.0
      %894 = vmatpush1.msra.mxu0 0.0
      %895 = vmatprep.mubr.f32.mxu0 0.0
      %896 = vmatmul.mubr.f32.gmra.mrb[0].mxu0 %v829
      %v897 = vpop.f32.mrb[0].mxu0
      %v898 = vadd.f32 0.0, %v897
      %v899 = vpop.f32.mrb[0].mxu0
      %v900 = vadd.f32 0.0, %v899
      %901 = vdwg.mxu0
      %902 = vmatprep.subr.mxu0 0.0
      %903 = vmatpush1.msra.mxu0 %v821
      %904 = vmatprep.subr.mxu0 0.0
      %905 = vmatpush1.msra.mxu0 0.0
      %906 = vmatprep.subr.mxu0 0.0
      %907 = vmatpush1.msra.mxu0 0.0
      %908 = vmatprep.subr.mxu0 0.0
      %909 = vmatpush1.msra.mxu0 0.0
      %910 = vmatprep.subr.mxu0 0.0
      %911 = vmatpush1.msra.mxu0 0.0
      %912 = vmatprep.subr.mxu0 0.0
      %913 = vmatpush1.msra.mxu0 0.0
      %914 = vmatprep.subr.mxu0 0.0
      %915 = vmatpush1.msra.mxu0 0.0
      %916 = vmatprep.subr.mxu0 0.0
      %917 = vmatpush1.msra.mxu0 0.0
      %918 = vmatprep.subr.mxu0 0.0
      %919 = vmatpush1.msra.mxu0 0.0
      %920 = vmatprep.subr.mxu0 0.0
      %921 = vmatpush1.msra.mxu0 0.0
      %922 = vmatprep.subr.mxu0 0.0
      %923 = vmatpush1.msra.mxu0 0.0
      %924 = vmatprep.subr.mxu0 0.0
      %925 = vmatpush1.msra.mxu0 0.0
      %926 = vmatprep.subr.mxu0 0.0
      %927 = vmatpush1.msra.mxu0 0.0
      %928 = vmatprep.subr.mxu0 0.0
      %929 = vmatpush1.msra.mxu0 0.0
      %930 = vmatprep.subr.mxu0 0.0
      %931 = vmatpush1.msra.mxu0 0.0
      %932 = vmatprep.subr.mxu0 0.0
      %933 = vmatpush1.msra.mxu0 0.0
      %934 = vmatprep.subr.mxu0 0.0
      %935 = vmatpush1.msra.mxu0 0.0
      %936 = vmatprep.subr.mxu0 0.0
      %937 = vmatpush1.msra.mxu0 0.0
      %938 = vmatprep.subr.mxu0 0.0
      %939 = vmatpush1.msra.mxu0 0.0
      %940 = vmatprep.subr.mxu0 0.0
      %941 = vmatpush1.msra.mxu0 0.0
      %942 = vmatprep.subr.mxu0 0.0
      %943 = vmatpush1.msra.mxu0 0.0
      %944 = vmatprep.subr.mxu0 0.0
      %945 = vmatpush1.msra.mxu0 0.0
      %946 = vmatprep.subr.mxu0 0.0
      %947 = vmatpush1.msra.mxu0 0.0
      %948 = vmatprep.subr.mxu0 0.0
      %949 = vmatpush1.msra.mxu0 0.0
      %950 = vmatprep.subr.mxu0 0.0
      %951 = vmatpush1.msra.mxu0 0.0
      %952 = vmatprep.subr.mxu0 0.0
      %953 = vmatpush1.msra.mxu0 0.0
      %954 = vmatprep.subr.mxu0 0.0
      %955 = vmatpush1.msra.mxu0 0.0
      %956 = vmatprep.subr.mxu0 0.0
      %957 = vmatpush1.msra.mxu0 0.0
      %958 = vmatprep.subr.mxu0 0.0
      %959 = vmatpush1.msra.mxu0 0.0
      %960 = vmatprep.subr.mxu0 0.0
      %961 = vmatpush1.msra.mxu0 0.0
      %962 = vmatprep.subr.mxu0 0.0
      %963 = vmatpush1.msra.mxu0 0.0
      %964 = vmatprep.subr.mxu0 0.0
      %965 = vmatpush1.msra.mxu0 0.0
      %966 = vmatprep.mubr.f32.mxu0 0.0
      %967 = vmatmul.mubr.f32.gmra.mrb[0].mxu0 %v829
      %v968 = vpop.f32.mrb[0].mxu0
      %v969 = vadd.f32 0.0, %v968
      %v970 = vpop.f32.mrb[0].mxu0
      %971 = vdwg.mxu0
      %v972 = vadd.f32 %v811, %v898
      %v973 = vadd.f32 %v812, %v900
      %v974 = vadd.f32 %v813, %v969
      %s975 = scalar_lea.vmem %s1, 32
      %v976 = vld [vmem:[%s975] sm:$0xff]
      %977 = vrot.lane.b32.xlu0 %v331, 92
      %v978 = vpop.permute.xlu0 %977
      %979 = vrot.lane.b32.xlu0 %v332, 92
      %v980 = vpop.permute.xlu0 %979
      %981 = vrot.lane.b32.xlu0 %v333, 92
      %v982 = vpop.permute.xlu0 %981
      %vm983 = vcmask 752640
      %v984 = vsel %vm983, %v978, %v980
      %v985 = vsel %vm983, %v980, %v982
      %v990 = vsel %vm352, %v976, 0
      %992 = vmatprep.subr.mxu0 %v985
      %993 = vmatpush1.msra.mxu0 %v984
      %994 = vmatprep.subr.mxu0 0.0
      %995 = vmatpush1.msra.mxu0 0.0
      %996 = vmatprep.subr.mxu0 0.0
      %997 = vmatpush1.msra.mxu0 0.0
      %998 = vmatprep.subr.mxu0 0.0
      %999 = vmatpush1.msra.mxu0 0.0
      %1000 = vmatprep.subr.mxu0 0.0
      %1001 = vmatpush1.msra.mxu0 0.0
      %1002 = vmatprep.subr.mxu0 0.0
      %1003 = vmatpush1.msra.mxu0 0.0
      %1004 = vmatprep.subr.mxu0 0.0
      %1005 = vmatpush1.msra.mxu0 0.0
      %1006 = vmatprep.subr.mxu0 0.0
      %1007 = vmatpush1.msra.mxu0 0.0
      %1008 = vmatprep.subr.mxu0 0.0
      %1009 = vmatpush1.msra.mxu0 0.0
      %1010 = vmatprep.subr.mxu0 0.0
      %1011 = vmatpush1.msra.mxu0 0.0
      %1012 = vmatprep.subr.mxu0 0.0
      %1013 = vmatpush1.msra.mxu0 0.0
      %1014 = vmatprep.subr.mxu0 0.0
      %1015 = vmatpush1.msra.mxu0 0.0
      %1016 = vmatprep.subr.mxu0 0.0
      %1017 = vmatpush1.msra.mxu0 0.0
      %1018 = vmatprep.subr.mxu0 0.0
      %1019 = vmatpush1.msra.mxu0 0.0
      %1020 = vmatprep.subr.mxu0 0.0
      %1021 = vmatpush1.msra.mxu0 0.0
      %1022 = vmatprep.subr.mxu0 0.0
      %1023 = vmatpush1.msra.mxu0 0.0
      %1024 = vmatprep.subr.mxu0 0.0
      %1025 = vmatpush1.msra.mxu0 0.0
      %1026 = vmatprep.subr.mxu0 0.0
      %1027 = vmatpush1.msra.mxu0 0.0
      %1028 = vmatprep.subr.mxu0 0.0
      %1029 = vmatpush1.msra.mxu0 0.0
      %1030 = vmatprep.subr.mxu0 0.0
      %1031 = vmatpush1.msra.mxu0 0.0
      %1032 = vmatprep.subr.mxu0 0.0
      %1033 = vmatpush1.msra.mxu0 0.0
      %1034 = vmatprep.subr.mxu0 0.0
      %1035 = vmatpush1.msra.mxu0 0.0
      %1036 = vmatprep.subr.mxu0 0.0
      %1037 = vmatpush1.msra.mxu0 0.0
      %1038 = vmatprep.subr.mxu0 0.0
      %1039 = vmatpush1.msra.mxu0 0.0
      %1040 = vmatprep.subr.mxu0 0.0
      %1041 = vmatpush1.msra.mxu0 0.0
      %1042 = vmatprep.subr.mxu0 0.0
      %1043 = vmatpush1.msra.mxu0 0.0
      %1044 = vmatprep.subr.mxu0 0.0
      %1045 = vmatpush1.msra.mxu0 0.0
      %1046 = vmatprep.subr.mxu0 0.0
      %1047 = vmatpush1.msra.mxu0 0.0
      %1048 = vmatprep.subr.mxu0 0.0
      %1049 = vmatpush1.msra.mxu0 0.0
      %1050 = vmatprep.subr.mxu0 0.0
      %1051 = vmatpush1.msra.mxu0 0.0
      %1052 = vmatprep.subr.mxu0 0.0
      %1053 = vmatpush1.msra.mxu0 0.0
      %1054 = vmatprep.subr.mxu0 0.0
      %1055 = vmatpush1.msra.mxu0 0.0
      %1056 = vmatprep.mubr.f32.mxu0 0.0
      %1057 = vmatmul.mubr.f32.gmra.mrb[0].mxu0 %v990
      %v1058 = vpop.f32.mrb[0].mxu0
      %v1059 = vadd.f32 0.0, %v1058
      %v1060 = vpop.f32.mrb[0].mxu0
      %v1061 = vadd.f32 0.0, %v1060
      %1062 = vdwg.mxu0
      %1063 = vmatprep.subr.mxu0 0.0
      %1064 = vmatpush1.msra.mxu0 %v982
      %1065 = vmatprep.subr.mxu0 0.0
      %1066 = vmatpush1.msra.mxu0 0.0
      %1067 = vmatprep.subr.mxu0 0.0
      %1068 = vmatpush1.msra.mxu0 0.0
      %1069 = vmatprep.subr.mxu0 0.0
      %1070 = vmatpush1.msra.mxu0 0.0
      %1071 = vmatprep.subr.mxu0 0.0
      %1072 = vmatpush1.msra.mxu0 0.0
      %1073 = vmatprep.subr.mxu0 0.0
      %1074 = vmatpush1.msra.mxu0 0.0
      %1075 = vmatprep.subr.mxu0 0.0
      %1076 = vmatpush1.msra.mxu0 0.0
      %1077 = vmatprep.subr.mxu0 0.0
      %1078 = vmatpush1.msra.mxu0 0.0
      %1079 = vmatprep.subr.mxu0 0.0
      %1080 = vmatpush1.msra.mxu0 0.0
      %1081 = vmatprep.subr.mxu0 0.0
      %1082 = vmatpush1.msra.mxu0 0.0
      %1083 = vmatprep.subr.mxu0 0.0
      %1084 = vmatpush1.msra.mxu0 0.0
      %1085 = vmatprep.subr.mxu0 0.0
      %1086 = vmatpush1.msra.mxu0 0.0
      %1087 = vmatprep.subr.mxu0 0.0
      %1088 = vmatpush1.msra.mxu0 0.0
      %1089 = vmatprep.subr.mxu0 0.0
      %1090 = vmatpush1.msra.mxu0 0.0
      %1091 = vmatprep.subr.mxu0 0.0
      %1092 = vmatpush1.msra.mxu0 0.0
      %1093 = vmatprep.subr.mxu0 0.0
      %1094 = vmatpush1.msra.mxu0 0.0
      %1095 = vmatprep.subr.mxu0 0.0
      %1096 = vmatpush1.msra.mxu0 0.0
      %1097 = vmatprep.subr.mxu0 0.0
      %1098 = vmatpush1.msra.mxu0 0.0
      %1099 = vmatprep.subr.mxu0 0.0
      %1100 = vmatpush1.msra.mxu0 0.0
      %1101 = vmatprep.subr.mxu0 0.0
      %1102 = vmatpush1.msra.mxu0 0.0
      %1103 = vmatprep.subr.mxu0 0.0
      %1104 = vmatpush1.msra.mxu0 0.0
      %1105 = vmatprep.subr.mxu0 0.0
      %1106 = vmatpush1.msra.mxu0 0.0
      %1107 = vmatprep.subr.mxu0 0.0
      %1108 = vmatpush1.msra.mxu0 0.0
      %1109 = vmatprep.subr.mxu0 0.0
      %1110 = vmatpush1.msra.mxu0 0.0
      %1111 = vmatprep.subr.mxu0 0.0
      %1112 = vmatpush1.msra.mxu0 0.0
      %1113 = vmatprep.subr.mxu0 0.0
      %1114 = vmatpush1.msra.mxu0 0.0
      %1115 = vmatprep.subr.mxu0 0.0
      %1116 = vmatpush1.msra.mxu0 0.0
      %1117 = vmatprep.subr.mxu0 0.0
      %1118 = vmatpush1.msra.mxu0 0.0
      %1119 = vmatprep.subr.mxu0 0.0
      %1120 = vmatpush1.msra.mxu0 0.0
      %1121 = vmatprep.subr.mxu0 0.0
      %1122 = vmatpush1.msra.mxu0 0.0
      %1123 = vmatprep.subr.mxu0 0.0
      %1124 = vmatpush1.msra.mxu0 0.0
      %1125 = vmatprep.subr.mxu0 0.0
      %1126 = vmatpush1.msra.mxu0 0.0
      %1127 = vmatprep.mubr.f32.mxu0 0.0
      %1128 = vmatmul.mubr.f32.gmra.mrb[0].mxu0 %v990
      %v1129 = vpop.f32.mrb[0].mxu0
      %v1130 = vadd.f32 0.0, %v1129
      %v1131 = vpop.f32.mrb[0].mxu0
      %1132 = vdwg.mxu0
      %v1133 = vadd.f32 %v972, %v1059
      %v1134 = vadd.f32 %v973, %v1061
      %v1135 = vadd.f32 %v974, %v1130
      %s1136 = scalar_lea.vmem %s1, 40
      %v1137 = vld [vmem:[%s1136] sm:$0xff]
      %1138 = vrot.lane.b32.xlu0 %v331, 91
      %v1139 = vpop.permute.xlu0 %1138
      %1140 = vrot.lane.b32.xlu0 %v332, 91
      %v1141 = vpop.permute.xlu0 %1140
      %1142 = vrot.lane.b32.xlu0 %v333, 91
      %v1143 = vpop.permute.xlu0 %1142
      %vm1144 = vcmask 744448
      %v1145 = vsel %vm1144, %v1139, %v1141
      %v1146 = vsel %vm1144, %v1141, %v1143
      %v1151 = vsel %vm352, %v1137, 0
      %1153 = vmatprep.subr.mxu0 %v1146
      %1154 = vmatpush1.msra.mxu0 %v1145
      %1155 = vmatprep.subr.mxu0 0.0
      %1156 = vmatpush1.msra.mxu0 0.0
      %1157 = vmatprep.subr.mxu0 0.0
      %1158 = vmatpush1.msra.mxu0 0.0
      %1159 = vmatprep.subr.mxu0 0.0
      %1160 = vmatpush1.msra.mxu0 0.0
      %1161 = vmatprep.subr.mxu0 0.0
      %1162 = vmatpush1.msra.mxu0 0.0
      %1163 = vmatprep.subr.mxu0 0.0
      %1164 = vmatpush1.msra.mxu0 0.0
      %1165 = vmatprep.subr.mxu0 0.0
      %1166 = vmatpush1.msra.mxu0 0.0
      %1167 = vmatprep.subr.mxu0 0.0
      %1168 = vmatpush1.msra.mxu0 0.0
      %1169 = vmatprep.subr.mxu0 0.0
      %1170 = vmatpush1.msra.mxu0 0.0
      %1171 = vmatprep.subr.mxu0 0.0
      %1172 = vmatpush1.msra.mxu0 0.0
      %1173 = vmatprep.subr.mxu0 0.0
      %1174 = vmatpush1.msra.mxu0 0.0
      %1175 = vmatprep.subr.mxu0 0.0
      %1176 = vmatpush1.msra.mxu0 0.0
      %1177 = vmatprep.subr.mxu0 0.0
      %1178 = vmatpush1.msra.mxu0 0.0
      %1179 = vmatprep.subr.mxu0 0.0
      %1180 = vmatpush1.msra.mxu0 0.0
      %1181 = vmatprep.subr.mxu0 0.0
      %1182 = vmatpush1.msra.mxu0 0.0
      %1183 = vmatprep.subr.mxu0 0.0
      %1184 = vmatpush1.msra.mxu0 0.0
      %1185 = vmatprep.subr.mxu0 0.0
      %1186 = vmatpush1.msra.mxu0 0.0
      %1187 = vmatprep.subr.mxu0 0.0
      %1188 = vmatpush1.msra.mxu0 0.0
      %1189 = vmatprep.subr.mxu0 0.0
      %1190 = vmatpush1.msra.mxu0 0.0
      %1191 = vmatprep.subr.mxu0 0.0
      %1192 = vmatpush1.msra.mxu0 0.0
      %1193 = vmatprep.subr.mxu0 0.0
      %1194 = vmatpush1.msra.mxu0 0.0
      %1195 = vmatprep.subr.mxu0 0.0
      %1196 = vmatpush1.msra.mxu0 0.0
      %1197 = vmatprep.subr.mxu0 0.0
      %1198 = vmatpush1.msra.mxu0 0.0
      %1199 = vmatprep.subr.mxu0 0.0
      %1200 = vmatpush1.msra.mxu0 0.0
      %1201 = vmatprep.subr.mxu0 0.0
      %1202 = vmatpush1.msra.mxu0 0.0
      %1203 = vmatprep.subr.mxu0 0.0
      %1204 = vmatpush1.msra.mxu0 0.0
      %1205 = vmatprep.subr.mxu0 0.0
      %1206 = vmatpush1.msra.mxu0 0.0
      %1207 = vmatprep.subr.mxu0 0.0
      %1208 = vmatpush1.msra.mxu0 0.0
      %1209 = vmatprep.subr.mxu0 0.0
      %1210 = vmatpush1.msra.mxu0 0.0
      %1211 = vmatprep.subr.mxu0 0.0
      %1212 = vmatpush1.msra.mxu0 0.0
      %1213 = vmatprep.subr.mxu0 0.0
      %1214 = vmatpush1.msra.mxu0 0.0
      %1215 = vmatprep.subr.mxu0 0.0
      %1216 = vmatpush1.msra.mxu0 0.0
      %1217 = vmatprep.mubr.f32.mxu0 0.0
      %1218 = vmatmul.mubr.f32.gmra.mrb[0].mxu0 %v1151
      %v1219 = vpop.f32.mrb[0].mxu0
      %v1220 = vadd.f32 0.0, %v1219
      %v1221 = vpop.f32.mrb[0].mxu0
      %v1222 = vadd.f32 0.0, %v1221
      %1223 = vdwg.mxu0
      %1224 = vmatprep.subr.mxu0 0.0
      %1225 = vmatpush1.msra.mxu0 %v1143
      %1226 = vmatprep.subr.mxu0 0.0
      %1227 = vmatpush1.msra.mxu0 0.0
      %1228 = vmatprep.subr.mxu0 0.0
      %1229 = vmatpush1.msra.mxu0 0.0
      %1230 = vmatprep.subr.mxu0 0.0
      %1231 = vmatpush1.msra.mxu0 0.0
      %1232 = vmatprep.subr.mxu0 0.0
      %1233 = vmatpush1.msra.mxu0 0.0
      %1234 = vmatprep.subr.mxu0 0.0
      %1235 = vmatpush1.msra.mxu0 0.0
      %1236 = vmatprep.subr.mxu0 0.0
      %1237 = vmatpush1.msra.mxu0 0.0
      %1238 = vmatprep.subr.mxu0 0.0
      %1239 = vmatpush1.msra.mxu0 0.0
      %1240 = vmatprep.subr.mxu0 0.0
      %1241 = vmatpush1.msra.mxu0 0.0
      %1242 = vmatprep.subr.mxu0 0.0
      %1243 = vmatpush1.msra.mxu0 0.0
      %1244 = vmatprep.subr.mxu0 0.0
      %1245 = vmatpush1.msra.mxu0 0.0
      %1246 = vmatprep.subr.mxu0 0.0
      %1247 = vmatpush1.msra.mxu0 0.0
      %1248 = vmatprep.subr.mxu0 0.0
      %1249 = vmatpush1.msra.mxu0 0.0
      %1250 = vmatprep.subr.mxu0 0.0
      %1251 = vmatpush1.msra.mxu0 0.0
      %1252 = vmatprep.subr.mxu0 0.0
      %1253 = vmatpush1.msra.mxu0 0.0
      %1254 = vmatprep.subr.mxu0 0.0
      %1255 = vmatpush1.msra.mxu0 0.0
      %1256 = vmatprep.subr.mxu0 0.0
      %1257 = vmatpush1.msra.mxu0 0.0
      %1258 = vmatprep.subr.mxu0 0.0
      %1259 = vmatpush1.msra.mxu0 0.0
      %1260 = vmatprep.subr.mxu0 0.0
      %1261 = vmatpush1.msra.mxu0 0.0
      %1262 = vmatprep.subr.mxu0 0.0
      %1263 = vmatpush1.msra.mxu0 0.0
      %1264 = vmatprep.subr.mxu0 0.0
      %1265 = vmatpush1.msra.mxu0 0.0
      %1266 = vmatprep.subr.mxu0 0.0
      %1267 = vmatpush1.msra.mxu0 0.0
      %1268 = vmatprep.subr.mxu0 0.0
      %1269 = vmatpush1.msra.mxu0 0.0
      %1270 = vmatprep.subr.mxu0 0.0
      %1271 = vmatpush1.msra.mxu0 0.0
      %1272 = vmatprep.subr.mxu0 0.0
      %1273 = vmatpush1.msra.mxu0 0.0
      %1274 = vmatprep.subr.mxu0 0.0
      %1275 = vmatpush1.msra.mxu0 0.0
      %1276 = vmatprep.subr.mxu0 0.0
      %1277 = vmatpush1.msra.mxu0 0.0
      %1278 = vmatprep.subr.mxu0 0.0
      %1279 = vmatpush1.msra.mxu0 0.0
      %1280 = vmatprep.subr.mxu0 0.0
      %1281 = vmatpush1.msra.mxu0 0.0
      %1282 = vmatprep.subr.mxu0 0.0
      %1283 = vmatpush1.msra.mxu0 0.0
      %1284 = vmatprep.subr.mxu0 0.0
      %1285 = vmatpush1.msra.mxu0 0.0
      %1286 = vmatprep.subr.mxu0 0.0
      %1287 = vmatpush1.msra.mxu0 0.0
      %1288 = vmatprep.mubr.f32.mxu0 0.0
      %1289 = vmatmul.mubr.f32.gmra.mrb[0].mxu0 %v1151
      %v1290 = vpop.f32.mrb[0].mxu0
      %v1291 = vadd.f32 0.0, %v1290
      %v1292 = vpop.f32.mrb[0].mxu0
      %1293 = vdwg.mxu0
      %v1294 = vadd.f32 %v1133, %v1220
      %v1295 = vadd.f32 %v1134, %v1222
      %v1296 = vadd.f32 %v1135, %v1291
      %s1297 = scalar_lea.vmem %s1, 48
      %v1298 = vld [vmem:[%s1297] sm:$0xff]
      %1299 = vrot.lane.b32.xlu0 %v331, 75
      %v1300 = vpop.permute.xlu0 %1299
      %1301 = vrot.lane.b32.xlu0 %v332, 75
      %v1302 = vpop.permute.xlu0 %1301
      %1303 = vrot.lane.b32.xlu0 %v333, 75
      %v1304 = vpop.permute.xlu0 %1303
      %vm1305 = vcmask 613376
      %v1306 = vsel %vm1305, %v1300, %v1302
      %v1307 = vsel %vm1305, %v1302, %v1304
      %v1312 = vsel %vm352, %v1298, 0
      %1314 = vmatprep.subr.mxu0 %v1307
      %1315 = vmatpush1.msra.mxu0 %v1306
      %1316 = vmatprep.subr.mxu0 0.0
      %1317 = vmatpush1.msra.mxu0 0.0
      %1318 = vmatprep.subr.mxu0 0.0
      %1319 = vmatpush1.msra.mxu0 0.0
      %1320 = vmatprep.subr.mxu0 0.0
      %1321 = vmatpush1.msra.mxu0 0.0
      %1322 = vmatprep.subr.mxu0 0.0
      %1323 = vmatpush1.msra.mxu0 0.0
      %1324 = vmatprep.subr.mxu0 0.0
      %1325 = vmatpush1.msra.mxu0 0.0
      %1326 = vmatprep.subr.mxu0 0.0
      %1327 = vmatpush1.msra.mxu0 0.0
      %1328 = vmatprep.subr.mxu0 0.0
      %1329 = vmatpush1.msra.mxu0 0.0
      %1330 = vmatprep.subr.mxu0 0.0
      %1331 = vmatpush1.msra.mxu0 0.0
      %1332 = vmatprep.subr.mxu0 0.0
      %1333 = vmatpush1.msra.mxu0 0.0
      %1334 = vmatprep.subr.mxu0 0.0
      %1335 = vmatpush1.msra.mxu0 0.0
      %1336 = vmatprep.subr.mxu0 0.0
      %1337 = vmatpush1.msra.mxu0 0.0
      %1338 = vmatprep.subr.mxu0 0.0
      %1339 = vmatpush1.msra.mxu0 0.0
      %1340 = vmatprep.subr.mxu0 0.0
      %1341 = vmatpush1.msra.mxu0 0.0
      %1342 = vmatprep.subr.mxu0 0.0
      %1343 = vmatpush1.msra.mxu0 0.0
      %1344 = vmatprep.subr.mxu0 0.0
      %1345 = vmatpush1.msra.mxu0 0.0
      %1346 = vmatprep.subr.mxu0 0.0
      %1347 = vmatpush1.msra.mxu0 0.0
      %1348 = vmatprep.subr.mxu0 0.0
      %1349 = vmatpush1.msra.mxu0 0.0
      %1350 = vmatprep.subr.mxu0 0.0
      %1351 = vmatpush1.msra.mxu0 0.0
      %1352 = vmatprep.subr.mxu0 0.0
      %1353 = vmatpush1.msra.mxu0 0.0
      %1354 = vmatprep.subr.mxu0 0.0
      %1355 = vmatpush1.msra.mxu0 0.0
      %1356 = vmatprep.subr.mxu0 0.0
      %1357 = vmatpush1.msra.mxu0 0.0
      %1358 = vmatprep.subr.mxu0 0.0
      %1359 = vmatpush1.msra.mxu0 0.0
      %1360 = vmatprep.subr.mxu0 0.0
      %1361 = vmatpush1.msra.mxu0 0.0
      %1362 = vmatprep.subr.mxu0 0.0
      %1363 = vmatpush1.msra.mxu0 0.0
      %1364 = vmatprep.subr.mxu0 0.0
      %1365 = vmatpush1.msra.mxu0 0.0
      %1366 = vmatprep.subr.mxu0 0.0
      %1367 = vmatpush1.msra.mxu0 0.0
      %1368 = vmatprep.subr.mxu0 0.0
      %1369 = vmatpush1.msra.mxu0 0.0
      %1370 = vmatprep.subr.mxu0 0.0
      %1371 = vmatpush1.msra.mxu0 0.0
      %1372 = vmatprep.subr.mxu0 0.0
      %1373 = vmatpush1.msra.mxu0 0.0
      %1374 = vmatprep.subr.mxu0 0.0
      %1375 = vmatpush1.msra.mxu0 0.0
      %1376 = vmatprep.subr.mxu0 0.0
      %1377 = vmatpush1.msra.mxu0 0.0
      %1378 = vmatprep.mubr.f32.mxu0 0.0
      %1379 = vmatmul.mubr.f32.gmra.mrb[0].mxu0 %v1312
      %v1380 = vpop.f32.mrb[0].mxu0
      %v1381 = vadd.f32 0.0, %v1380
      %v1382 = vpop.f32.mrb[0].mxu0
      %v1383 = vadd.f32 0.0, %v1382
      %1384 = vdwg.mxu0
      %1385 = vmatprep.subr.mxu0 0.0
      %1386 = vmatpush1.msra.mxu0 %v1304
      %1387 = vmatprep.subr.mxu0 0.0
      %1388 = vmatpush1.msra.mxu0 0.0
      %1389 = vmatprep.subr.mxu0 0.0
      %1390 = vmatpush1.msra.mxu0 0.0
      %1391 = vmatprep.subr.mxu0 0.0
      %1392 = vmatpush1.msra.mxu0 0.0
      %1393 = vmatprep.subr.mxu0 0.0
      %1394 = vmatpush1.msra.mxu0 0.0
      %1395 = vmatprep.subr.mxu0 0.0
      %1396 = vmatpush1.msra.mxu0 0.0
      %1397 = vmatprep.subr.mxu0 0.0
      %1398 = vmatpush1.msra.mxu0 0.0
      %1399 = vmatprep.subr.mxu0 0.0
      %1400 = vmatpush1.msra.mxu0 0.0
      %1401 = vmatprep.subr.mxu0 0.0
      %1402 = vmatpush1.msra.mxu0 0.0
      %1403 = vmatprep.subr.mxu0 0.0
      %1404 = vmatpush1.msra.mxu0 0.0
      %1405 = vmatprep.subr.mxu0 0.0
      %1406 = vmatpush1.msra.mxu0 0.0
      %1407 = vmatprep.subr.mxu0 0.0
      %1408 = vmatpush1.msra.mxu0 0.0
      %1409 = vmatprep.subr.mxu0 0.0
      %1410 = vmatpush1.msra.mxu0 0.0
      %1411 = vmatprep.subr.mxu0 0.0
      %1412 = vmatpush1.msra.mxu0 0.0
      %1413 = vmatprep.subr.mxu0 0.0
      %1414 = vmatpush1.msra.mxu0 0.0
      %1415 = vmatprep.subr.mxu0 0.0
      %1416 = vmatpush1.msra.mxu0 0.0
      %1417 = vmatprep.subr.mxu0 0.0
      %1418 = vmatpush1.msra.mxu0 0.0
      %1419 = vmatprep.subr.mxu0 0.0
      %1420 = vmatpush1.msra.mxu0 0.0
      %1421 = vmatprep.subr.mxu0 0.0
      %1422 = vmatpush1.msra.mxu0 0.0
      %1423 = vmatprep.subr.mxu0 0.0
      %1424 = vmatpush1.msra.mxu0 0.0
      %1425 = vmatprep.subr.mxu0 0.0
      %1426 = vmatpush1.msra.mxu0 0.0
      %1427 = vmatprep.subr.mxu0 0.0
      %1428 = vmatpush1.msra.mxu0 0.0
      %1429 = vmatprep.subr.mxu0 0.0
      %1430 = vmatpush1.msra.mxu0 0.0
      %1431 = vmatprep.subr.mxu0 0.0
      %1432 = vmatpush1.msra.mxu0 0.0
      %1433 = vmatprep.subr.mxu0 0.0
      %1434 = vmatpush1.msra.mxu0 0.0
      %1435 = vmatprep.subr.mxu0 0.0
      %1436 = vmatpush1.msra.mxu0 0.0
      %1437 = vmatprep.subr.mxu0 0.0
      %1438 = vmatpush1.msra.mxu0 0.0
      %1439 = vmatprep.subr.mxu0 0.0
      %1440 = vmatpush1.msra.mxu0 0.0
      %1441 = vmatprep.subr.mxu0 0.0
      %1442 = vmatpush1.msra.mxu0 0.0
      %1443 = vmatprep.subr.mxu0 0.0
      %1444 = vmatpush1.msra.mxu0 0.0
      %1445 = vmatprep.subr.mxu0 0.0
      %1446 = vmatpush1.msra.mxu0 0.0
      %1447 = vmatprep.subr.mxu0 0.0
      %1448 = vmatpush1.msra.mxu0 0.0
      %1449 = vmatprep.mubr.f32.mxu0 0.0
      %1450 = vmatmul.mubr.f32.gmra.mrb[0].mxu0 %v1312
      %v1451 = vpop.f32.mrb[0].mxu0
      %v1452 = vadd.f32 0.0, %v1451
      %v1453 = vpop.f32.mrb[0].mxu0
      %1454 = vdwg.mxu0
      %v1455 = vadd.f32 %v1294, %v1381
      %v1456 = vadd.f32 %v1295, %v1383
      %v1457 = vadd.f32 %v1296, %v1452
      %s1458 = scalar_lea.vmem %s1, 56
      %v1459 = vld [vmem:[%s1458] sm:$0xff]
      %1460 = vrot.lane.b32.xlu0 %v331, 74
      %v1461 = vpop.permute.xlu0 %1460
      %1462 = vrot.lane.b32.xlu0 %v332, 74
      %v1463 = vpop.permute.xlu0 %1462
      %1464 = vrot.lane.b32.xlu0 %v333, 74
      %v1465 = vpop.permute.xlu0 %1464
      %vm1466 = vcmask 605184
      %v1467 = vsel %vm1466, %v1461, %v1463
      %v1468 = vsel %vm1466, %v1463, %v1465
      %v1473 = vsel %vm352, %v1459, 0
      %1475 = vmatprep.subr.mxu0 %v1468
      %1476 = vmatpush1.msra.mxu0 %v1467
      %1477 = vmatprep.subr.mxu0 0.0
      %1478 = vmatpush1.msra.mxu0 0.0
      %1479 = vmatprep.subr.mxu0 0.0
      %1480 = vmatpush1.msra.mxu0 0.0
      %1481 = vmatprep.subr.mxu0 0.0
      %1482 = vmatpush1.msra.mxu0 0.0
      %1483 = vmatprep.subr.mxu0 0.0
      %1484 = vmatpush1.msra.mxu0 0.0
      %1485 = vmatprep.subr.mxu0 0.0
      %1486 = vmatpush1.msra.mxu0 0.0
      %1487 = vmatprep.subr.mxu0 0.0
      %1488 = vmatpush1.msra.mxu0 0.0
      %1489 = vmatprep.subr.mxu0 0.0
      %1490 = vmatpush1.msra.mxu0 0.0
      %1491 = vmatprep.subr.mxu0 0.0
      %1492 = vmatpush1.msra.mxu0 0.0
      %1493 = vmatprep.subr.mxu0 0.0
      %1494 = vmatpush1.msra.mxu0 0.0
      %1495 = vmatprep.subr.mxu0 0.0
      %1496 = vmatpush1.msra.mxu0 0.0
      %1497 = vmatprep.subr.mxu0 0.0
      %1498 = vmatpush1.msra.mxu0 0.0
      %1499 = vmatprep.subr.mxu0 0.0
      %1500 = vmatpush1.msra.mxu0 0.0
      %1501 = vmatprep.subr.mxu0 0.0
      %1502 = vmatpush1.msra.mxu0 0.0
      %1503 = vmatprep.subr.mxu0 0.0
      %1504 = vmatpush1.msra.mxu0 0.0
      %1505 = vmatprep.subr.mxu0 0.0
      %1506 = vmatpush1.msra.mxu0 0.0
      %1507 = vmatprep.subr.mxu0 0.0
      %1508 = vmatpush1.msra.mxu0 0.0
      %1509 = vmatprep.subr.mxu0 0.0
      %1510 = vmatpush1.msra.mxu0 0.0
      %1511 = vmatprep.subr.mxu0 0.0
      %1512 = vmatpush1.msra.mxu0 0.0
      %1513 = vmatprep.subr.mxu0 0.0
      %1514 = vmatpush1.msra.mxu0 0.0
      %1515 = vmatprep.subr.mxu0 0.0
      %1516 = vmatpush1.msra.mxu0 0.0
      %1517 = vmatprep.subr.mxu0 0.0
      %1518 = vmatpush1.msra.mxu0 0.0
      %1519 = vmatprep.subr.mxu0 0.0
      %1520 = vmatpush1.msra.mxu0 0.0
      %1521 = vmatprep.subr.mxu0 0.0
      %1522 = vmatpush1.msra.mxu0 0.0
      %1523 = vmatprep.subr.mxu0 0.0
      %1524 = vmatpush1.msra.mxu0 0.0
      %1525 = vmatprep.subr.mxu0 0.0
      %1526 = vmatpush1.msra.mxu0 0.0
      %1527 = vmatprep.subr.mxu0 0.0
      %1528 = vmatpush1.msra.mxu0 0.0
      %1529 = vmatprep.subr.mxu0 0.0
      %1530 = vmatpush1.msra.mxu0 0.0
      %1531 = vmatprep.subr.mxu0 0.0
      %1532 = vmatpush1.msra.mxu0 0.0
      %1533 = vmatprep.subr.mxu0 0.0
      %1534 = vmatpush1.msra.mxu0 0.0
      %1535 = vmatprep.subr.mxu0 0.0
      %1536 = vmatpush1.msra.mxu0 0.0
      %1537 = vmatprep.subr.mxu0 0.0
      %1538 = vmatpush1.msra.mxu0 0.0
      %1539 = vmatprep.mubr.f32.mxu0 0.0
      %1540 = vmatmul.mubr.f32.gmra.mrb[0].mxu0 %v1473
      %v1541 = vpop.f32.mrb[0].mxu0
      %v1542 = vadd.f32 0.0, %v1541
      %v1543 = vpop.f32.mrb[0].mxu0
      %v1544 = vadd.f32 0.0, %v1543
      %1545 = vdwg.mxu0
      %1546 = vmatprep.subr.mxu0 0.0
      %1547 = vmatpush1.msra.mxu0 %v1465
      %1548 = vmatprep.subr.mxu0 0.0
      %1549 = vmatpush1.msra.mxu0 0.0
      %1550 = vmatprep.subr.mxu0 0.0
      %1551 = vmatpush1.msra.mxu0 0.0
      %1552 = vmatprep.subr.mxu0 0.0
      %1553 = vmatpush1.msra.mxu0 0.0
      %1554 = vmatprep.subr.mxu0 0.0
      %1555 = vmatpush1.msra.mxu0 0.0
      %1556 = vmatprep.subr.mxu0 0.0
      %1557 = vmatpush1.msra.mxu0 0.0
      %1558 = vmatprep.subr.mxu0 0.0
      %1559 = vmatpush1.msra.mxu0 0.0
      %1560 = vmatprep.subr.mxu0 0.0
      %1561 = vmatpush1.msra.mxu0 0.0
      %1562 = vmatprep.subr.mxu0 0.0
      %1563 = vmatpush1.msra.mxu0 0.0
      %1564 = vmatprep.subr.mxu0 0.0
      %1565 = vmatpush1.msra.mxu0 0.0
      %1566 = vmatprep.subr.mxu0 0.0
      %1567 = vmatpush1.msra.mxu0 0.0
      %1568 = vmatprep.subr.mxu0 0.0
      %1569 = vmatpush1.msra.mxu0 0.0
      %1570 = vmatprep.subr.mxu0 0.0
      %1571 = vmatpush1.msra.mxu0 0.0
      %1572 = vmatprep.subr.mxu0 0.0
      %1573 = vmatpush1.msra.mxu0 0.0
      %1574 = vmatprep.subr.mxu0 0.0
      %1575 = vmatpush1.msra.mxu0 0.0
      %1576 = vmatprep.subr.mxu0 0.0
      %1577 = vmatpush1.msra.mxu0 0.0
      %1578 = vmatprep.subr.mxu0 0.0
      %1579 = vmatpush1.msra.mxu0 0.0
      %1580 = vmatprep.subr.mxu0 0.0
      %1581 = vmatpush1.msra.mxu0 0.0
      %1582 = vmatprep.subr.mxu0 0.0
      %1583 = vmatpush1.msra.mxu0 0.0
      %1584 = vmatprep.subr.mxu0 0.0
      %1585 = vmatpush1.msra.mxu0 0.0
      %1586 = vmatprep.subr.mxu0 0.0
      %1587 = vmatpush1.msra.mxu0 0.0
      %1588 = vmatprep.subr.mxu0 0.0
      %1589 = vmatpush1.msra.mxu0 0.0
      %1590 = vmatprep.subr.mxu0 0.0
      %1591 = vmatpush1.msra.mxu0 0.0
      %1592 = vmatprep.subr.mxu0 0.0
      %1593 = vmatpush1.msra.mxu0 0.0
      %1594 = vmatprep.subr.mxu0 0.0
      %1595 = vmatpush1.msra.mxu0 0.0
      %1596 = vmatprep.subr.mxu0 0.0
      %1597 = vmatpush1.msra.mxu0 0.0
      %1598 = vmatprep.subr.mxu0 0.0
      %1599 = vmatpush1.msra.mxu0 0.0
      %1600 = vmatprep.subr.mxu0 0.0
      %1601 = vmatpush1.msra.mxu0 0.0
      %1602 = vmatprep.subr.mxu0 0.0
      %1603 = vmatpush1.msra.mxu0 0.0
      %1604 = vmatprep.subr.mxu0 0.0
      %1605 = vmatpush1.msra.mxu0 0.0
      %1606 = vmatprep.subr.mxu0 0.0
      %1607 = vmatpush1.msra.mxu0 0.0
      %1608 = vmatprep.subr.mxu0 0.0
      %1609 = vmatpush1.msra.mxu0 0.0
      %1610 = vmatprep.mubr.f32.mxu0 0.0
      %1611 = vmatmul.mubr.f32.gmra.mrb[0].mxu0 %v1473
      %v1612 = vpop.f32.mrb[0].mxu0
      %v1613 = vadd.f32 0.0, %v1612
      %v1614 = vpop.f32.mrb[0].mxu0
      %1615 = vdwg.mxu0
      %v1616 = vadd.f32 %v1455, %v1542
      %v1617 = vadd.f32 %v1456, %v1544
      %v1618 = vadd.f32 %v1457, %v1613
      %s1619 = scalar_lea.vmem %s1, 64
      %v1620 = vld [vmem:[%s1619] sm:$0xff]
      %1621 = vrot.lane.b32.xlu0 %v331, 73
      %v1622 = vpop.permute.xlu0 %1621
      %1623 = vrot.lane.b32.xlu0 %v332, 73
      %v1624 = vpop.permute.xlu0 %1623
      %1625 = vrot.lane.b32.xlu0 %v333, 73
      %v1626 = vpop.permute.xlu0 %1625
      %vm1627 = vcmask 596992
      %v1628 = vsel %vm1627, %v1622, %v1624
      %v1629 = vsel %vm1627, %v1624, %v1626
      %v1634 = vsel %vm352, %v1620, 0
      %1636 = vmatprep.subr.mxu0 %v1629
      %1637 = vmatpush1.msra.mxu0 %v1628
      %1638 = vmatprep.subr.mxu0 0.0
      %1639 = vmatpush1.msra.mxu0 0.0
      %1640 = vmatprep.subr.mxu0 0.0
      %1641 = vmatpush1.msra.mxu0 0.0
      %1642 = vmatprep.subr.mxu0 0.0
      %1643 = vmatpush1.msra.mxu0 0.0
      %1644 = vmatprep.subr.mxu0 0.0
      %1645 = vmatpush1.msra.mxu0 0.0
      %1646 = vmatprep.subr.mxu0 0.0
      %1647 = vmatpush1.msra.mxu0 0.0
      %1648 = vmatprep.subr.mxu0 0.0
      %1649 = vmatpush1.msra.mxu0 0.0
      %1650 = vmatprep.subr.mxu0 0.0
      %1651 = vmatpush1.msra.mxu0 0.0
      %1652 = vmatprep.subr.mxu0 0.0
      %1653 = vmatpush1.msra.mxu0 0.0
      %1654 = vmatprep.subr.mxu0 0.0
      %1655 = vmatpush1.msra.mxu0 0.0
      %1656 = vmatprep.subr.mxu0 0.0
      %1657 = vmatpush1.msra.mxu0 0.0
      %1658 = vmatprep.subr.mxu0 0.0
      %1659 = vmatpush1.msra.mxu0 0.0
      %1660 = vmatprep.subr.mxu0 0.0
      %1661 = vmatpush1.msra.mxu0 0.0
      %1662 = vmatprep.subr.mxu0 0.0
      %1663 = vmatpush1.msra.mxu0 0.0
      %1664 = vmatprep.subr.mxu0 0.0
      %1665 = vmatpush1.msra.mxu0 0.0
      %1666 = vmatprep.subr.mxu0 0.0
      %1667 = vmatpush1.msra.mxu0 0.0
      %1668 = vmatprep.subr.mxu0 0.0
      %1669 = vmatpush1.msra.mxu0 0.0
      %1670 = vmatprep.subr.mxu0 0.0
      %1671 = vmatpush1.msra.mxu0 0.0
      %1672 = vmatprep.subr.mxu0 0.0
      %1673 = vmatpush1.msra.mxu0 0.0
      %1674 = vmatprep.subr.mxu0 0.0
      %1675 = vmatpush1.msra.mxu0 0.0
      %1676 = vmatprep.subr.mxu0 0.0
      %1677 = vmatpush1.msra.mxu0 0.0
      %1678 = vmatprep.subr.mxu0 0.0
      %1679 = vmatpush1.msra.mxu0 0.0
      %1680 = vmatprep.subr.mxu0 0.0
      %1681 = vmatpush1.msra.mxu0 0.0
      %1682 = vmatprep.subr.mxu0 0.0
      %1683 = vmatpush1.msra.mxu0 0.0
      %1684 = vmatprep.subr.mxu0 0.0
      %1685 = vmatpush1.msra.mxu0 0.0
      %1686 = vmatprep.subr.mxu0 0.0
      %1687 = vmatpush1.msra.mxu0 0.0
      %1688 = vmatprep.subr.mxu0 0.0
      %1689 = vmatpush1.msra.mxu0 0.0
      %1690 = vmatprep.subr.mxu0 0.0
      %1691 = vmatpush1.msra.mxu0 0.0
      %1692 = vmatprep.subr.mxu0 0.0
      %1693 = vmatpush1.msra.mxu0 0.0
      %1694 = vmatprep.subr.mxu0 0.0
      %1695 = vmatpush1.msra.mxu0 0.0
      %1696 = vmatprep.subr.mxu0 0.0
      %1697 = vmatpush1.msra.mxu0 0.0
      %1698 = vmatprep.subr.mxu0 0.0
      %1699 = vmatpush1.msra.mxu0 0.0
      %1700 = vmatprep.mubr.f32.mxu0 0.0
      %1701 = vmatmul.mubr.f32.gmra.mrb[0].mxu0 %v1634
      %v1702 = vpop.f32.mrb[0].mxu0
      %v1703 = vadd.f32 0.0, %v1702
      %v1704 = vpop.f32.mrb[0].mxu0
      %v1705 = vadd.f32 0.0, %v1704
      %1706 = vdwg.mxu0
      %1707 = vmatprep.subr.mxu0 0.0
      %1708 = vmatpush1.msra.mxu0 %v1626
      %1709 = vmatprep.subr.mxu0 0.0
      %1710 = vmatpush1.msra.mxu0 0.0
      %1711 = vmatprep.subr.mxu0 0.0
      %1712 = vmatpush1.msra.mxu0 0.0
      %1713 = vmatprep.subr.mxu0 0.0
      %1714 = vmatpush1.msra.mxu0 0.0
      %1715 = vmatprep.subr.mxu0 0.0
      %1716 = vmatpush1.msra.mxu0 0.0
      %1717 = vmatprep.subr.mxu0 0.0
      %1718 = vmatpush1.msra.mxu0 0.0
      %1719 = vmatprep.subr.mxu0 0.0
      %1720 = vmatpush1.msra.mxu0 0.0
      %1721 = vmatprep.subr.mxu0 0.0
      %1722 = vmatpush1.msra.mxu0 0.0
      %1723 = vmatprep.subr.mxu0 0.0
      %1724 = vmatpush1.msra.mxu0 0.0
      %1725 = vmatprep.subr.mxu0 0.0
      %1726 = vmatpush1.msra.mxu0 0.0
      %1727 = vmatprep.subr.mxu0 0.0
      %1728 = vmatpush1.msra.mxu0 0.0
      %1729 = vmatprep.subr.mxu0 0.0
      %1730 = vmatpush1.msra.mxu0 0.0
      %1731 = vmatprep.subr.mxu0 0.0
      %1732 = vmatpush1.msra.mxu0 0.0
      %1733 = vmatprep.subr.mxu0 0.0
      %1734 = vmatpush1.msra.mxu0 0.0
      %1735 = vmatprep.subr.mxu0 0.0
      %1736 = vmatpush1.msra.mxu0 0.0
      %1737 = vmatprep.subr.mxu0 0.0
      %1738 = vmatpush1.msra.mxu0 0.0
      %1739 = vmatprep.subr.mxu0 0.0
      %1740 = vmatpush1.msra.mxu0 0.0
      %1741 = vmatprep.subr.mxu0 0.0
      %1742 = vmatpush1.msra.mxu0 0.0
      %1743 = vmatprep.subr.mxu0 0.0
      %1744 = vmatpush1.msra.mxu0 0.0
      %1745 = vmatprep.subr.mxu0 0.0
      %1746 = vmatpush1.msra.mxu0 0.0
      %1747 = vmatprep.subr.mxu0 0.0
      %1748 = vmatpush1.msra.mxu0 0.0
      %1749 = vmatprep.subr.mxu0 0.0
      %1750 = vmatpush1.msra.mxu0 0.0
      %1751 = vmatprep.subr.mxu0 0.0
      %1752 = vmatpush1.msra.mxu0 0.0
      %1753 = vmatprep.subr.mxu0 0.0
      %1754 = vmatpush1.msra.mxu0 0.0
      %1755 = vmatprep.subr.mxu0 0.0
      %1756 = vmatpush1.msra.mxu0 0.0
      %1757 = vmatprep.subr.mxu0 0.0
      %1758 = vmatpush1.msra.mxu0 0.0
      %1759 = vmatprep.subr.mxu0 0.0
      %1760 = vmatpush1.msra.mxu0 0.0
      %1761 = vmatprep.subr.mxu0 0.0
      %1762 = vmatpush1.msra.mxu0 0.0
      %1763 = vmatprep.subr.mxu0 0.0
      %1764 = vmatpush1.msra.mxu0 0.0
      %1765 = vmatprep.subr.mxu0 0.0
      %1766 = vmatpush1.msra.mxu0 0.0
      %1767 = vmatprep.subr.mxu0 0.0
      %1768 = vmatpush1.msra.mxu0 0.0
      %1769 = vmatprep.subr.mxu0 0.0
      %1770 = vmatpush1.msra.mxu0 0.0
      %1771 = vmatprep.mubr.f32.mxu0 0.0
      %1772 = vmatmul.mubr.f32.gmra.mrb[0].mxu0 %v1634
      %v1773 = vpop.f32.mrb[0].mxu0
      %v1774 = vadd.f32 0.0, %v1773
      %v1775 = vpop.f32.mrb[0].mxu0
      %1776 = vdwg.mxu0
      %v1777 = vadd.f32 %v1616, %v1703
      %v1778 = vadd.f32 %v1617, %v1705
      %v1779 = vadd.f32 %v1618, %v1774
      %v1780 = vld [vmem:[%s2] sm:$0x7]
      %v1782 = vlaneseq
      %v1783 = vshrl.u32 %v1782, 7
      %v1784 = vsub.s32 0, %v1783
      %v1785 = vrot.slane %v1780, %v1784
      %v1786 = vlaneseq
      %v1787 = vshrl.u32 %v1786, 7
      %v1788 = vsub.s32 1, %v1787
      %v1789 = vrot.slane %v1780, %v1788
      %v1790 = vlaneseq
      %v1791 = vshrl.u32 %v1790, 7
      %v1792 = vsub.s32 2, %v1791
      %v1793 = vrot.slane %v1780, %v1792
      %v1797 = vmul.f32 %v1777, %v1785
      %v1798 = vmul.f32 %v1778, %v1789
      %v1799 = vmul.f32 %v1779, %v1793
      %1800 = vst [vmem:[%s285] sm:$0xff] %v1797
      %1801 = vst [vmem:[%s285 + $0x8] sm:$0xff] %v1798
      %vm1802 = vcmask 261120
      %1803 = vst.msk [vmem:[%s285 + $0x10] sm:$0xff] %vm1802, %v1799
      %v1804 = vadd.f32 %v1797, %v1798
      %v1805 = vsel %vm1802, %v1799, 0.0
      %v1806 = vadd.f32 %v1804, %v1805
      %1807 = vadd.xlane.f32.xlu0 %v1806
      %v1808 = vpop.xlane.xlu0 %1807
      %vm1809 = vcmask 7168
      %1810 = vst.msk [vmem:[%s289] sm:$0xff] %vm1809, %v1808
      %v1811 = vmul.f32 %v1797, %v1797
      %v1812 = vmul.f32 %v1798, %v1798
      %v1813 = vmul.f32 %v1799, %v1799
      %v1814 = vadd.f32 %v1811, %v1812
      %v1815 = vsel %vm1802, %v1813, 0.0
      %v1816 = vadd.f32 %v1814, %v1815
      %1817 = vadd.xlane.f32.xlu0 %v1816
      %v1818 = vpop.xlane.xlu0 %1817
      %vm1819 = vcmask 15368
      %1820 = vst.msk [vmem:[%s289] sm:$0xff] %vm1819, %v1818
      %p1821 = scmp.lt.s32.totalorder %s19, 1
      %s1822 = scalar_select %p1821, %s19, 1
      %s1823 = smul.addr %s1822, 3
      %s1824 = smul.addr %s1823, 8
      %s1825 = scalar_lea.vmem %s6, %s1824
      %p1826 = scmp.lt.s32.totalorder %s19, 1
      %s1827 = scalar_select %p1826, %s19, 1
      %s1828 = smul.addr %s1827, 8
      %s1829 = scalar_lea.vmem %s7, %s1828
      // Predicated region
      $region45: #{conv_block_forward.4} parent=43 // pred_check
        %p1830 = pneg %p168
      $region46: #{conv_block_forward.4} parent=43 // pred_check_branch
        %1832 = sbr.rel (%p1830) target = $region48
      $region47: #{conv_block_forward.4} parent=43 // pred_region
        _
      $region48: #{conv_block_forward.4} parent=43 // pred_fallthru
        _
      // Predicated region
      $region49: #{conv_block_forward.4} parent=43 // pred_check
        %p1833 = pneg %p194
      $region50: #{conv_block_forward.4} parent=43 // pred_check_branch
        %1835 = sbr.rel (%p1833) target = $region52
      $region51: #{conv_block_forward.4} parent=43 // pred_region
        _
      $region52: #{conv_block_forward.4} parent=43 // pred_fallthru
        _
    $region44: #{conv_block_forward.4} parent=5 // pred_fallthru
      _
    %p1836 = scmp.le.s32.totalorder 2, %s14
    // Predicated region
    $region53: #{conv_block_forward.4} parent=5 // pred_check
      %p1837 = pneg %p1836
    $region54: #{conv_block_forward.4} parent=5 // pred_check_branch
      %1839 = sbr.rel (%p1837) target = $region56
    $region55: #{conv_block_forward.4} parent=5 // pred_region
      %s1840 = ssub.s32 %s14, 2
      // Predicated region
      $region57: #{conv_block_forward.4} parent=55 // pred_check
        %p1841 = pneg %p174
      $region58: #{conv_block_forward.4} parent=55 // pred_check_branch
        %1843 = sbr.rel (%p1841) target = $region60
      $region59: #{conv_block_forward.4} parent=55 // pred_region
        %p1844 = scmp.lt.s32.totalorder %s20, 1
        %s1845 = scalar_select %p1844, %s20, 1
        %s1846 = smul.addr %s1845, 3
        %s1847 = smul.addr %s1846, 8
        %s1848 = scalar_lea.vmem %s6, %s1847
      $region60: #{conv_block_forward.4} parent=55 // pred_fallthru
        _
      // Predicated region
      $region61: #{conv_block_forward.4} parent=55 // pred_check
        %p1849 = pneg %p200
      $region62: #{conv_block_forward.4} parent=55 // pred_check_branch
        %1851 = sbr.rel (%p1849) target = $region64
      $region63: #{conv_block_forward.4} parent=55 // pred_region
        %p1852 = scmp.lt.s32.totalorder %s20, 1
        %s1853 = scalar_select %p1852, %s20, 1
        %s1854 = smul.addr %s1853, 8
        %s1855 = scalar_lea.vmem %s7, %s1854
      $region64: #{conv_block_forward.4} parent=55 // pred_fallthru
        _
    $region56: #{conv_block_forward.4} parent=5 // pred_fallthru
      _
  $region6: #{conv_block_forward.4} parent=0 // loop_footer
    %s18 = sadd.s32 1, %s14
  $region7: #{conv_block_forward.4} parent=0 // loop_footer_branch
    %13 = sbr.rel target = $region3
  $region8: #{conv_block_forward.4} parent=0 // loop_exit
    _

</llo_original>
